<compile_context>
chip_gen: v7x
topology: tpu7x:2x2x1
jax: 0.10.0
libtpu: 0.0.40
codegen_flags: <defaults>
</compile_context>

<pallas_src>
import functools

import jax
import jax.numpy as jnp
from jax.experimental import pallas as pl
from jax.experimental.pallas import tpu as pltpu

# ---- synthetic R_variable configuration ------------------------------------
FULL_NET = [2, 32, 32, 1]   # R_variable['full_net']
ACT_FUC = 1                 # R_variable['ActFuc'] == 1 -> Tanh

TILE_B_MAX = 8192           # max batch tile on the 128-lane axis (multiple of 128)
SMALL_BATCH = 1024          # below this, plain XLA is cheaper than a pallas_call


def _cdiv(a, b):
    return -(-a // b)


def _activation(h):
    # Mirrors the ActFuc dispatch in Network.__init__ (hidden layers only).
    if ACT_FUC == 1:
        return jnp.tanh(h)
    elif ACT_FUC == 0:
        return jnp.maximum(h, 0.0)
    elif ACT_FUC == 3:
        return jnp.sin(h)
    elif ACT_FUC == 4:
        return h ** 50              # Act_op
    elif ACT_FUC == 5:
        return jax.nn.sigmoid(h)
    return h


def _use_bf16_hidden():
    """bf16 hidden path only where the VALU/EUP are bf16-capable (v6e/v7x)."""
    if ACT_FUC == 4:
        return False                # x**50 over/underflows badly in bf16
    try:
        kind = jax.devices()[0].device_kind.lower()
    except Exception:
        return False
    if "tpu" not in kind:
        return False
    # v5e and older: no bf16 VALU/EUP -> keep the f32 hidden path there.
    return not any(v in kind for v in ("v2", "v3", "v4", "v5"))


def _choose_tile(batch):
    """Largest tile <= TILE_B_MAX with an even step count when multi-step
    (keeps v7x's two TensorCores balanced); tile stays a multiple of 128."""
    steps = _cdiv(batch, TILE_B_MAX)
    if steps > 1 and steps % 2 == 1:
        steps += 1
    tile = max(_cdiv(_cdiv(batch, steps), 128) * 128, 128)
    return tile, _cdiv(batch, tile)


# ---- fused MLP kernel (transposed, lane-dense layout) -----------------------
def mlp_kernel(x_ref, w0_ref, b0_ref, w1_ref, b1_ref, w2_ref, b2_ref, o_ref,
               *, hidden_dtype):
    # Layout: features on sublanes, batch on the 128-lane axis (lane-dense
    # DMA + unmasked stores).
    x = x_ref[...].astype(hidden_dtype)          # (2, TILE)
    w0 = w0_ref[...]                             # (32, 2) hidden_dtype

    # Layer 0 (K=2): two broadcast multiply-adds on the VPU instead of a
    # ~99%-idle MXU op.
    h = w0[:, 0:1] * x[0:1, :] + w0[:, 1:2] * x[1:2, :] + b0_ref[...]
    h = _activation(h)                           # tanh on the EUP (bf16 on v6e/v7x)

    # Layer 1 (32x32): MXU, bf16 operands, f32 accumulate.
    acc = jnp.dot(w1_ref[...], h.astype(jnp.bfloat16),
                  preferred_element_type=jnp.float32)
    h = _activation(acc.astype(hidden_dtype) + b1_ref[...])

    # Layer 2 (out dim = 1): elementwise multiply + sublane reduce in f32
    # instead of a 1-column MXU op.
    out = jnp.sum(w2_ref[...] * h.astype(jnp.float32), axis=0, keepdims=True)
    o_ref[...] = (out + b2_ref[...]).astype(o_ref.dtype)   # (1, TILE) lane-dense


# ---- pure-JAX reference / small-batch fallback ------------------------------
def _reference_f32(x, params):
    h = x
    for i, (w, b) in enumerate(params):
        h = jnp.dot(h, w, precision="highest") + b
        if i < len(params) - 1:
            h = _activation(h)
    return h


# ---- wrapper -----------------------------------------------------------------
def network_forward(x, params):
    """x: (batch, FULL_NET[0]) f32 (PyTorch nn.Linear layout).
       params: list of (W, b) with W (in, out), b (1, out); math is x @ W + b."""
    (w0, b0), (w1, b1), (w2, b2) = params
    batch = x.shape[0]
    in_dim, out_dim = w0.shape[0], w2.shape[1]

    if batch < SMALL_BATCH:
        # pallas_call dispatch + pipeline warm-up dominates sub-tile point
        # clouds; let XLA fuse the three tiny GEMMs instead.
        return _reference_f32(x, params)

    hidden_dtype = jnp.bfloat16 if _use_bf16_hidden() else jnp.float32
    tile, steps = _choose_tile(batch)

    # (features, batch): batch maps to the lane axis.  Single transpose copy;
    # no pad pass -- the last grid block is partial (OOB lanes dropped).
    x_t = x.T                                           # (in_dim, batch)

    # Kernel-side parameter layouts (VMEM-resident across all grid steps).
    w0k = w0.T.astype(hidden_dtype)                     # (32, 2)  (out, in)
    b0k = b0.T.astype(hidden_dtype)                     # (32, 1)
    w1k = w1.T.astype(jnp.bfloat16)                     # (32, 32) MXU operand
    b1k = b1.T.astype(hidden_dtype)                     # (32, 1)
    w2k = w2.astype(jnp.float32)                        # (32, 1)  (in, out) for reduce
    b2k = b2.T.astype(jnp.float32)                      # (1, 1)

    resident = lambda shape: pl.BlockSpec(shape, lambda i: (0, 0))
    kernel = functools.partial(mlp_kernel, hidden_dtype=hidden_dtype)

    out_t = pl.pallas_call(
        kernel,
        out_shape=jax.ShapeDtypeStruct((out_dim, batch), jnp.float32),
        grid=(steps,),
        in_specs=[
            pl.BlockSpec((in_dim, tile), lambda i: (0, i)),   # x tile per step
            resident(w0k.shape), resident(b0k.shape),
            resident(w1k.shape), resident(b1k.shape),
            resident(w2k.shape), resident(b2k.shape),
        ],
        out_specs=pl.BlockSpec((out_dim, tile), lambda i: (0, i)),
        compiler_params=pltpu.CompilerParams(
            dimension_semantics=("parallel",)),   # megacore-shardable on v7x
    )(x_t, w0k, b0k, w1k, b1k, w2k, b2k)

    return out_t.T                                      # (batch, out_dim)


def init_params(key):
    """Deterministic PyTorch-Linear-style init: U(-1/sqrt(fan_in), 1/sqrt(fan_in))."""
    params = []
    for i in range(len(FULL_NET) - 1):
        fan_in, fan_out = FULL_NET[i], FULL_NET[i + 1]
        key, kw, kb = jax.random.split(key, 3)
        bound = 1.0 / (fan_in ** 0.5)
        w = jax.random.uniform(kw, (fan_in, fan_out), jnp.float32, -bound, bound)
        b = jax.random.uniform(kb, (1, fan_out), jnp.float32, -bound, bound)
        params.append((w, b))
    return params


if __name__ == "__main__":
    key = jax.random.PRNGKey(0)
    k_x, k_p = jax.random.split(key)

    # PDE-style point cloud; non-multiple of 128 to exercise the partial last
    # block, and sized so the grid has an even (2) number of steps:
    # 9001 points -> tile 4608 -> 2 parallel grid steps.
    batch = 9001
    x = jax.random.normal(k_x, (batch, FULL_NET[0]), jnp.float32)
    params = init_params(k_p)

    out = network_forward(x, params)
    jax.block_until_ready(out)

    # Sanity check vs. a plain f32 JAX reference of the same math.  The bf16
    # hidden path on v6e/v7x carries ~1e-2-level absolute error vs f32, so the
    # tolerance is widened there; the v5e/f32 path only differs by the
    # bf16-operand middle matmul.
    ref = _reference_f32(x, params)
    tol = 5e-2 if _use_bf16_hidden() else 1e-2
    assert out.shape == (batch, FULL_NET[-1])
    assert jnp.allclose(out, ref, atol=tol, rtol=tol), \
        float(jnp.max(jnp.abs(out - ref)))

    print("KERNEL_OK")
</pallas_src>

<mosaic_0001>
module attributes {stable_mosaic.version = 11 : i64} {
  func.func @mlp_kernel(%arg0: i32, %arg1: memref<2x4608xf32, #tpu.memory_space<vmem>>, %arg2: memref<32x2xf32, #tpu.memory_space<vmem>>, %arg3: memref<32x1xf32, #tpu.memory_space<vmem>>, %arg4: memref<32x32xbf16, #tpu.memory_space<vmem>>, %arg5: memref<32x1xf32, #tpu.memory_space<vmem>>, %arg6: memref<32x1xf32, #tpu.memory_space<vmem>>, %arg7: memref<1x1xf32, #tpu.memory_space<vmem>>, %arg8: memref<1x4608xf32, #tpu.memory_space<vmem>>) attributes {dimension_semantics = [#tpu.dimension_semantics<parallel>], iteration_bounds = array<i64: 2>, scalar_prefetch = 0 : i64, scratch_operands = 0 : i64, tpu.core_type = #tpu.core_type<tc>, window_params = [{transform_indices = @transform_0, window_bounds = array<i64: 2, 4608>}, {pipeline_mode = #tpu.pipeline_mode<synchronous>, transform_indices = @transform_1, window_bounds = array<i64: 32, 2>}, {pipeline_mode = #tpu.pipeline_mode<synchronous>, transform_indices = @transform_2, window_bounds = array<i64: 32, 1>}, {pipeline_mode = #tpu.pipeline_mode<synchronous>, transform_indices = @transform_3, window_bounds = array<i64: 32, 32>}, {pipeline_mode = #tpu.pipeline_mode<synchronous>, transform_indices = @transform_4, window_bounds = array<i64: 32, 1>}, {pipeline_mode = #tpu.pipeline_mode<synchronous>, transform_indices = @transform_5, window_bounds = array<i64: 32, 1>}, {pipeline_mode = #tpu.pipeline_mode<synchronous>, transform_indices = @transform_6, window_bounds = array<i64: 1, 1>}, {transform_indices = @transform_7, window_bounds = array<i64: 1, 4608>}]} {
    %c0 = arith.constant 0 : index
    %c0_0 = arith.constant 0 : index
    %0 = vector.load %arg1[%c0, %c0_0] : memref<2x4608xf32, #tpu.memory_space<vmem>>, vector<2x4608xf32>
    %c0_1 = arith.constant 0 : index
    %c0_2 = arith.constant 0 : index
    %1 = vector.load %arg2[%c0_1, %c0_2] : memref<32x2xf32, #tpu.memory_space<vmem>>, vector<32x2xf32>
    %2 = vector.extract_strided_slice %1 {offsets = [0, 0], sizes = [32, 1], strides = [1, 1]} : vector<32x2xf32> to vector<32x1xf32>
    %3 = vector.extract_strided_slice %0 {offsets = [0, 0], sizes = [1, 4608], strides = [1, 1]} : vector<2x4608xf32> to vector<1x4608xf32>
    %4 = vector.broadcast %2 : vector<32x1xf32> to vector<32x4608xf32>
    %5 = vector.broadcast %3 : vector<1x4608xf32> to vector<32x4608xf32>
    %6 = arith.mulf %4, %5 : vector<32x4608xf32>
    %7 = vector.extract_strided_slice %1 {offsets = [0, 1], sizes = [32, 1], strides = [1, 1]} : vector<32x2xf32> to vector<32x1xf32>
    %8 = vector.extract_strided_slice %0 {offsets = [1, 0], sizes = [1, 4608], strides = [1, 1]} : vector<2x4608xf32> to vector<1x4608xf32>
    %9 = vector.broadcast %7 : vector<32x1xf32> to vector<32x4608xf32>
    %10 = vector.broadcast %8 : vector<1x4608xf32> to vector<32x4608xf32>
    %11 = arith.mulf %9, %10 : vector<32x4608xf32>
    %12 = arith.addf %6, %11 : vector<32x4608xf32>
    %c0_3 = arith.constant 0 : index
    %c0_4 = arith.constant 0 : index
    %13 = vector.load %arg3[%c0_3, %c0_4] : memref<32x1xf32, #tpu.memory_space<vmem>>, vector<32x1xf32>
    %14 = vector.broadcast %13 : vector<32x1xf32> to vector<32x4608xf32>
    %15 = arith.addf %12, %14 : vector<32x4608xf32>
    %16 = math.tanh %15 : vector<32x4608xf32>
    %c0_5 = arith.constant 0 : index
    %c0_6 = arith.constant 0 : index
    %17 = vector.load %arg4[%c0_5, %c0_6] : memref<32x32xbf16, #tpu.memory_space<vmem>>, vector<32x32xbf16>
    %18 = arith.truncf %16 : vector<32x4608xf32> to vector<32x4608xbf16>
    %cst = arith.constant dense<0.000000e+00> : vector<32x4608xf32>
    %19 = tpu.matmul %17, %18, %cst {dimension_numbers = #tpu.dot_dimension_numbers<[1], [0], [0], [1], [0, 0, 1, 1], [], []>} : vector<32x32xbf16>, vector<32x4608xbf16>, vector<32x4608xf32> -> vector<32x4608xf32>
    %c0_7 = arith.constant 0 : index
    %c0_8 = arith.constant 0 : index
    %20 = vector.load %arg5[%c0_7, %c0_8] : memref<32x1xf32, #tpu.memory_space<vmem>>, vector<32x1xf32>
    %21 = vector.broadcast %20 : vector<32x1xf32> to vector<32x4608xf32>
    %22 = arith.addf %19, %21 : vector<32x4608xf32>
    %23 = math.tanh %22 : vector<32x4608xf32>
    %c0_9 = arith.constant 0 : index
    %c0_10 = arith.constant 0 : index
    %24 = vector.load %arg6[%c0_9, %c0_10] : memref<32x1xf32, #tpu.memory_space<vmem>>, vector<32x1xf32>
    %25 = vector.broadcast %24 : vector<32x1xf32> to vector<32x4608xf32>
    %26 = arith.mulf %25, %23 : vector<32x4608xf32>
    %cst_11 = arith.constant dense<0.000000e+00> : vector<4608xf32>
    %27 = vector.multi_reduction <add>, %26, %cst_11 [0] : vector<32x4608xf32> to vector<4608xf32>
    %28 = vector.shape_cast %27 : vector<4608xf32> to vector<1x4608xf32>
    %c0_12 = arith.constant 0 : index
    %c0_13 = arith.constant 0 : index
    %29 = vector.load %arg7[%c0_12, %c0_13] : memref<1x1xf32, #tpu.memory_space<vmem>>, vector<1x1xf32>
    %30 = vector.broadcast %29 : vector<1x1xf32> to vector<1x4608xf32>
    %31 = arith.addf %28, %30 : vector<1x4608xf32>
    %c0_14 = arith.constant 0 : index
    %c0_15 = arith.constant 0 : index
    %32 = vector.load %arg8[%c0_14, %c0_15] : memref<1x4608xf32, #tpu.memory_space<vmem>>, vector<1x4608xf32>
    tpu.vector_store %arg8[%c0_14, %c0_15], %31 {strides = array<i32>} : memref<1x4608xf32, #tpu.memory_space<vmem>>, vector<1x4608xf32>,
    return
  }
  func.func @transform_0(%arg0: i32) -> (i32, i32) {
    %c0_i32 = arith.constant 0 : i32
    %c0_i32_0 = arith.constant 0 : i32
    return %c0_i32, %arg0 : i32, i32
  }
  func.func @transform_1(%arg0: i32) -> (i32, i32) {
    %c0_i32 = arith.constant 0 : i32
    %c0_i32_0 = arith.constant 0 : i32
    %c0_i32_1 = arith.constant 0 : i32
    return %c0_i32, %c0_i32_0 : i32, i32
  }
  func.func @transform_2(%arg0: i32) -> (i32, i32) {
    %c0_i32 = arith.constant 0 : i32
    %c0_i32_0 = arith.constant 0 : i32
    %c0_i32_1 = arith.constant 0 : i32
    return %c0_i32, %c0_i32_0 : i32, i32
  }
  func.func @transform_3(%arg0: i32) -> (i32, i32) {
    %c0_i32 = arith.constant 0 : i32
    %c0_i32_0 = arith.constant 0 : i32
    %c0_i32_1 = arith.constant 0 : i32
    return %c0_i32, %c0_i32_0 : i32, i32
  }
  func.func @transform_4(%arg0: i32) -> (i32, i32) {
    %c0_i32 = arith.constant 0 : i32
    %c0_i32_0 = arith.constant 0 : i32
    %c0_i32_1 = arith.constant 0 : i32
    return %c0_i32, %c0_i32_0 : i32, i32
  }
  func.func @transform_5(%arg0: i32) -> (i32, i32) {
    %c0_i32 = arith.constant 0 : i32
    %c0_i32_0 = arith.constant 0 : i32
    %c0_i32_1 = arith.constant 0 : i32
    return %c0_i32, %c0_i32_0 : i32, i32
  }
  func.func @transform_6(%arg0: i32) -> (i32, i32) {
    %c0_i32 = arith.constant 0 : i32
    %c0_i32_0 = arith.constant 0 : i32
    %c0_i32_1 = arith.constant 0 : i32
    return %c0_i32, %c0_i32_0 : i32, i32
  }
  func.func @transform_7(%arg0: i32) -> (i32, i32) {
    %c0_i32 = arith.constant 0 : i32
    %c0_i32_0 = arith.constant 0 : i32
    return %c0_i32, %arg0 : i32, i32
  }
}

</mosaic_0001>

<llo_original>
// kernel: tpu_custom_call.1
$region0: #{tpu_custom_call.1}
  #allocation0 [shape = 'u32[]', space=smem, size = 0x4, offset = 0x4, fixed_abs, tag = 'smem constant byte address 0x4 - core index']
  #allocation1 [shape = 'u32[144,128]{1,0:T(1,128)}', space=vmem, size = 0x12000, scoped, tag = 'internal scratch']
  #allocation2 [shape = 'f32[1,1]{1,0:T(1,128)S(1)}', space=vmem, size = 0x200, scoped, tag = 'scoped memory for tpu_custom_call.1']
  %s0 = inlined_call_operand.hbm [shape: f32[2,9001], index: 0, kind: input, shape index: {}]
  %s1 = inlined_call_operand.vmem [shape: f32[32,2], index: 1, kind: input, shape index: {}]
  %s2 = inlined_call_operand.vmem [shape: f32[32,1], index: 2, kind: input, shape index: {}]
  %s3 = inlined_call_operand.vmem [shape: bf16[32,32], index: 3, kind: input, shape index: {}]
  %s4 = inlined_call_operand.vmem [shape: f32[32,1], index: 4, kind: input, shape index: {}]
  %s5 = inlined_call_operand.vmem [shape: f32[32,1], index: 5, kind: input, shape index: {}]
  %s6 = inlined_call_operand.<no memory space> [shape: f32[1,1], index: 6, kind: input, shape index: {}]
  %s7 = inlined_call_operand.hbm [shape: f32[1,9001], index: 7, kind: output, shape index: {}]
  %s8 = sld [smem:[#allocation0]]
  $region65: #{tpu_custom_call.1} parent=0
    _
  %s10 = ssub.s32 1, %s8
  %s11 = scalar_select 0, %s10, %s8
  %v12 = vstv %s6
  %13 = vst [vmem:[#allocation2] sm:$0x1] %v12
  $region1: #{tpu_custom_call.1} parent=0
    #allocation3 [shape = 'u8[73728]{0}', space=vmem, size = 0x12000, scoped, tag = 'input window, operand 0']
    #allocation4 [shape = 's32[2]{0}', space=sflag, size = 0x8, scoped, tag = 'scoped memory for tpu_custom_call.1']
    #allocation5 [shape = 's32[2]{0}', space=sflag, size = 0x8, scoped, tag = 'scoped memory for tpu_custom_call.1']
    #allocation6 [shape = 'u8[36864]{0}', space=vmem, size = 0x9000, scoped, tag = 'output window, operand 0']
    %14 = vsyncpa [#allocation4], 0
    %s15 = scalar_lea.sflag [#allocation4], 1
    %16 = vsyncpa %s15, 0
    %17 = vsyncpa [#allocation5], 0
    %s18 = scalar_lea.sflag [#allocation5], 1
    %19 = vsyncpa %s18, 0
    loop: start=0, step=1, limit=4
    $region2: #{tpu_custom_call.1} parent=1 // loop_pre_header
      _
    $region3: #{tpu_custom_call.1} parent=1 // loop_header
      %s21 = sphi 0, %s25
      %p22 = scmp.ge.s32.totalorder %s21, 4
      %s31 = sphi 0, %s33
      %s34 = sphi 0, %s31
      %s35 = sphi 0, %s34
      %s51 = sphi 0, %s35
      %s55 = sphi 0, %s55
      %s57 = sphi 0, %s55
      %s58 = sphi 0, %s57
      %s72 = sphi 0, %s58
      %s76 = sphi 0, %s76
      %s78 = sphi 0, %s76
      %s79 = sphi 0, %s78
      %s93 = sphi 0, %s79
      %s97 = sphi 0, %s97
      %s99 = sphi 0, %s97
      %s100 = sphi 0, %s99
      %s114 = sphi 0, %s100
      %s118 = sphi 0, %s118
      %s120 = sphi 0, %s118
      %s121 = sphi 0, %s120
      %s135 = sphi 0, %s121
      %s139 = sphi 0, %s139
      %s141 = sphi 0, %s139
      %s142 = sphi 0, %s141
      %s156 = sphi 0, %s142
      %s160 = sphi 0, %s160
      %s162 = sphi 0, %s160
      %s163 = sphi 0, %s162
      %s177 = sphi 0, %s163
      %s183 = sphi 0, %s185
      %s186 = sphi 0, %s183
      %s187 = sphi 0, %s186
      %s203 = sphi 0, %s187
    $region4: #{tpu_custom_call.1} parent=1 // loop_header_branch
      %24 = sbr.rel (%p22) target = $region8
    $region5: #{tpu_custom_call.1} parent=1 // loop_body
      %s26 = ssub.s32 %s21, 1
      %s27 = ssub.s32 %s21, 2
      %s28 = sadd.s32 %s21, 1
      %s29 = ssub.s32 %s21, %s28
      %p30 = scmp.eq.s32.totalorder %s29, 0
      %s32 = sadd.s32 %s31, 1
      %s33 = scalar_select %p30, %s31, %s32
      %p36 = pneg %p30
      %p37 = scmp.eq.s32.totalorder %s21, 1
      %p38 = por %p36, %p37
      %p39 = scmp.ne.s32.totalorder %s31, %s34
      %p40 = scmp.eq.s32.totalorder %s21, 0
      %p41 = por %p39, %p40
      %p42 = scmp.ne.s32.totalorder %s31, %s34
      %p43 = scmp.eq.s32.totalorder %s26, 1
      %p44 = por %p42, %p43
      %p45 = scmp.ne.s32.totalorder %s34, %s35
      %p46 = scmp.eq.s32.totalorder %s26, 0
      %p47 = por %p45, %p46
      %p48 = scmp.ne.s32.totalorder %s34, %s35
      %p49 = scmp.eq.s32.totalorder %s27, 1
      %p50 = por %p48, %p49
      %p52 = scmp.ne.s32.totalorder %s35, %s51
      %p53 = scmp.eq.s32.totalorder %s27, 0
      %p54 = por %p52, %p53
      %s56 = sadd.s32 %s55, 1
      %p59 = scmp.eq.s32.totalorder %s21, 1
      %p60 = scmp.ne.s32.totalorder %s55, %s57
      %p61 = scmp.eq.s32.totalorder %s21, 0
      %p62 = por %p60, %p61
      %p63 = scmp.ne.s32.totalorder %s55, %s57
      %p64 = scmp.eq.s32.totalorder %s26, 1
      %p65 = por %p63, %p64
      %p66 = scmp.ne.s32.totalorder %s57, %s58
      %p67 = scmp.eq.s32.totalorder %s26, 0
      %p68 = por %p66, %p67
      %p69 = scmp.ne.s32.totalorder %s57, %s58
      %p70 = scmp.eq.s32.totalorder %s27, 1
      %p71 = por %p69, %p70
      %p73 = scmp.ne.s32.totalorder %s58, %s72
      %p74 = scmp.eq.s32.totalorder %s27, 0
      %p75 = por %p73, %p74
      %s77 = sadd.s32 %s76, 1
      %p80 = scmp.eq.s32.totalorder %s21, 1
      %p81 = scmp.ne.s32.totalorder %s76, %s78
      %p82 = scmp.eq.s32.totalorder %s21, 0
      %p83 = por %p81, %p82
      %p84 = scmp.ne.s32.totalorder %s76, %s78
      %p85 = scmp.eq.s32.totalorder %s26, 1
      %p86 = por %p84, %p85
      %p87 = scmp.ne.s32.totalorder %s78, %s79
      %p88 = scmp.eq.s32.totalorder %s26, 0
      %p89 = por %p87, %p88
      %p90 = scmp.ne.s32.totalorder %s78, %s79
      %p91 = scmp.eq.s32.totalorder %s27, 1
      %p92 = por %p90, %p91
      %p94 = scmp.ne.s32.totalorder %s79, %s93
      %p95 = scmp.eq.s32.totalorder %s27, 0
      %p96 = por %p94, %p95
      %s98 = sadd.s32 %s97, 1
      %p101 = scmp.eq.s32.totalorder %s21, 1
      %p102 = scmp.ne.s32.totalorder %s97, %s99
      %p103 = scmp.eq.s32.totalorder %s21, 0
      %p104 = por %p102, %p103
      %p105 = scmp.ne.s32.totalorder %s97, %s99
      %p106 = scmp.eq.s32.totalorder %s26, 1
      %p107 = por %p105, %p106
      %p108 = scmp.ne.s32.totalorder %s99, %s100
      %p109 = scmp.eq.s32.totalorder %s26, 0
      %p110 = por %p108, %p109
      %p111 = scmp.ne.s32.totalorder %s99, %s100
      %p112 = scmp.eq.s32.totalorder %s27, 1
      %p113 = por %p111, %p112
      %p115 = scmp.ne.s32.totalorder %s100, %s114
      %p116 = scmp.eq.s32.totalorder %s27, 0
      %p117 = por %p115, %p116
      %s119 = sadd.s32 %s118, 1
      %p122 = scmp.eq.s32.totalorder %s21, 1
      %p123 = scmp.ne.s32.totalorder %s118, %s120
      %p124 = scmp.eq.s32.totalorder %s21, 0
      %p125 = por %p123, %p124
      %p126 = scmp.ne.s32.totalorder %s118, %s120
      %p127 = scmp.eq.s32.totalorder %s26, 1
      %p128 = por %p126, %p127
      %p129 = scmp.ne.s32.totalorder %s120, %s121
      %p130 = scmp.eq.s32.totalorder %s26, 0
      %p131 = por %p129, %p130
      %p132 = scmp.ne.s32.totalorder %s120, %s121
      %p133 = scmp.eq.s32.totalorder %s27, 1
      %p134 = por %p132, %p133
      %p136 = scmp.ne.s32.totalorder %s121, %s135
      %p137 = scmp.eq.s32.totalorder %s27, 0
      %p138 = por %p136, %p137
      %s140 = sadd.s32 %s139, 1
      %p143 = scmp.eq.s32.totalorder %s21, 1
      %p144 = scmp.ne.s32.totalorder %s139, %s141
      %p145 = scmp.eq.s32.totalorder %s21, 0
      %p146 = por %p144, %p145
      %p147 = scmp.ne.s32.totalorder %s139, %s141
      %p148 = scmp.eq.s32.totalorder %s26, 1
      %p149 = por %p147, %p148
      %p150 = scmp.ne.s32.totalorder %s141, %s142
      %p151 = scmp.eq.s32.totalorder %s26, 0
      %p152 = por %p150, %p151
      %p153 = scmp.ne.s32.totalorder %s141, %s142
      %p154 = scmp.eq.s32.totalorder %s27, 1
      %p155 = por %p153, %p154
      %p157 = scmp.ne.s32.totalorder %s142, %s156
      %p158 = scmp.eq.s32.totalorder %s27, 0
      %p159 = por %p157, %p158
      %s161 = sadd.s32 %s160, 1
      %p164 = scmp.eq.s32.totalorder %s21, 1
      %p165 = scmp.ne.s32.totalorder %s160, %s162
      %p166 = scmp.eq.s32.totalorder %s21, 0
      %p167 = por %p165, %p166
      %p168 = scmp.ne.s32.totalorder %s160, %s162
      %p169 = scmp.eq.s32.totalorder %s26, 1
      %p170 = por %p168, %p169
      %p171 = scmp.ne.s32.totalorder %s162, %s163
      %p172 = scmp.eq.s32.totalorder %s26, 0
      %p173 = por %p171, %p172
      %p174 = scmp.ne.s32.totalorder %s162, %s163
      %p175 = scmp.eq.s32.totalorder %s27, 1
      %p176 = por %p174, %p175
      %p178 = scmp.ne.s32.totalorder %s163, %s177
      %p179 = scmp.eq.s32.totalorder %s27, 0
      %p180 = por %p178, %p179
      %s181 = ssub.s32 %s21, %s28
      %p182 = scmp.eq.s32.totalorder %s181, 0
      %s184 = sadd.s32 %s183, 1
      %s185 = scalar_select %p182, %s183, %s184
      %p188 = pneg %p182
      %p189 = scmp.eq.s32.totalorder %s21, 1
      %p190 = por %p188, %p189
      %p191 = scmp.ne.s32.totalorder %s183, %s186
      %p192 = scmp.eq.s32.totalorder %s21, 0
      %p193 = por %p191, %p192
      %p194 = scmp.ne.s32.totalorder %s183, %s186
      %p195 = scmp.eq.s32.totalorder %s26, 1
      %p196 = por %p194, %p195
      %p197 = scmp.ne.s32.totalorder %s186, %s187
      %p198 = scmp.eq.s32.totalorder %s26, 0
      %p199 = por %p197, %p198
      %p200 = scmp.ne.s32.totalorder %s186, %s187
      %p201 = scmp.eq.s32.totalorder %s27, 1
      %p202 = por %p200, %p201
      %p204 = scmp.ne.s32.totalorder %s187, %s203
      %p205 = scmp.eq.s32.totalorder %s27, 0
      %p206 = por %p204, %p205
      %p207 = scmp.le.s32.totalorder 1, %s21
      %p208 = scmp.lt.s32.totalorder %s21, 3
      %p209 = pnand %p207, %p208
      %p210 = pneg %p209
      // Predicated region
      $region9: #{tpu_custom_call.1} parent=5 // pred_check
        _
      $region10: #{tpu_custom_call.1} parent=5 // pred_check_branch
        %212 = sbr.rel (%p209) target = $region12
      $region11: #{tpu_custom_call.1} parent=5 // pred_region
        %s213 = ssub.s32 %s21, 1
        // Predicated region
        $region13: #{tpu_custom_call.1} parent=11 // pred_check
          %p214 = pneg %p68
        $region14: #{tpu_custom_call.1} parent=11 // pred_check_branch
          %216 = sbr.rel (%p214) target = $region16
        $region15: #{tpu_custom_call.1} parent=11 // pred_region
          _
        $region16: #{tpu_custom_call.1} parent=11 // pred_fallthru
          _
        // Predicated region
        $region17: #{tpu_custom_call.1} parent=11 // pred_check
          %p217 = pneg %p89
        $region18: #{tpu_custom_call.1} parent=11 // pred_check_branch
          %219 = sbr.rel (%p217) target = $region20
        $region19: #{tpu_custom_call.1} parent=11 // pred_region
          _
        $region20: #{tpu_custom_call.1} parent=11 // pred_fallthru
          _
        // Predicated region
        $region21: #{tpu_custom_call.1} parent=11 // pred_check
          %p220 = pneg %p110
        $region22: #{tpu_custom_call.1} parent=11 // pred_check_branch
          %222 = sbr.rel (%p220) target = $region24
        $region23: #{tpu_custom_call.1} parent=11 // pred_region
          _
        $region24: #{tpu_custom_call.1} parent=11 // pred_fallthru
          _
        // Predicated region
        $region25: #{tpu_custom_call.1} parent=11 // pred_check
          %p223 = pneg %p131
        $region26: #{tpu_custom_call.1} parent=11 // pred_check_branch
          %225 = sbr.rel (%p223) target = $region28
        $region27: #{tpu_custom_call.1} parent=11 // pred_region
          _
        $region28: #{tpu_custom_call.1} parent=11 // pred_fallthru
          _
        // Predicated region
        $region29: #{tpu_custom_call.1} parent=11 // pred_check
          %p226 = pneg %p152
        $region30: #{tpu_custom_call.1} parent=11 // pred_check_branch
          %228 = sbr.rel (%p226) target = $region32
        $region31: #{tpu_custom_call.1} parent=11 // pred_region
          _
        $region32: #{tpu_custom_call.1} parent=11 // pred_fallthru
          _
        // Predicated region
        $region33: #{tpu_custom_call.1} parent=11 // pred_check
          %p229 = pneg %p173
        $region34: #{tpu_custom_call.1} parent=11 // pred_check_branch
          %231 = sbr.rel (%p229) target = $region36
        $region35: #{tpu_custom_call.1} parent=11 // pred_region
          _
        $region36: #{tpu_custom_call.1} parent=11 // pred_fallthru
          _
      $region12: #{tpu_custom_call.1} parent=5 // pred_fallthru
        _
      %p232 = scmp.lt.s32.totalorder %s21, 2
      // Predicated region
      $region37: #{tpu_custom_call.1} parent=5 // pred_check
        %p233 = pneg %p232
      $region38: #{tpu_custom_call.1} parent=5 // pred_check_branch
        %235 = sbr.rel (%p233) target = $region40
      $region39: #{tpu_custom_call.1} parent=5 // pred_region
        // Predicated region
        $region41: #{tpu_custom_call.1} parent=39 // pred_check
          %p236 = pneg %p41
        $region42: #{tpu_custom_call.1} parent=39 // pred_check_branch
          %238 = sbr.rel (%p236) target = $region44
        $region43: #{tpu_custom_call.1} parent=39 // pred_region
          %s239 = sand.u32 %s31, 1
          %s240 = scalar_lea.sflag [#allocation4], %s239
          %s241 = sand.u32 %s31, 1
          %s242 = smul.addr %s241, 72
          %s243 = scalar_lea.vmem [#allocation3], %s242
          %s244 = smul.u32 36, %s21
          %s245 = ssub.s32 71, %s244
          %p246 = scmp.lt.s32.totalorder %s245, 36
          %s247 = scalar_select %p246, %s245, 36
          %s248 = smul.u32 32, %s247
          %s250 = ssub.s32 1152, %s248
          %251 = vsyncadd %s240, %s250
          %p252 = scmp.ne.s32.totalorder 0, %s248
          %s253 = smul.addr %s244, 32
          %s254 = scalar_lea.hbm %s0, %s253
          %s255 = smul.u32 %s247, 2
          %s256 = sshll.u32 %s255, 4
          %s257 = sshll.u32 %s243, 4
          %s258 = int_to_ptr.vmem [resolvable:$true] %s257
          %260 = dma.hbm_to_vmem [thread:$0]  (%p252), %s254, %s256, %s258, %s240
        $region44: #{tpu_custom_call.1} parent=39 // pred_fallthru
          _
      $region40: #{tpu_custom_call.1} parent=5 // pred_fallthru
        _
      %p261 = scmp.le.s32.totalorder 1, %s21
      %p262 = scmp.lt.s32.totalorder %s21, 3
      %p263 = pnand %p261, %p262
      %p264 = pneg %p263
      // Predicated region
      $region45: #{tpu_custom_call.1} parent=5 // pred_check
        _
      $region46: #{tpu_custom_call.1} parent=5 // pred_check_branch
        %266 = sbr.rel (%p263) target = $region48
      $region47: #{tpu_custom_call.1} parent=5 // pred_region
        %s267 = ssub.s32 %s21, 1
        %s268 = sand.u32 %s34, 1
        %s269 = scalar_lea.sflag [#allocation4], %s268
        %s270 = sand.u32 %s34, 1
        %s271 = smul.addr %s270, 72
        %s272 = scalar_lea.vmem [#allocation3], %s271
        // Predicated region
        $region49: #{tpu_custom_call.1} parent=47 // pred_check
          %p273 = pneg %p47
        $region50: #{tpu_custom_call.1} parent=47 // pred_check_branch
          %275 = sbr.rel (%p273) target = $region52
        $region51: #{tpu_custom_call.1} parent=47 // pred_region
          %276 = dma.done %s269, 1152
        $region52: #{tpu_custom_call.1} parent=47 // pred_fallthru
          _
        %s277 = sand.u32 %s34, 1
        %s278 = scalar_lea.sflag [#allocation4], %s277
        %s279 = sand.u32 %s34, 1
        %s280 = smul.addr %s279, 72
        %s281 = scalar_lea.vmem [#allocation3], %s280
        %p282 = pneg %p47
        %p283 = pneg %p44
        %p284 = pneg %p68
        %p285 = pneg %p65
        %p286 = pneg %p89
        %p287 = pneg %p86
        %p288 = pneg %p110
        %p289 = pneg %p107
        %p290 = pneg %p131
        %p291 = pneg %p128
        %p292 = pneg %p152
        %p293 = pneg %p149
        %p294 = pneg %p173
        %p295 = pneg %p170
        %p296 = pneg %p199
        %p297 = pneg %p196
        %s298 = sand.u32 %s186, 1
        %s299 = scalar_lea.sflag [#allocation5], %s298
        %s300 = sand.u32 %s186, 1
        %s301 = smul.addr %s300, 36
        %s302 = scalar_lea.vmem [#allocation6], %s301
        %s303 = smul.u32 36, %s26
        %s304 = ssub.s32 71, %s303
        %p305 = scmp.lt.s32.totalorder %s304, 36
        %s306 = scalar_select %p305, %s304, 36
        %s307 = smul.u32 32, %s306
        %s308 = smul.u32 36, %s26
        %s309 = ssub.s32 71, %s308
        %p310 = scmp.lt.s32.totalorder %s309, 36
        %s311 = scalar_select %p310, %s309, 36
        %s312 = smul.u32 16, %s311
        %v314 = vld [vmem:[%s272] sm:$0xff]
        %v315 = vld [vmem:[%s272 + $0x8] sm:$0xff]
        %v316 = vld [vmem:[%s272 + $0x10] sm:$0xff]
        %v317 = vld [vmem:[%s272 + $0x18] sm:$0xff]
        %v318 = vld [vmem:[%s272 + $0x20] sm:$0xff]
        %v319 = vld [vmem:[%s272 + $0x28] sm:$0xff]
        %v320 = vld [vmem:[%s272 + $0x30] sm:$0xff]
        %v321 = vld [vmem:[%s272 + $0x38] sm:$0xff]
        %v322 = vld [vmem:[%s272 + $0x40] sm:$0xff]
        %v323 = vld [vmem:[%s1] sm:$0xff]
        %v324 = vld [vmem:[%s1 + $0x8] sm:$0xff]
        %v325 = vld [vmem:[%s1 + $0x10] sm:$0xff]
        %v326 = vld [vmem:[%s1 + $0x18] sm:$0xff]
        %328 = vset.pattern.permute.xlu0 0
        %329 = vperm.xlu0 %328, %v323
        %v330 = vpop.permute.xlu0 %329
        %333 = vset.pattern.permute.xlu0 0
        %334 = vperm.xlu0 %333, %v324
        %v335 = vpop.permute.xlu0 %334
        %338 = vset.pattern.permute.xlu0 0
        %339 = vperm.xlu0 %338, %v325
        %v340 = vpop.permute.xlu0 %339
        %343 = vset.pattern.permute.xlu0 0
        %344 = vperm.xlu0 %343, %v326
        %v345 = vpop.permute.xlu0 %344
        %v356 = vlaneseq
        %v357 = vshrl.u32 %v356, 7
        %v358 = vsub.s32 0, %v357
        %v359 = vrot.slane %v314, %v358
        %v360 = vlaneseq
        %v361 = vshrl.u32 %v360, 7
        %v362 = vsub.s32 2, %v361
        %v363 = vrot.slane %v314, %v362
        %v364 = vlaneseq
        %v365 = vshrl.u32 %v364, 7
        %v366 = vsub.s32 4, %v365
        %v367 = vrot.slane %v314, %v366
        %v368 = vlaneseq
        %v369 = vshrl.u32 %v368, 7
        %v370 = vsub.s32 6, %v369
        %v371 = vrot.slane %v314, %v370
        %v372 = vlaneseq
        %v373 = vshrl.u32 %v372, 7
        %v374 = vsub.s32 0, %v373
        %v375 = vrot.slane %v315, %v374
        %v376 = vlaneseq
        %v377 = vshrl.u32 %v376, 7
        %v378 = vsub.s32 2, %v377
        %v379 = vrot.slane %v315, %v378
        %v380 = vlaneseq
        %v381 = vshrl.u32 %v380, 7
        %v382 = vsub.s32 4, %v381
        %v383 = vrot.slane %v315, %v382
        %v384 = vlaneseq
        %v385 = vshrl.u32 %v384, 7
        %v386 = vsub.s32 6, %v385
        %v387 = vrot.slane %v315, %v386
        %v388 = vlaneseq
        %v389 = vshrl.u32 %v388, 7
        %v390 = vsub.s32 0, %v389
        %v391 = vrot.slane %v316, %v390
        %v392 = vlaneseq
        %v393 = vshrl.u32 %v392, 7
        %v394 = vsub.s32 2, %v393
        %v395 = vrot.slane %v316, %v394
        %v396 = vlaneseq
        %v397 = vshrl.u32 %v396, 7
        %v398 = vsub.s32 4, %v397
        %v399 = vrot.slane %v316, %v398
        %v400 = vlaneseq
        %v401 = vshrl.u32 %v400, 7
        %v402 = vsub.s32 6, %v401
        %v403 = vrot.slane %v316, %v402
        %v404 = vlaneseq
        %v405 = vshrl.u32 %v404, 7
        %v406 = vsub.s32 0, %v405
        %v407 = vrot.slane %v317, %v406
        %v408 = vlaneseq
        %v409 = vshrl.u32 %v408, 7
        %v410 = vsub.s32 2, %v409
        %v411 = vrot.slane %v317, %v410
        %v412 = vlaneseq
        %v413 = vshrl.u32 %v412, 7
        %v414 = vsub.s32 4, %v413
        %v415 = vrot.slane %v317, %v414
        %v416 = vlaneseq
        %v417 = vshrl.u32 %v416, 7
        %v418 = vsub.s32 6, %v417
        %v419 = vrot.slane %v317, %v418
        %v420 = vlaneseq
        %v421 = vshrl.u32 %v420, 7
        %v422 = vsub.s32 0, %v421
        %v423 = vrot.slane %v318, %v422
        %v424 = vlaneseq
        %v425 = vshrl.u32 %v424, 7
        %v426 = vsub.s32 2, %v425
        %v427 = vrot.slane %v318, %v426
        %v428 = vlaneseq
        %v429 = vshrl.u32 %v428, 7
        %v430 = vsub.s32 4, %v429
        %v431 = vrot.slane %v318, %v430
        %v432 = vlaneseq
        %v433 = vshrl.u32 %v432, 7
        %v434 = vsub.s32 6, %v433
        %v435 = vrot.slane %v318, %v434
        %v436 = vlaneseq
        %v437 = vshrl.u32 %v436, 7
        %v438 = vsub.s32 0, %v437
        %v439 = vrot.slane %v319, %v438
        %v440 = vlaneseq
        %v441 = vshrl.u32 %v440, 7
        %v442 = vsub.s32 2, %v441
        %v443 = vrot.slane %v319, %v442
        %v444 = vlaneseq
        %v445 = vshrl.u32 %v444, 7
        %v446 = vsub.s32 4, %v445
        %v447 = vrot.slane %v319, %v446
        %v448 = vlaneseq
        %v449 = vshrl.u32 %v448, 7
        %v450 = vsub.s32 6, %v449
        %v451 = vrot.slane %v319, %v450
        %v452 = vlaneseq
        %v453 = vshrl.u32 %v452, 7
        %v454 = vsub.s32 0, %v453
        %v455 = vrot.slane %v320, %v454
        %v456 = vlaneseq
        %v457 = vshrl.u32 %v456, 7
        %v458 = vsub.s32 2, %v457
        %v459 = vrot.slane %v320, %v458
        %v460 = vlaneseq
        %v461 = vshrl.u32 %v460, 7
        %v462 = vsub.s32 4, %v461
        %v463 = vrot.slane %v320, %v462
        %v464 = vlaneseq
        %v465 = vshrl.u32 %v464, 7
        %v466 = vsub.s32 6, %v465
        %v467 = vrot.slane %v320, %v466
        %v468 = vlaneseq
        %v469 = vshrl.u32 %v468, 7
        %v470 = vsub.s32 0, %v469
        %v471 = vrot.slane %v321, %v470
        %v472 = vlaneseq
        %v473 = vshrl.u32 %v472, 7
        %v474 = vsub.s32 2, %v473
        %v475 = vrot.slane %v321, %v474
        %v476 = vlaneseq
        %v477 = vshrl.u32 %v476, 7
        %v478 = vsub.s32 4, %v477
        %v479 = vrot.slane %v321, %v478
        %v480 = vlaneseq
        %v481 = vshrl.u32 %v480, 7
        %v482 = vsub.s32 6, %v481
        %v483 = vrot.slane %v321, %v482
        %v484 = vlaneseq
        %v485 = vshrl.u32 %v484, 7
        %v486 = vsub.s32 0, %v485
        %v487 = vrot.slane %v322, %v486
        %v488 = vlaneseq
        %v489 = vshrl.u32 %v488, 7
        %v490 = vsub.s32 2, %v489
        %v491 = vrot.slane %v322, %v490
        %v492 = vlaneseq
        %v493 = vshrl.u32 %v492, 7
        %v494 = vsub.s32 4, %v493
        %v495 = vrot.slane %v322, %v494
        %v496 = vlaneseq
        %v497 = vshrl.u32 %v496, 7
        %v498 = vsub.s32 6, %v497
        %v499 = vrot.slane %v322, %v498
        %v536 = vlaneseq
        %v537 = vshrl.u32 %v536, 7
        %v538 = vsub.s32 0, %v537
        %v539 = vrot.slane %v359, %v538
        %v540 = vlaneseq
        %v541 = vshrl.u32 %v540, 7
        %v542 = vsub.s32 0, %v541
        %v543 = vrot.slane %v363, %v542
        %v544 = vlaneseq
        %v545 = vshrl.u32 %v544, 7
        %v546 = vsub.s32 0, %v545
        %v547 = vrot.slane %v367, %v546
        %v548 = vlaneseq
        %v549 = vshrl.u32 %v548, 7
        %v550 = vsub.s32 0, %v549
        %v551 = vrot.slane %v371, %v550
        %v552 = vlaneseq
        %v553 = vshrl.u32 %v552, 7
        %v554 = vsub.s32 0, %v553
        %v555 = vrot.slane %v375, %v554
        %v556 = vlaneseq
        %v557 = vshrl.u32 %v556, 7
        %v558 = vsub.s32 0, %v557
        %v559 = vrot.slane %v379, %v558
        %v560 = vlaneseq
        %v561 = vshrl.u32 %v560, 7
        %v562 = vsub.s32 0, %v561
        %v563 = vrot.slane %v383, %v562
        %v564 = vlaneseq
        %v565 = vshrl.u32 %v564, 7
        %v566 = vsub.s32 0, %v565
        %v567 = vrot.slane %v387, %v566
        %v568 = vlaneseq
        %v569 = vshrl.u32 %v568, 7
        %v570 = vsub.s32 0, %v569
        %v571 = vrot.slane %v391, %v570
        %v572 = vlaneseq
        %v573 = vshrl.u32 %v572, 7
        %v574 = vsub.s32 0, %v573
        %v575 = vrot.slane %v395, %v574
        %v576 = vlaneseq
        %v577 = vshrl.u32 %v576, 7
        %v578 = vsub.s32 0, %v577
        %v579 = vrot.slane %v399, %v578
        %v580 = vlaneseq
        %v581 = vshrl.u32 %v580, 7
        %v582 = vsub.s32 0, %v581
        %v583 = vrot.slane %v403, %v582
        %v584 = vlaneseq
        %v585 = vshrl.u32 %v584, 7
        %v586 = vsub.s32 0, %v585
        %v587 = vrot.slane %v407, %v586
        %v588 = vlaneseq
        %v589 = vshrl.u32 %v588, 7
        %v590 = vsub.s32 0, %v589
        %v591 = vrot.slane %v411, %v590
        %v592 = vlaneseq
        %v593 = vshrl.u32 %v592, 7
        %v594 = vsub.s32 0, %v593
        %v595 = vrot.slane %v415, %v594
        %v596 = vlaneseq
        %v597 = vshrl.u32 %v596, 7
        %v598 = vsub.s32 0, %v597
        %v599 = vrot.slane %v419, %v598
        %v600 = vlaneseq
        %v601 = vshrl.u32 %v600, 7
        %v602 = vsub.s32 0, %v601
        %v603 = vrot.slane %v423, %v602
        %v604 = vlaneseq
        %v605 = vshrl.u32 %v604, 7
        %v606 = vsub.s32 0, %v605
        %v607 = vrot.slane %v427, %v606
        %v608 = vlaneseq
        %v609 = vshrl.u32 %v608, 7
        %v610 = vsub.s32 0, %v609
        %v611 = vrot.slane %v431, %v610
        %v612 = vlaneseq
        %v613 = vshrl.u32 %v612, 7
        %v614 = vsub.s32 0, %v613
        %v615 = vrot.slane %v435, %v614
        %v616 = vlaneseq
        %v617 = vshrl.u32 %v616, 7
        %v618 = vsub.s32 0, %v617
        %v619 = vrot.slane %v439, %v618
        %v620 = vlaneseq
        %v621 = vshrl.u32 %v620, 7
        %v622 = vsub.s32 0, %v621
        %v623 = vrot.slane %v443, %v622
        %v624 = vlaneseq
        %v625 = vshrl.u32 %v624, 7
        %v626 = vsub.s32 0, %v625
        %v627 = vrot.slane %v447, %v626
        %v628 = vlaneseq
        %v629 = vshrl.u32 %v628, 7
        %v630 = vsub.s32 0, %v629
        %v631 = vrot.slane %v451, %v630
        %v632 = vlaneseq
        %v633 = vshrl.u32 %v632, 7
        %v634 = vsub.s32 0, %v633
        %v635 = vrot.slane %v455, %v634
        %v636 = vlaneseq
        %v637 = vshrl.u32 %v636, 7
        %v638 = vsub.s32 0, %v637
        %v639 = vrot.slane %v459, %v638
        %v640 = vlaneseq
        %v641 = vshrl.u32 %v640, 7
        %v642 = vsub.s32 0, %v641
        %v643 = vrot.slane %v463, %v642
        %v644 = vlaneseq
        %v645 = vshrl.u32 %v644, 7
        %v646 = vsub.s32 0, %v645
        %v647 = vrot.slane %v467, %v646
        %v648 = vlaneseq
        %v649 = vshrl.u32 %v648, 7
        %v650 = vsub.s32 0, %v649
        %v651 = vrot.slane %v471, %v650
        %v652 = vlaneseq
        %v653 = vshrl.u32 %v652, 7
        %v654 = vsub.s32 0, %v653
        %v655 = vrot.slane %v475, %v654
        %v656 = vlaneseq
        %v657 = vshrl.u32 %v656, 7
        %v658 = vsub.s32 0, %v657
        %v659 = vrot.slane %v479, %v658
        %v660 = vlaneseq
        %v661 = vshrl.u32 %v660, 7
        %v662 = vsub.s32 0, %v661
        %v663 = vrot.slane %v483, %v662
        %v664 = vlaneseq
        %v665 = vshrl.u32 %v664, 7
        %v666 = vsub.s32 0, %v665
        %v667 = vrot.slane %v487, %v666
        %v668 = vlaneseq
        %v669 = vshrl.u32 %v668, 7
        %v670 = vsub.s32 0, %v669
        %v671 = vrot.slane %v491, %v670
        %v672 = vlaneseq
        %v673 = vshrl.u32 %v672, 7
        %v674 = vsub.s32 0, %v673
        %v675 = vrot.slane %v495, %v674
        %v676 = vlaneseq
        %v677 = vshrl.u32 %v676, 7
        %v678 = vsub.s32 0, %v677
        %v679 = vrot.slane %v499, %v678
        %v680 = vmul.f32 %v330, %v539
        %v681 = vmul.f32 %v330, %v543
        %v682 = vmul.f32 %v330, %v547
        %v683 = vmul.f32 %v330, %v551
        %v684 = vmul.f32 %v330, %v555
        %v685 = vmul.f32 %v330, %v559
        %v686 = vmul.f32 %v330, %v563
        %v687 = vmul.f32 %v330, %v567
        %v688 = vmul.f32 %v330, %v571
        %v689 = vmul.f32 %v330, %v575
        %v690 = vmul.f32 %v330, %v579
        %v691 = vmul.f32 %v330, %v583
        %v692 = vmul.f32 %v330, %v587
        %v693 = vmul.f32 %v330, %v591
        %v694 = vmul.f32 %v330, %v595
        %v695 = vmul.f32 %v330, %v599
        %v696 = vmul.f32 %v330, %v603
        %v697 = vmul.f32 %v330, %v607
        %v698 = vmul.f32 %v330, %v611
        %v699 = vmul.f32 %v330, %v615
        %v700 = vmul.f32 %v330, %v619
        %v701 = vmul.f32 %v330, %v623
        %v702 = vmul.f32 %v330, %v627
        %v703 = vmul.f32 %v330, %v631
        %v704 = vmul.f32 %v330, %v635
        %v705 = vmul.f32 %v330, %v639
        %v706 = vmul.f32 %v330, %v643
        %v707 = vmul.f32 %v330, %v647
        %v708 = vmul.f32 %v330, %v651
        %v709 = vmul.f32 %v330, %v655
        %v710 = vmul.f32 %v330, %v659
        %v711 = vmul.f32 %v330, %v663
        %v712 = vmul.f32 %v330, %v667
        %v713 = vmul.f32 %v330, %v671
        %v714 = vmul.f32 %v330, %v675
        %v715 = vmul.f32 %v330, %v679
        %v716 = vmul.f32 %v335, %v539
        %v717 = vmul.f32 %v335, %v543
        %v718 = vmul.f32 %v335, %v547
        %v719 = vmul.f32 %v335, %v551
        %v720 = vmul.f32 %v335, %v555
        %v721 = vmul.f32 %v335, %v559
        %v722 = vmul.f32 %v335, %v563
        %v723 = vmul.f32 %v335, %v567
        %v724 = vmul.f32 %v335, %v571
        %v725 = vmul.f32 %v335, %v575
        %v726 = vmul.f32 %v335, %v579
        %v727 = vmul.f32 %v335, %v583
        %v728 = vmul.f32 %v335, %v587
        %v729 = vmul.f32 %v335, %v591
        %v730 = vmul.f32 %v335, %v595
        %v731 = vmul.f32 %v335, %v599
        %v732 = vmul.f32 %v335, %v603
        %v733 = vmul.f32 %v335, %v607
        %v734 = vmul.f32 %v335, %v611
        %v735 = vmul.f32 %v335, %v615
        %v736 = vmul.f32 %v335, %v619
        %v737 = vmul.f32 %v335, %v623
        %v738 = vmul.f32 %v335, %v627
        %v739 = vmul.f32 %v335, %v631
        %v740 = vmul.f32 %v335, %v635
        %v741 = vmul.f32 %v335, %v639
        %v742 = vmul.f32 %v335, %v643
        %v743 = vmul.f32 %v335, %v647
        %v744 = vmul.f32 %v335, %v651
        %v745 = vmul.f32 %v335, %v655
        %v746 = vmul.f32 %v335, %v659
        %v747 = vmul.f32 %v335, %v663
        %v748 = vmul.f32 %v335, %v667
        %v749 = vmul.f32 %v335, %v671
        %v750 = vmul.f32 %v335, %v675
        %v751 = vmul.f32 %v335, %v679
        %v752 = vmul.f32 %v340, %v539
        %v753 = vmul.f32 %v340, %v543
        %v754 = vmul.f32 %v340, %v547
        %v755 = vmul.f32 %v340, %v551
        %v756 = vmul.f32 %v340, %v555
        %v757 = vmul.f32 %v340, %v559
        %v758 = vmul.f32 %v340, %v563
        %v759 = vmul.f32 %v340, %v567
        %v760 = vmul.f32 %v340, %v571
        %v761 = vmul.f32 %v340, %v575
        %v762 = vmul.f32 %v340, %v579
        %v763 = vmul.f32 %v340, %v583
        %v764 = vmul.f32 %v340, %v587
        %v765 = vmul.f32 %v340, %v591
        %v766 = vmul.f32 %v340, %v595
        %v767 = vmul.f32 %v340, %v599
        %v768 = vmul.f32 %v340, %v603
        %v769 = vmul.f32 %v340, %v607
        %v770 = vmul.f32 %v340, %v611
        %v771 = vmul.f32 %v340, %v615
        %v772 = vmul.f32 %v340, %v619
        %v773 = vmul.f32 %v340, %v623
        %v774 = vmul.f32 %v340, %v627
        %v775 = vmul.f32 %v340, %v631
        %v776 = vmul.f32 %v340, %v635
        %v777 = vmul.f32 %v340, %v639
        %v778 = vmul.f32 %v340, %v643
        %v779 = vmul.f32 %v340, %v647
        %v780 = vmul.f32 %v340, %v651
        %v781 = vmul.f32 %v340, %v655
        %v782 = vmul.f32 %v340, %v659
        %v783 = vmul.f32 %v340, %v663
        %v784 = vmul.f32 %v340, %v667
        %v785 = vmul.f32 %v340, %v671
        %v786 = vmul.f32 %v340, %v675
        %v787 = vmul.f32 %v340, %v679
        %v788 = vmul.f32 %v345, %v539
        %v789 = vmul.f32 %v345, %v543
        %v790 = vmul.f32 %v345, %v547
        %v791 = vmul.f32 %v345, %v551
        %v792 = vmul.f32 %v345, %v555
        %v793 = vmul.f32 %v345, %v559
        %v794 = vmul.f32 %v345, %v563
        %v795 = vmul.f32 %v345, %v567
        %v796 = vmul.f32 %v345, %v571
        %v797 = vmul.f32 %v345, %v575
        %v798 = vmul.f32 %v345, %v579
        %v799 = vmul.f32 %v345, %v583
        %v800 = vmul.f32 %v345, %v587
        %v801 = vmul.f32 %v345, %v591
        %v802 = vmul.f32 %v345, %v595
        %v803 = vmul.f32 %v345, %v599
        %v804 = vmul.f32 %v345, %v603
        %v805 = vmul.f32 %v345, %v607
        %v806 = vmul.f32 %v345, %v611
        %v807 = vmul.f32 %v345, %v615
        %v808 = vmul.f32 %v345, %v619
        %v809 = vmul.f32 %v345, %v623
        %v810 = vmul.f32 %v345, %v627
        %v811 = vmul.f32 %v345, %v631
        %v812 = vmul.f32 %v345, %v635
        %v813 = vmul.f32 %v345, %v639
        %v814 = vmul.f32 %v345, %v643
        %v815 = vmul.f32 %v345, %v647
        %v816 = vmul.f32 %v345, %v651
        %v817 = vmul.f32 %v345, %v655
        %v818 = vmul.f32 %v345, %v659
        %v819 = vmul.f32 %v345, %v663
        %v820 = vmul.f32 %v345, %v667
        %v821 = vmul.f32 %v345, %v671
        %v822 = vmul.f32 %v345, %v675
        %v823 = vmul.f32 %v345, %v679
        %824 = vset.pattern.permute.xlu0 1
        %825 = vperm.xlu0 %824, %v323
        %v826 = vpop.permute.xlu0 %825
        %828 = vset.pattern.permute.xlu0 1
        %829 = vperm.xlu0 %828, %v324
        %v830 = vpop.permute.xlu0 %829
        %832 = vset.pattern.permute.xlu0 1
        %833 = vperm.xlu0 %832, %v325
        %v834 = vpop.permute.xlu0 %833
        %836 = vset.pattern.permute.xlu0 1
        %837 = vperm.xlu0 %836, %v326
        %v838 = vpop.permute.xlu0 %837
        %v840 = vlaneseq
        %v841 = vshrl.u32 %v840, 7
        %v842 = vsub.s32 1, %v841
        %v843 = vrot.slane %v314, %v842
        %v844 = vlaneseq
        %v845 = vshrl.u32 %v844, 7
        %v846 = vsub.s32 3, %v845
        %v847 = vrot.slane %v314, %v846
        %v848 = vlaneseq
        %v849 = vshrl.u32 %v848, 7
        %v850 = vsub.s32 5, %v849
        %v851 = vrot.slane %v314, %v850
        %v852 = vlaneseq
        %v853 = vshrl.u32 %v852, 7
        %v854 = vsub.s32 7, %v853
        %v855 = vrot.slane %v314, %v854
        %v856 = vlaneseq
        %v857 = vshrl.u32 %v856, 7
        %v858 = vsub.s32 1, %v857
        %v859 = vrot.slane %v315, %v858
        %v860 = vlaneseq
        %v861 = vshrl.u32 %v860, 7
        %v862 = vsub.s32 3, %v861
        %v863 = vrot.slane %v315, %v862
        %v864 = vlaneseq
        %v865 = vshrl.u32 %v864, 7
        %v866 = vsub.s32 5, %v865
        %v867 = vrot.slane %v315, %v866
        %v868 = vlaneseq
        %v869 = vshrl.u32 %v868, 7
        %v870 = vsub.s32 7, %v869
        %v871 = vrot.slane %v315, %v870
        %v872 = vlaneseq
        %v873 = vshrl.u32 %v872, 7
        %v874 = vsub.s32 1, %v873
        %v875 = vrot.slane %v316, %v874
        %v876 = vlaneseq
        %v877 = vshrl.u32 %v876, 7
        %v878 = vsub.s32 3, %v877
        %v879 = vrot.slane %v316, %v878
        %v880 = vlaneseq
        %v881 = vshrl.u32 %v880, 7
        %v882 = vsub.s32 5, %v881
        %v883 = vrot.slane %v316, %v882
        %v884 = vlaneseq
        %v885 = vshrl.u32 %v884, 7
        %v886 = vsub.s32 7, %v885
        %v887 = vrot.slane %v316, %v886
        %v888 = vlaneseq
        %v889 = vshrl.u32 %v888, 7
        %v890 = vsub.s32 1, %v889
        %v891 = vrot.slane %v317, %v890
        %v892 = vlaneseq
        %v893 = vshrl.u32 %v892, 7
        %v894 = vsub.s32 3, %v893
        %v895 = vrot.slane %v317, %v894
        %v896 = vlaneseq
        %v897 = vshrl.u32 %v896, 7
        %v898 = vsub.s32 5, %v897
        %v899 = vrot.slane %v317, %v898
        %v900 = vlaneseq
        %v901 = vshrl.u32 %v900, 7
        %v902 = vsub.s32 7, %v901
        %v903 = vrot.slane %v317, %v902
        %v904 = vlaneseq
        %v905 = vshrl.u32 %v904, 7
        %v906 = vsub.s32 1, %v905
        %v907 = vrot.slane %v318, %v906
        %v908 = vlaneseq
        %v909 = vshrl.u32 %v908, 7
        %v910 = vsub.s32 3, %v909
        %v911 = vrot.slane %v318, %v910
        %v912 = vlaneseq
        %v913 = vshrl.u32 %v912, 7
        %v914 = vsub.s32 5, %v913
        %v915 = vrot.slane %v318, %v914
        %v916 = vlaneseq
        %v917 = vshrl.u32 %v916, 7
        %v918 = vsub.s32 7, %v917
        %v919 = vrot.slane %v318, %v918
        %v920 = vlaneseq
        %v921 = vshrl.u32 %v920, 7
        %v922 = vsub.s32 1, %v921
        %v923 = vrot.slane %v319, %v922
        %v924 = vlaneseq
        %v925 = vshrl.u32 %v924, 7
        %v926 = vsub.s32 3, %v925
        %v927 = vrot.slane %v319, %v926
        %v928 = vlaneseq
        %v929 = vshrl.u32 %v928, 7
        %v930 = vsub.s32 5, %v929
        %v931 = vrot.slane %v319, %v930
        %v932 = vlaneseq
        %v933 = vshrl.u32 %v932, 7
        %v934 = vsub.s32 7, %v933
        %v935 = vrot.slane %v319, %v934
        %v936 = vlaneseq
        %v937 = vshrl.u32 %v936, 7
        %v938 = vsub.s32 1, %v937
        %v939 = vrot.slane %v320, %v938
        %v940 = vlaneseq
        %v941 = vshrl.u32 %v940, 7
        %v942 = vsub.s32 3, %v941
        %v943 = vrot.slane %v320, %v942
        %v944 = vlaneseq
        %v945 = vshrl.u32 %v944, 7
        %v946 = vsub.s32 5, %v945
        %v947 = vrot.slane %v320, %v946
        %v948 = vlaneseq
        %v949 = vshrl.u32 %v948, 7
        %v950 = vsub.s32 7, %v949
        %v951 = vrot.slane %v320, %v950
        %v952 = vlaneseq
        %v953 = vshrl.u32 %v952, 7
        %v954 = vsub.s32 1, %v953
        %v955 = vrot.slane %v321, %v954
        %v956 = vlaneseq
        %v957 = vshrl.u32 %v956, 7
        %v958 = vsub.s32 3, %v957
        %v959 = vrot.slane %v321, %v958
        %v960 = vlaneseq
        %v961 = vshrl.u32 %v960, 7
        %v962 = vsub.s32 5, %v961
        %v963 = vrot.slane %v321, %v962
        %v964 = vlaneseq
        %v965 = vshrl.u32 %v964, 7
        %v966 = vsub.s32 7, %v965
        %v967 = vrot.slane %v321, %v966
        %v968 = vlaneseq
        %v969 = vshrl.u32 %v968, 7
        %v970 = vsub.s32 1, %v969
        %v971 = vrot.slane %v322, %v970
        %v972 = vlaneseq
        %v973 = vshrl.u32 %v972, 7
        %v974 = vsub.s32 3, %v973
        %v975 = vrot.slane %v322, %v974
        %v976 = vlaneseq
        %v977 = vshrl.u32 %v976, 7
        %v978 = vsub.s32 5, %v977
        %v979 = vrot.slane %v322, %v978
        %v980 = vlaneseq
        %v981 = vshrl.u32 %v980, 7
        %v982 = vsub.s32 7, %v981
        %v983 = vrot.slane %v322, %v982
        %v1020 = vlaneseq
        %v1021 = vshrl.u32 %v1020, 7
        %v1022 = vsub.s32 1, %v1021
        %v1023 = vrot.slane %v843, %v1022
        %v1024 = vlaneseq
        %v1025 = vshrl.u32 %v1024, 7
        %v1026 = vsub.s32 1, %v1025
        %v1027 = vrot.slane %v847, %v1026
        %v1028 = vlaneseq
        %v1029 = vshrl.u32 %v1028, 7
        %v1030 = vsub.s32 1, %v1029
        %v1031 = vrot.slane %v851, %v1030
        %v1032 = vlaneseq
        %v1033 = vshrl.u32 %v1032, 7
        %v1034 = vsub.s32 1, %v1033
        %v1035 = vrot.slane %v855, %v1034
        %v1036 = vlaneseq
        %v1037 = vshrl.u32 %v1036, 7
        %v1038 = vsub.s32 1, %v1037
        %v1039 = vrot.slane %v859, %v1038
        %v1040 = vlaneseq
        %v1041 = vshrl.u32 %v1040, 7
        %v1042 = vsub.s32 1, %v1041
        %v1043 = vrot.slane %v863, %v1042
        %v1044 = vlaneseq
        %v1045 = vshrl.u32 %v1044, 7
        %v1046 = vsub.s32 1, %v1045
        %v1047 = vrot.slane %v867, %v1046
        %v1048 = vlaneseq
        %v1049 = vshrl.u32 %v1048, 7
        %v1050 = vsub.s32 1, %v1049
        %v1051 = vrot.slane %v871, %v1050
        %v1052 = vlaneseq
        %v1053 = vshrl.u32 %v1052, 7
        %v1054 = vsub.s32 1, %v1053
        %v1055 = vrot.slane %v875, %v1054
        %v1056 = vlaneseq
        %v1057 = vshrl.u32 %v1056, 7
        %v1058 = vsub.s32 1, %v1057
        %v1059 = vrot.slane %v879, %v1058
        %v1060 = vlaneseq
        %v1061 = vshrl.u32 %v1060, 7
        %v1062 = vsub.s32 1, %v1061
        %v1063 = vrot.slane %v883, %v1062
        %v1064 = vlaneseq
        %v1065 = vshrl.u32 %v1064, 7
        %v1066 = vsub.s32 1, %v1065
        %v1067 = vrot.slane %v887, %v1066
        %v1068 = vlaneseq
        %v1069 = vshrl.u32 %v1068, 7
        %v1070 = vsub.s32 1, %v1069
        %v1071 = vrot.slane %v891, %v1070
        %v1072 = vlaneseq
        %v1073 = vshrl.u32 %v1072, 7
        %v1074 = vsub.s32 1, %v1073
        %v1075 = vrot.slane %v895, %v1074
        %v1076 = vlaneseq
        %v1077 = vshrl.u32 %v1076, 7
        %v1078 = vsub.s32 1, %v1077
        %v1079 = vrot.slane %v899, %v1078
        %v1080 = vlaneseq
        %v1081 = vshrl.u32 %v1080, 7
        %v1082 = vsub.s32 1, %v1081
        %v1083 = vrot.slane %v903, %v1082
        %v1084 = vlaneseq
        %v1085 = vshrl.u32 %v1084, 7
        %v1086 = vsub.s32 1, %v1085
        %v1087 = vrot.slane %v907, %v1086
        %v1088 = vlaneseq
        %v1089 = vshrl.u32 %v1088, 7
        %v1090 = vsub.s32 1, %v1089
        %v1091 = vrot.slane %v911, %v1090
        %v1092 = vlaneseq
        %v1093 = vshrl.u32 %v1092, 7
        %v1094 = vsub.s32 1, %v1093
        %v1095 = vrot.slane %v915, %v1094
        %v1096 = vlaneseq
        %v1097 = vshrl.u32 %v1096, 7
        %v1098 = vsub.s32 1, %v1097
        %v1099 = vrot.slane %v919, %v1098
        %v1100 = vlaneseq
        %v1101 = vshrl.u32 %v1100, 7
        %v1102 = vsub.s32 1, %v1101
        %v1103 = vrot.slane %v923, %v1102
        %v1104 = vlaneseq
        %v1105 = vshrl.u32 %v1104, 7
        %v1106 = vsub.s32 1, %v1105
        %v1107 = vrot.slane %v927, %v1106
        %v1108 = vlaneseq
        %v1109 = vshrl.u32 %v1108, 7
        %v1110 = vsub.s32 1, %v1109
        %v1111 = vrot.slane %v931, %v1110
        %v1112 = vlaneseq
        %v1113 = vshrl.u32 %v1112, 7
        %v1114 = vsub.s32 1, %v1113
        %v1115 = vrot.slane %v935, %v1114
        %v1116 = vlaneseq
        %v1117 = vshrl.u32 %v1116, 7
        %v1118 = vsub.s32 1, %v1117
        %v1119 = vrot.slane %v939, %v1118
        %v1120 = vlaneseq
        %v1121 = vshrl.u32 %v1120, 7
        %v1122 = vsub.s32 1, %v1121
        %v1123 = vrot.slane %v943, %v1122
        %v1124 = vlaneseq
        %v1125 = vshrl.u32 %v1124, 7
        %v1126 = vsub.s32 1, %v1125
        %v1127 = vrot.slane %v947, %v1126
        %v1128 = vlaneseq
        %v1129 = vshrl.u32 %v1128, 7
        %v1130 = vsub.s32 1, %v1129
        %v1131 = vrot.slane %v951, %v1130
        %v1132 = vlaneseq
        %v1133 = vshrl.u32 %v1132, 7
        %v1134 = vsub.s32 1, %v1133
        %v1135 = vrot.slane %v955, %v1134
        %v1136 = vlaneseq
        %v1137 = vshrl.u32 %v1136, 7
        %v1138 = vsub.s32 1, %v1137
        %v1139 = vrot.slane %v959, %v1138
        %v1140 = vlaneseq
        %v1141 = vshrl.u32 %v1140, 7
        %v1142 = vsub.s32 1, %v1141
        %v1143 = vrot.slane %v963, %v1142
        %v1144 = vlaneseq
        %v1145 = vshrl.u32 %v1144, 7
        %v1146 = vsub.s32 1, %v1145
        %v1147 = vrot.slane %v967, %v1146
        %v1148 = vlaneseq
        %v1149 = vshrl.u32 %v1148, 7
        %v1150 = vsub.s32 1, %v1149
        %v1151 = vrot.slane %v971, %v1150
        %v1152 = vlaneseq
        %v1153 = vshrl.u32 %v1152, 7
        %v1154 = vsub.s32 1, %v1153
        %v1155 = vrot.slane %v975, %v1154
        %v1156 = vlaneseq
        %v1157 = vshrl.u32 %v1156, 7
        %v1158 = vsub.s32 1, %v1157
        %v1159 = vrot.slane %v979, %v1158
        %v1160 = vlaneseq
        %v1161 = vshrl.u32 %v1160, 7
        %v1162 = vsub.s32 1, %v1161
        %v1163 = vrot.slane %v983, %v1162
        %v1164 = vmul.f32 %v826, %v1023
        %v1165 = vmul.f32 %v826, %v1027
        %v1166 = vmul.f32 %v826, %v1031
        %v1167 = vmul.f32 %v826, %v1035
        %v1168 = vmul.f32 %v826, %v1039
        %v1169 = vmul.f32 %v826, %v1043
        %v1170 = vmul.f32 %v826, %v1047
        %v1171 = vmul.f32 %v826, %v1051
        %v1172 = vmul.f32 %v826, %v1055
        %v1173 = vmul.f32 %v826, %v1059
        %v1174 = vmul.f32 %v826, %v1063
        %v1175 = vmul.f32 %v826, %v1067
        %v1176 = vmul.f32 %v826, %v1071
        %v1177 = vmul.f32 %v826, %v1075
        %v1178 = vmul.f32 %v826, %v1079
        %v1179 = vmul.f32 %v826, %v1083
        %v1180 = vmul.f32 %v826, %v1087
        %v1181 = vmul.f32 %v826, %v1091
        %v1182 = vmul.f32 %v826, %v1095
        %v1183 = vmul.f32 %v826, %v1099
        %v1184 = vmul.f32 %v826, %v1103
        %v1185 = vmul.f32 %v826, %v1107
        %v1186 = vmul.f32 %v826, %v1111
        %v1187 = vmul.f32 %v826, %v1115
        %v1188 = vmul.f32 %v826, %v1119
        %v1189 = vmul.f32 %v826, %v1123
        %v1190 = vmul.f32 %v826, %v1127
        %v1191 = vmul.f32 %v826, %v1131
        %v1192 = vmul.f32 %v826, %v1135
        %v1193 = vmul.f32 %v826, %v1139
        %v1194 = vmul.f32 %v826, %v1143
        %v1195 = vmul.f32 %v826, %v1147
        %v1196 = vmul.f32 %v826, %v1151
        %v1197 = vmul.f32 %v826, %v1155
        %v1198 = vmul.f32 %v826, %v1159
        %v1199 = vmul.f32 %v826, %v1163
        %v1200 = vmul.f32 %v830, %v1023
        %v1201 = vmul.f32 %v830, %v1027
        %v1202 = vmul.f32 %v830, %v1031
        %v1203 = vmul.f32 %v830, %v1035
        %v1204 = vmul.f32 %v830, %v1039
        %v1205 = vmul.f32 %v830, %v1043
        %v1206 = vmul.f32 %v830, %v1047
        %v1207 = vmul.f32 %v830, %v1051
        %v1208 = vmul.f32 %v830, %v1055
        %v1209 = vmul.f32 %v830, %v1059
        %v1210 = vmul.f32 %v830, %v1063
        %v1211 = vmul.f32 %v830, %v1067
        %v1212 = vmul.f32 %v830, %v1071
        %v1213 = vmul.f32 %v830, %v1075
        %v1214 = vmul.f32 %v830, %v1079
        %v1215 = vmul.f32 %v830, %v1083
        %v1216 = vmul.f32 %v830, %v1087
        %v1217 = vmul.f32 %v830, %v1091
        %v1218 = vmul.f32 %v830, %v1095
        %v1219 = vmul.f32 %v830, %v1099
        %v1220 = vmul.f32 %v830, %v1103
        %v1221 = vmul.f32 %v830, %v1107
        %v1222 = vmul.f32 %v830, %v1111
        %v1223 = vmul.f32 %v830, %v1115
        %v1224 = vmul.f32 %v830, %v1119
        %v1225 = vmul.f32 %v830, %v1123
        %v1226 = vmul.f32 %v830, %v1127
        %v1227 = vmul.f32 %v830, %v1131
        %v1228 = vmul.f32 %v830, %v1135
        %v1229 = vmul.f32 %v830, %v1139
        %v1230 = vmul.f32 %v830, %v1143
        %v1231 = vmul.f32 %v830, %v1147
        %v1232 = vmul.f32 %v830, %v1151
        %v1233 = vmul.f32 %v830, %v1155
        %v1234 = vmul.f32 %v830, %v1159
        %v1235 = vmul.f32 %v830, %v1163
        %v1236 = vmul.f32 %v834, %v1023
        %v1237 = vmul.f32 %v834, %v1027
        %v1238 = vmul.f32 %v834, %v1031
        %v1239 = vmul.f32 %v834, %v1035
        %v1240 = vmul.f32 %v834, %v1039
        %v1241 = vmul.f32 %v834, %v1043
        %v1242 = vmul.f32 %v834, %v1047
        %v1243 = vmul.f32 %v834, %v1051
        %v1244 = vmul.f32 %v834, %v1055
        %v1245 = vmul.f32 %v834, %v1059
        %v1246 = vmul.f32 %v834, %v1063
        %v1247 = vmul.f32 %v834, %v1067
        %v1248 = vmul.f32 %v834, %v1071
        %v1249 = vmul.f32 %v834, %v1075
        %v1250 = vmul.f32 %v834, %v1079
        %v1251 = vmul.f32 %v834, %v1083
        %v1252 = vmul.f32 %v834, %v1087
        %v1253 = vmul.f32 %v834, %v1091
        %v1254 = vmul.f32 %v834, %v1095
        %v1255 = vmul.f32 %v834, %v1099
        %v1256 = vmul.f32 %v834, %v1103
        %v1257 = vmul.f32 %v834, %v1107
        %v1258 = vmul.f32 %v834, %v1111
        %v1259 = vmul.f32 %v834, %v1115
        %v1260 = vmul.f32 %v834, %v1119
        %v1261 = vmul.f32 %v834, %v1123
        %v1262 = vmul.f32 %v834, %v1127
        %v1263 = vmul.f32 %v834, %v1131
        %v1264 = vmul.f32 %v834, %v1135
        %v1265 = vmul.f32 %v834, %v1139
        %v1266 = vmul.f32 %v834, %v1143
        %v1267 = vmul.f32 %v834, %v1147
        %v1268 = vmul.f32 %v834, %v1151
        %v1269 = vmul.f32 %v834, %v1155
        %v1270 = vmul.f32 %v834, %v1159
        %v1271 = vmul.f32 %v834, %v1163
        %v1272 = vmul.f32 %v838, %v1023
        %v1273 = vmul.f32 %v838, %v1027
        %v1274 = vmul.f32 %v838, %v1031
        %v1275 = vmul.f32 %v838, %v1035
        %v1276 = vmul.f32 %v838, %v1039
        %v1277 = vmul.f32 %v838, %v1043
        %v1278 = vmul.f32 %v838, %v1047
        %v1279 = vmul.f32 %v838, %v1051
        %v1280 = vmul.f32 %v838, %v1055
        %v1281 = vmul.f32 %v838, %v1059
        %v1282 = vmul.f32 %v838, %v1063
        %v1283 = vmul.f32 %v838, %v1067
        %v1284 = vmul.f32 %v838, %v1071
        %v1285 = vmul.f32 %v838, %v1075
        %v1286 = vmul.f32 %v838, %v1079
        %v1287 = vmul.f32 %v838, %v1083
        %v1288 = vmul.f32 %v838, %v1087
        %v1289 = vmul.f32 %v838, %v1091
        %v1290 = vmul.f32 %v838, %v1095
        %v1291 = vmul.f32 %v838, %v1099
        %v1292 = vmul.f32 %v838, %v1103
        %v1293 = vmul.f32 %v838, %v1107
        %v1294 = vmul.f32 %v838, %v1111
        %v1295 = vmul.f32 %v838, %v1115
        %v1296 = vmul.f32 %v838, %v1119
        %v1297 = vmul.f32 %v838, %v1123
        %v1298 = vmul.f32 %v838, %v1127
        %v1299 = vmul.f32 %v838, %v1131
        %v1300 = vmul.f32 %v838, %v1135
        %v1301 = vmul.f32 %v838, %v1139
        %v1302 = vmul.f32 %v838, %v1143
        %v1303 = vmul.f32 %v838, %v1147
        %v1304 = vmul.f32 %v838, %v1151
        %v1305 = vmul.f32 %v838, %v1155
        %v1306 = vmul.f32 %v838, %v1159
        %v1307 = vmul.f32 %v838, %v1163
        %v1308 = vadd.f32 %v680, %v1164
        %v1309 = vadd.f32 %v681, %v1165
        %v1310 = vadd.f32 %v682, %v1166
        %v1311 = vadd.f32 %v683, %v1167
        %v1312 = vadd.f32 %v684, %v1168
        %v1313 = vadd.f32 %v685, %v1169
        %v1314 = vadd.f32 %v686, %v1170
        %v1315 = vadd.f32 %v687, %v1171
        %v1316 = vadd.f32 %v688, %v1172
        %v1317 = vadd.f32 %v689, %v1173
        %v1318 = vadd.f32 %v690, %v1174
        %v1319 = vadd.f32 %v691, %v1175
        %v1320 = vadd.f32 %v692, %v1176
        %v1321 = vadd.f32 %v693, %v1177
        %v1322 = vadd.f32 %v694, %v1178
        %v1323 = vadd.f32 %v695, %v1179
        %v1324 = vadd.f32 %v696, %v1180
        %v1325 = vadd.f32 %v697, %v1181
        %v1326 = vadd.f32 %v698, %v1182
        %v1327 = vadd.f32 %v699, %v1183
        %v1328 = vadd.f32 %v700, %v1184
        %v1329 = vadd.f32 %v701, %v1185
        %v1330 = vadd.f32 %v702, %v1186
        %v1331 = vadd.f32 %v703, %v1187
        %v1332 = vadd.f32 %v704, %v1188
        %v1333 = vadd.f32 %v705, %v1189
        %v1334 = vadd.f32 %v706, %v1190
        %v1335 = vadd.f32 %v707, %v1191
        %v1336 = vadd.f32 %v708, %v1192
        %v1337 = vadd.f32 %v709, %v1193
        %v1338 = vadd.f32 %v710, %v1194
        %v1339 = vadd.f32 %v711, %v1195
        %v1340 = vadd.f32 %v712, %v1196
        %v1341 = vadd.f32 %v713, %v1197
        %v1342 = vadd.f32 %v714, %v1198
        %v1343 = vadd.f32 %v715, %v1199
        %v1344 = vadd.f32 %v716, %v1200
        %v1345 = vadd.f32 %v717, %v1201
        %v1346 = vadd.f32 %v718, %v1202
        %v1347 = vadd.f32 %v719, %v1203
        %v1348 = vadd.f32 %v720, %v1204
        %v1349 = vadd.f32 %v721, %v1205
        %v1350 = vadd.f32 %v722, %v1206
        %v1351 = vadd.f32 %v723, %v1207
        %v1352 = vadd.f32 %v724, %v1208
        %v1353 = vadd.f32 %v725, %v1209
        %v1354 = vadd.f32 %v726, %v1210
        %v1355 = vadd.f32 %v727, %v1211
        %v1356 = vadd.f32 %v728, %v1212
        %v1357 = vadd.f32 %v729, %v1213
        %v1358 = vadd.f32 %v730, %v1214
        %v1359 = vadd.f32 %v731, %v1215
        %v1360 = vadd.f32 %v732, %v1216
        %v1361 = vadd.f32 %v733, %v1217
        %v1362 = vadd.f32 %v734, %v1218
        %v1363 = vadd.f32 %v735, %v1219
        %v1364 = vadd.f32 %v736, %v1220
        %v1365 = vadd.f32 %v737, %v1221
        %v1366 = vadd.f32 %v738, %v1222
        %v1367 = vadd.f32 %v739, %v1223
        %v1368 = vadd.f32 %v740, %v1224
        %v1369 = vadd.f32 %v741, %v1225
        %v1370 = vadd.f32 %v742, %v1226
        %v1371 = vadd.f32 %v743, %v1227
        %v1372 = vadd.f32 %v744, %v1228
        %v1373 = vadd.f32 %v745, %v1229
        %v1374 = vadd.f32 %v746, %v1230
        %v1375 = vadd.f32 %v747, %v1231
        %v1376 = vadd.f32 %v748, %v1232
        %v1377 = vadd.f32 %v749, %v1233
        %v1378 = vadd.f32 %v750, %v1234
        %v1379 = vadd.f32 %v751, %v1235
        %v1380 = vadd.f32 %v752, %v1236
        %v1381 = vadd.f32 %v753, %v1237
        %v1382 = vadd.f32 %v754, %v1238
        %v1383 = vadd.f32 %v755, %v1239
        %v1384 = vadd.f32 %v756, %v1240
        %v1385 = vadd.f32 %v757, %v1241
        %v1386 = vadd.f32 %v758, %v1242
        %v1387 = vadd.f32 %v759, %v1243
        %v1388 = vadd.f32 %v760, %v1244
        %v1389 = vadd.f32 %v761, %v1245
        %v1390 = vadd.f32 %v762, %v1246
        %v1391 = vadd.f32 %v763, %v1247
        %v1392 = vadd.f32 %v764, %v1248
        %v1393 = vadd.f32 %v765, %v1249
        %v1394 = vadd.f32 %v766, %v1250
        %v1395 = vadd.f32 %v767, %v1251
        %v1396 = vadd.f32 %v768, %v1252
        %v1397 = vadd.f32 %v769, %v1253
        %v1398 = vadd.f32 %v770, %v1254
        %v1399 = vadd.f32 %v771, %v1255
        %v1400 = vadd.f32 %v772, %v1256
        %v1401 = vadd.f32 %v773, %v1257
        %v1402 = vadd.f32 %v774, %v1258
        %v1403 = vadd.f32 %v775, %v1259
        %v1404 = vadd.f32 %v776, %v1260
        %v1405 = vadd.f32 %v777, %v1261
        %v1406 = vadd.f32 %v778, %v1262
        %v1407 = vadd.f32 %v779, %v1263
        %v1408 = vadd.f32 %v780, %v1264
        %v1409 = vadd.f32 %v781, %v1265
        %v1410 = vadd.f32 %v782, %v1266
        %v1411 = vadd.f32 %v783, %v1267
        %v1412 = vadd.f32 %v784, %v1268
        %v1413 = vadd.f32 %v785, %v1269
        %v1414 = vadd.f32 %v786, %v1270
        %v1415 = vadd.f32 %v787, %v1271
        %v1416 = vadd.f32 %v788, %v1272
        %v1417 = vadd.f32 %v789, %v1273
        %v1418 = vadd.f32 %v790, %v1274
        %v1419 = vadd.f32 %v791, %v1275
        %v1420 = vadd.f32 %v792, %v1276
        %v1421 = vadd.f32 %v793, %v1277
        %v1422 = vadd.f32 %v794, %v1278
        %v1423 = vadd.f32 %v795, %v1279
        %v1424 = vadd.f32 %v796, %v1280
        %v1425 = vadd.f32 %v797, %v1281
        %v1426 = vadd.f32 %v798, %v1282
        %v1427 = vadd.f32 %v799, %v1283
        %v1428 = vadd.f32 %v800, %v1284
        %v1429 = vadd.f32 %v801, %v1285
        %v1430 = vadd.f32 %v802, %v1286
        %v1431 = vadd.f32 %v803, %v1287
        %v1432 = vadd.f32 %v804, %v1288
        %v1433 = vadd.f32 %v805, %v1289
        %v1434 = vadd.f32 %v806, %v1290
        %v1435 = vadd.f32 %v807, %v1291
        %v1436 = vadd.f32 %v808, %v1292
        %v1437 = vadd.f32 %v809, %v1293
        %v1438 = vadd.f32 %v810, %v1294
        %v1439 = vadd.f32 %v811, %v1295
        %v1440 = vadd.f32 %v812, %v1296
        %v1441 = vadd.f32 %v813, %v1297
        %v1442 = vadd.f32 %v814, %v1298
        %v1443 = vadd.f32 %v815, %v1299
        %v1444 = vadd.f32 %v816, %v1300
        %v1445 = vadd.f32 %v817, %v1301
        %v1446 = vadd.f32 %v818, %v1302
        %v1447 = vadd.f32 %v819, %v1303
        %v1448 = vadd.f32 %v820, %v1304
        %v1449 = vadd.f32 %v821, %v1305
        %v1450 = vadd.f32 %v822, %v1306
        %v1451 = vadd.f32 %v823, %v1307
        %v1452 = vld [vmem:[%s2] sm:$0xff]
        %v1453 = vld [vmem:[%s2 + $0x8] sm:$0xff]
        %v1454 = vld [vmem:[%s2 + $0x10] sm:$0xff]
        %v1455 = vld [vmem:[%s2 + $0x18] sm:$0xff]
        %1457 = vset.pattern.permute.xlu0 0
        %1458 = vperm.xlu0 %1457, %v1452
        %v1459 = vpop.permute.xlu0 %1458
        %1462 = vset.pattern.permute.xlu0 0
        %1463 = vperm.xlu0 %1462, %v1453
        %v1464 = vpop.permute.xlu0 %1463
        %1467 = vset.pattern.permute.xlu0 0
        %1468 = vperm.xlu0 %1467, %v1454
        %v1469 = vpop.permute.xlu0 %1468
        %1472 = vset.pattern.permute.xlu0 0
        %1473 = vperm.xlu0 %1472, %v1455
        %v1474 = vpop.permute.xlu0 %1473
        %v1476 = vadd.f32 %v1308, %v1459
        %v1477 = vadd.f32 %v1309, %v1459
        %v1478 = vadd.f32 %v1310, %v1459
        %v1479 = vadd.f32 %v1311, %v1459
        %v1480 = vadd.f32 %v1312, %v1459
        %v1481 = vadd.f32 %v1313, %v1459
        %v1482 = vadd.f32 %v1314, %v1459
        %v1483 = vadd.f32 %v1315, %v1459
        %v1484 = vadd.f32 %v1316, %v1459
        %v1485 = vadd.f32 %v1317, %v1459
        %v1486 = vadd.f32 %v1318, %v1459
        %v1487 = vadd.f32 %v1319, %v1459
        %v1488 = vadd.f32 %v1320, %v1459
        %v1489 = vadd.f32 %v1321, %v1459
        %v1490 = vadd.f32 %v1322, %v1459
        %v1491 = vadd.f32 %v1323, %v1459
        %v1492 = vadd.f32 %v1324, %v1459
        %v1493 = vadd.f32 %v1325, %v1459
        %v1494 = vadd.f32 %v1326, %v1459
        %v1495 = vadd.f32 %v1327, %v1459
        %v1496 = vadd.f32 %v1328, %v1459
        %v1497 = vadd.f32 %v1329, %v1459
        %v1498 = vadd.f32 %v1330, %v1459
        %v1499 = vadd.f32 %v1331, %v1459
        %v1500 = vadd.f32 %v1332, %v1459
        %v1501 = vadd.f32 %v1333, %v1459
        %v1502 = vadd.f32 %v1334, %v1459
        %v1503 = vadd.f32 %v1335, %v1459
        %v1504 = vadd.f32 %v1336, %v1459
        %v1505 = vadd.f32 %v1337, %v1459
        %v1506 = vadd.f32 %v1338, %v1459
        %v1507 = vadd.f32 %v1339, %v1459
        %v1508 = vadd.f32 %v1340, %v1459
        %v1509 = vadd.f32 %v1341, %v1459
        %v1510 = vadd.f32 %v1342, %v1459
        %v1511 = vadd.f32 %v1343, %v1459
        %v1512 = vadd.f32 %v1344, %v1464
        %v1513 = vadd.f32 %v1345, %v1464
        %v1514 = vadd.f32 %v1346, %v1464
        %v1515 = vadd.f32 %v1347, %v1464
        %v1516 = vadd.f32 %v1348, %v1464
        %v1517 = vadd.f32 %v1349, %v1464
        %v1518 = vadd.f32 %v1350, %v1464
        %v1519 = vadd.f32 %v1351, %v1464
        %v1520 = vadd.f32 %v1352, %v1464
        %v1521 = vadd.f32 %v1353, %v1464
        %v1522 = vadd.f32 %v1354, %v1464
        %v1523 = vadd.f32 %v1355, %v1464
        %v1524 = vadd.f32 %v1356, %v1464
        %v1525 = vadd.f32 %v1357, %v1464
        %v1526 = vadd.f32 %v1358, %v1464
        %v1527 = vadd.f32 %v1359, %v1464
        %v1528 = vadd.f32 %v1360, %v1464
        %v1529 = vadd.f32 %v1361, %v1464
        %v1530 = vadd.f32 %v1362, %v1464
        %v1531 = vadd.f32 %v1363, %v1464
        %v1532 = vadd.f32 %v1364, %v1464
        %v1533 = vadd.f32 %v1365, %v1464
        %v1534 = vadd.f32 %v1366, %v1464
        %v1535 = vadd.f32 %v1367, %v1464
        %v1536 = vadd.f32 %v1368, %v1464
        %v1537 = vadd.f32 %v1369, %v1464
        %v1538 = vadd.f32 %v1370, %v1464
        %v1539 = vadd.f32 %v1371, %v1464
        %v1540 = vadd.f32 %v1372, %v1464
        %v1541 = vadd.f32 %v1373, %v1464
        %v1542 = vadd.f32 %v1374, %v1464
        %v1543 = vadd.f32 %v1375, %v1464
        %v1544 = vadd.f32 %v1376, %v1464
        %v1545 = vadd.f32 %v1377, %v1464
        %v1546 = vadd.f32 %v1378, %v1464
        %v1547 = vadd.f32 %v1379, %v1464
        %v1548 = vadd.f32 %v1380, %v1469
        %v1549 = vadd.f32 %v1381, %v1469
        %v1550 = vadd.f32 %v1382, %v1469
        %v1551 = vadd.f32 %v1383, %v1469
        %v1552 = vadd.f32 %v1384, %v1469
        %v1553 = vadd.f32 %v1385, %v1469
        %v1554 = vadd.f32 %v1386, %v1469
        %v1555 = vadd.f32 %v1387, %v1469
        %v1556 = vadd.f32 %v1388, %v1469
        %v1557 = vadd.f32 %v1389, %v1469
        %v1558 = vadd.f32 %v1390, %v1469
        %v1559 = vadd.f32 %v1391, %v1469
        %v1560 = vadd.f32 %v1392, %v1469
        %v1561 = vadd.f32 %v1393, %v1469
        %v1562 = vadd.f32 %v1394, %v1469
        %v1563 = vadd.f32 %v1395, %v1469
        %v1564 = vadd.f32 %v1396, %v1469
        %v1565 = vadd.f32 %v1397, %v1469
        %v1566 = vadd.f32 %v1398, %v1469
        %v1567 = vadd.f32 %v1399, %v1469
        %v1568 = vadd.f32 %v1400, %v1469
        %v1569 = vadd.f32 %v1401, %v1469
        %v1570 = vadd.f32 %v1402, %v1469
        %v1571 = vadd.f32 %v1403, %v1469
        %v1572 = vadd.f32 %v1404, %v1469
        %v1573 = vadd.f32 %v1405, %v1469
        %v1574 = vadd.f32 %v1406, %v1469
        %v1575 = vadd.f32 %v1407, %v1469
        %v1576 = vadd.f32 %v1408, %v1469
        %v1577 = vadd.f32 %v1409, %v1469
        %v1578 = vadd.f32 %v1410, %v1469
        %v1579 = vadd.f32 %v1411, %v1469
        %v1580 = vadd.f32 %v1412, %v1469
        %v1581 = vadd.f32 %v1413, %v1469
        %v1582 = vadd.f32 %v1414, %v1469
        %v1583 = vadd.f32 %v1415, %v1469
        %v1584 = vadd.f32 %v1416, %v1474
        %v1585 = vadd.f32 %v1417, %v1474
        %v1586 = vadd.f32 %v1418, %v1474
        %v1587 = vadd.f32 %v1419, %v1474
        %v1588 = vadd.f32 %v1420, %v1474
        %v1589 = vadd.f32 %v1421, %v1474
        %v1590 = vadd.f32 %v1422, %v1474
        %v1591 = vadd.f32 %v1423, %v1474
        %v1592 = vadd.f32 %v1424, %v1474
        %v1593 = vadd.f32 %v1425, %v1474
        %v1594 = vadd.f32 %v1426, %v1474
        %v1595 = vadd.f32 %v1427, %v1474
        %v1596 = vadd.f32 %v1428, %v1474
        %v1597 = vadd.f32 %v1429, %v1474
        %v1598 = vadd.f32 %v1430, %v1474
        %v1599 = vadd.f32 %v1431, %v1474
        %v1600 = vadd.f32 %v1432, %v1474
        %v1601 = vadd.f32 %v1433, %v1474
        %v1602 = vadd.f32 %v1434, %v1474
        %v1603 = vadd.f32 %v1435, %v1474
        %v1604 = vadd.f32 %v1436, %v1474
        %v1605 = vadd.f32 %v1437, %v1474
        %v1606 = vadd.f32 %v1438, %v1474
        %v1607 = vadd.f32 %v1439, %v1474
        %v1608 = vadd.f32 %v1440, %v1474
        %v1609 = vadd.f32 %v1441, %v1474
        %v1610 = vadd.f32 %v1442, %v1474
        %v1611 = vadd.f32 %v1443, %v1474
        %v1612 = vadd.f32 %v1444, %v1474
        %v1613 = vadd.f32 %v1445, %v1474
        %v1614 = vadd.f32 %v1446, %v1474
        %v1615 = vadd.f32 %v1447, %v1474
        %v1616 = vadd.f32 %v1448, %v1474
        %v1617 = vadd.f32 %v1449, %v1474
        %v1618 = vadd.f32 %v1450, %v1474
        %v1619 = vadd.f32 %v1451, %v1474
        %v1620 = vtanh.pop %v1476
        %v1621 = vtanh.pop %v1477
        %v1622 = vtanh.pop %v1478
        %v1623 = vtanh.pop %v1479
        %v1624 = vtanh.pop %v1480
        %v1625 = vtanh.pop %v1481
        %v1626 = vtanh.pop %v1482
        %v1627 = vtanh.pop %v1483
        %v1628 = vtanh.pop %v1484
        %v1629 = vtanh.pop %v1485
        %v1630 = vtanh.pop %v1486
        %v1631 = vtanh.pop %v1487
        %v1632 = vtanh.pop %v1488
        %v1633 = vtanh.pop %v1489
        %v1634 = vtanh.pop %v1490
        %v1635 = vtanh.pop %v1491
        %v1636 = vtanh.pop %v1492
        %v1637 = vtanh.pop %v1493
        %v1638 = vtanh.pop %v1494
        %v1639 = vtanh.pop %v1495
        %v1640 = vtanh.pop %v1496
        %v1641 = vtanh.pop %v1497
        %v1642 = vtanh.pop %v1498
        %v1643 = vtanh.pop %v1499
        %v1644 = vtanh.pop %v1500
        %v1645 = vtanh.pop %v1501
        %v1646 = vtanh.pop %v1502
        %v1647 = vtanh.pop %v1503
        %v1648 = vtanh.pop %v1504
        %v1649 = vtanh.pop %v1505
        %v1650 = vtanh.pop %v1506
        %v1651 = vtanh.pop %v1507
        %v1652 = vtanh.pop %v1508
        %v1653 = vtanh.pop %v1509
        %v1654 = vtanh.pop %v1510
        %v1655 = vtanh.pop %v1511
        %v1656 = vtanh.pop %v1512
        %v1657 = vtanh.pop %v1513
        %v1658 = vtanh.pop %v1514
        %v1659 = vtanh.pop %v1515
        %v1660 = vtanh.pop %v1516
        %v1661 = vtanh.pop %v1517
        %v1662 = vtanh.pop %v1518
        %v1663 = vtanh.pop %v1519
        %v1664 = vtanh.pop %v1520
        %v1665 = vtanh.pop %v1521
        %v1666 = vtanh.pop %v1522
        %v1667 = vtanh.pop %v1523
        %v1668 = vtanh.pop %v1524
        %v1669 = vtanh.pop %v1525
        %v1670 = vtanh.pop %v1526
        %v1671 = vtanh.pop %v1527
        %v1672 = vtanh.pop %v1528
        %v1673 = vtanh.pop %v1529
        %v1674 = vtanh.pop %v1530
        %v1675 = vtanh.pop %v1531
        %v1676 = vtanh.pop %v1532
        %v1677 = vtanh.pop %v1533
        %v1678 = vtanh.pop %v1534
        %v1679 = vtanh.pop %v1535
        %v1680 = vtanh.pop %v1536
        %v1681 = vtanh.pop %v1537
        %v1682 = vtanh.pop %v1538
        %v1683 = vtanh.pop %v1539
        %v1684 = vtanh.pop %v1540
        %v1685 = vtanh.pop %v1541
        %v1686 = vtanh.pop %v1542
        %v1687 = vtanh.pop %v1543
        %v1688 = vtanh.pop %v1544
        %v1689 = vtanh.pop %v1545
        %v1690 = vtanh.pop %v1546
        %v1691 = vtanh.pop %v1547
        %v1692 = vtanh.pop %v1548
        %v1693 = vtanh.pop %v1549
        %v1694 = vtanh.pop %v1550
        %v1695 = vtanh.pop %v1551
        %v1696 = vtanh.pop %v1552
        %v1697 = vtanh.pop %v1553
        %v1698 = vtanh.pop %v1554
        %v1699 = vtanh.pop %v1555
        %v1700 = vtanh.pop %v1556
        %v1701 = vtanh.pop %v1557
        %v1702 = vtanh.pop %v1558
        %v1703 = vtanh.pop %v1559
        %v1704 = vtanh.pop %v1560
        %v1705 = vtanh.pop %v1561
        %v1706 = vtanh.pop %v1562
        %v1707 = vtanh.pop %v1563
        %v1708 = vtanh.pop %v1564
        %v1709 = vtanh.pop %v1565
        %v1710 = vtanh.pop %v1566
        %v1711 = vtanh.pop %v1567
        %v1712 = vtanh.pop %v1568
        %v1713 = vtanh.pop %v1569
        %v1714 = vtanh.pop %v1570
        %v1715 = vtanh.pop %v1571
        %v1716 = vtanh.pop %v1572
        %v1717 = vtanh.pop %v1573
        %v1718 = vtanh.pop %v1574
        %v1719 = vtanh.pop %v1575
        %v1720 = vtanh.pop %v1576
        %v1721 = vtanh.pop %v1577
        %v1722 = vtanh.pop %v1578
        %v1723 = vtanh.pop %v1579
        %v1724 = vtanh.pop %v1580
        %v1725 = vtanh.pop %v1581
        %v1726 = vtanh.pop %v1582
        %v1727 = vtanh.pop %v1583
        %v1728 = vtanh.pop %v1584
        %v1729 = vtanh.pop %v1585
        %v1730 = vtanh.pop %v1586
        %v1731 = vtanh.pop %v1587
        %v1732 = vtanh.pop %v1588
        %v1733 = vtanh.pop %v1589
        %v1734 = vtanh.pop %v1590
        %v1735 = vtanh.pop %v1591
        %v1736 = vtanh.pop %v1592
        %v1737 = vtanh.pop %v1593
        %v1738 = vtanh.pop %v1594
        %v1739 = vtanh.pop %v1595
        %v1740 = vtanh.pop %v1596
        %v1741 = vtanh.pop %v1597
        %v1742 = vtanh.pop %v1598
        %v1743 = vtanh.pop %v1599
        %v1744 = vtanh.pop %v1600
        %v1745 = vtanh.pop %v1601
        %v1746 = vtanh.pop %v1602
        %v1747 = vtanh.pop %v1603
        %v1748 = vtanh.pop %v1604
        %v1749 = vtanh.pop %v1605
        %v1750 = vtanh.pop %v1606
        %v1751 = vtanh.pop %v1607
        %v1752 = vtanh.pop %v1608
        %v1753 = vtanh.pop %v1609
        %v1754 = vtanh.pop %v1610
        %v1755 = vtanh.pop %v1611
        %v1756 = vtanh.pop %v1612
        %v1757 = vtanh.pop %v1613
        %v1758 = vtanh.pop %v1614
        %v1759 = vtanh.pop %v1615
        %v1760 = vtanh.pop %v1616
        %v1761 = vtanh.pop %v1617
        %v1762 = vtanh.pop %v1618
        %v1763 = vtanh.pop %v1619
        %v1764 = vld [vmem:[%s3] sm:$0xf]
        %v1765 = vld [vmem:[%s3 + $0x4] sm:$0xf]
        %v1766 = vld [vmem:[%s3 + $0x8] sm:$0xf]
        %v1767 = vld [vmem:[%s3 + $0xc] sm:$0xf]
        %v1768 = vpack.c.bf16 %v1656, %v1620
        %v1769 = vpack.c.bf16 %v1657, %v1621
        %v1770 = vpack.c.bf16 %v1658, %v1622
        %v1771 = vpack.c.bf16 %v1659, %v1623
        %v1772 = vpack.c.bf16 %v1660, %v1624
        %v1773 = vpack.c.bf16 %v1661, %v1625
        %v1774 = vpack.c.bf16 %v1662, %v1626
        %v1775 = vpack.c.bf16 %v1663, %v1627
        %v1776 = vpack.c.bf16 %v1664, %v1628
        %v1777 = vpack.c.bf16 %v1665, %v1629
        %v1778 = vpack.c.bf16 %v1666, %v1630
        %v1779 = vpack.c.bf16 %v1667, %v1631
        %v1780 = vpack.c.bf16 %v1668, %v1632
        %v1781 = vpack.c.bf16 %v1669, %v1633
        %v1782 = vpack.c.bf16 %v1670, %v1634
        %v1783 = vpack.c.bf16 %v1671, %v1635
        %v1784 = vpack.c.bf16 %v1672, %v1636
        %v1785 = vpack.c.bf16 %v1673, %v1637
        %v1786 = vpack.c.bf16 %v1674, %v1638
        %v1787 = vpack.c.bf16 %v1675, %v1639
        %v1788 = vpack.c.bf16 %v1676, %v1640
        %v1789 = vpack.c.bf16 %v1677, %v1641
        %v1790 = vpack.c.bf16 %v1678, %v1642
        %v1791 = vpack.c.bf16 %v1679, %v1643
        %v1792 = vpack.c.bf16 %v1680, %v1644
        %v1793 = vpack.c.bf16 %v1681, %v1645
        %v1794 = vpack.c.bf16 %v1682, %v1646
        %v1795 = vpack.c.bf16 %v1683, %v1647
        %v1796 = vpack.c.bf16 %v1684, %v1648
        %v1797 = vpack.c.bf16 %v1685, %v1649
        %v1798 = vpack.c.bf16 %v1686, %v1650
        %v1799 = vpack.c.bf16 %v1687, %v1651
        %v1800 = vpack.c.bf16 %v1688, %v1652
        %v1801 = vpack.c.bf16 %v1689, %v1653
        %v1802 = vpack.c.bf16 %v1690, %v1654
        %v1803 = vpack.c.bf16 %v1691, %v1655
        %v1804 = vpack.c.bf16 %v1728, %v1692
        %v1805 = vpack.c.bf16 %v1729, %v1693
        %v1806 = vpack.c.bf16 %v1730, %v1694
        %v1807 = vpack.c.bf16 %v1731, %v1695
        %v1808 = vpack.c.bf16 %v1732, %v1696
        %v1809 = vpack.c.bf16 %v1733, %v1697
        %v1810 = vpack.c.bf16 %v1734, %v1698
        %v1811 = vpack.c.bf16 %v1735, %v1699
        %v1812 = vpack.c.bf16 %v1736, %v1700
        %v1813 = vpack.c.bf16 %v1737, %v1701
        %v1814 = vpack.c.bf16 %v1738, %v1702
        %v1815 = vpack.c.bf16 %v1739, %v1703
        %v1816 = vpack.c.bf16 %v1740, %v1704
        %v1817 = vpack.c.bf16 %v1741, %v1705
        %v1818 = vpack.c.bf16 %v1742, %v1706
        %v1819 = vpack.c.bf16 %v1743, %v1707
        %v1820 = vpack.c.bf16 %v1744, %v1708
        %v1821 = vpack.c.bf16 %v1745, %v1709
        %v1822 = vpack.c.bf16 %v1746, %v1710
        %v1823 = vpack.c.bf16 %v1747, %v1711
        %v1824 = vpack.c.bf16 %v1748, %v1712
        %v1825 = vpack.c.bf16 %v1749, %v1713
        %v1826 = vpack.c.bf16 %v1750, %v1714
        %v1827 = vpack.c.bf16 %v1751, %v1715
        %v1828 = vpack.c.bf16 %v1752, %v1716
        %v1829 = vpack.c.bf16 %v1753, %v1717
        %v1830 = vpack.c.bf16 %v1754, %v1718
        %v1831 = vpack.c.bf16 %v1755, %v1719
        %v1832 = vpack.c.bf16 %v1756, %v1720
        %v1833 = vpack.c.bf16 %v1757, %v1721
        %v1834 = vpack.c.bf16 %v1758, %v1722
        %v1835 = vpack.c.bf16 %v1759, %v1723
        %v1836 = vpack.c.bf16 %v1760, %v1724
        %v1837 = vpack.c.bf16 %v1761, %v1725
        %v1838 = vpack.c.bf16 %v1762, %v1726
        %v1839 = vpack.c.bf16 %v1763, %v1727
        %v1840 = vld [vmem:[%s4] sm:$0xff]
        %v1841 = vld [vmem:[%s4 + $0x8] sm:$0xff]
        %v1842 = vld [vmem:[%s4 + $0x10] sm:$0xff]
        %v1843 = vld [vmem:[%s4 + $0x18] sm:$0xff]
        %1845 = vset.pattern.permute.xlu0 0
        %1846 = vperm.xlu0 %1845, %v1840
        %v1847 = vpop.permute.xlu0 %1846
        %1850 = vset.pattern.permute.xlu0 0
        %1851 = vperm.xlu0 %1850, %v1841
        %v1852 = vpop.permute.xlu0 %1851
        %1855 = vset.pattern.permute.xlu0 0
        %1856 = vperm.xlu0 %1855, %v1842
        %v1857 = vpop.permute.xlu0 %1856
        %1860 = vset.pattern.permute.xlu0 0
        %1861 = vperm.xlu0 %1860, %v1843
        %v1862 = vpop.permute.xlu0 %1861
        %v1868 = vunpack.c.l.b16 %v1764
        %v1869 = vunpack.c.l.b16 %v1765
        %v1870 = vunpack.c.l.b16 %v1766
        %v1871 = vunpack.c.l.b16 %v1767
        %v1872 = vpack.c.b16 %v1869, %v1868
        %v1873 = vpack.c.b16 %v1871, %v1870
        %vm1874 = vcmask 261120
        %v1876 = vsel %vm1874, %v1872, 0
        %v1879 = vsel %vm1874, %v1873, 0
        %1881 = vmatprep.subr.bf16.mxu0 %v1769
        %1882 = vmatpush1.bf16.msra.mxu0 %v1768
        %1883 = vmatprep.subr.bf16.mxu0 %v1805
        %1884 = vmatpush1.bf16.msra.mxu0 %v1804
        %1885 = vmatprep.subr.bf16.mxu0 0
        %1886 = vmatpush1.bf16.msra.mxu0 0
        %1887 = vmatprep.subr.bf16.mxu0 0
        %1888 = vmatpush1.bf16.msra.mxu0 0
        %1889 = vmatprep.subr.bf16.mxu0 0
        %1890 = vmatpush1.bf16.msra.mxu0 0
        %1891 = vmatprep.subr.bf16.mxu0 0
        %1892 = vmatpush1.bf16.msra.mxu0 0
        %1893 = vmatprep.subr.bf16.mxu0 0
        %1894 = vmatpush1.bf16.msra.mxu0 0
        %1895 = vmatprep.subr.bf16.mxu0 0
        %1896 = vmatpush1.bf16.msra.mxu0 0
        %1897 = vmatprep.subr.bf16.mxu0 0
        %1898 = vmatpush1.bf16.msra.mxu0 0
        %1899 = vmatprep.subr.bf16.mxu0 0
        %1900 = vmatpush1.bf16.msra.mxu0 0
        %1901 = vmatprep.subr.bf16.mxu0 0
        %1902 = vmatpush1.bf16.msra.mxu0 0
        %1903 = vmatprep.subr.bf16.mxu0 0
        %1904 = vmatpush1.bf16.msra.mxu0 0
        %1905 = vmatprep.subr.bf16.mxu0 0
        %1906 = vmatpush1.bf16.msra.mxu0 0
        %1907 = vmatprep.subr.bf16.mxu0 0
        %1908 = vmatpush1.bf16.msra.mxu0 0
        %1909 = vmatprep.subr.bf16.mxu0 0
        %1910 = vmatpush1.bf16.msra.mxu0 0
        %1911 = vmatprep.subr.bf16.mxu0 0
        %1912 = vmatpush1.bf16.msra.mxu0 0
        %1913 = vmatprep.mubr.bf16.mxu0 0
        %1914 = vmatmul.mubr.bf16.gmra.mrb[0].mxu0 %v1876
        %v1915 = vpop.f32.mrb[0].mxu0
        %v1916 = vadd.f32 %v1847, %v1915
        %v1917 = vpop.f32.mrb[0].mxu0
        %v1918 = vadd.f32 %v1847, %v1917
        %v1919 = vpop.f32.mrb[0].mxu0
        %v1920 = vadd.f32 %v1852, %v1919
        %v1921 = vpop.f32.mrb[0].mxu0
        %v1922 = vadd.f32 %v1852, %v1921
        %1923 = vmatprep.mubr.bf16.mxu0 0
        %1924 = vmatmul.mubr.bf16.gmra.mrb[0].mxu0 %v1879
        %v1925 = vpop.f32.mrb[0].mxu0
        %v1926 = vadd.f32 %v1857, %v1925
        %v1927 = vpop.f32.mrb[0].mxu0
        %v1928 = vadd.f32 %v1857, %v1927
        %v1929 = vpop.f32.mrb[0].mxu0
        %v1930 = vadd.f32 %v1862, %v1929
        %v1931 = vpop.f32.mrb[0].mxu0
        %v1932 = vadd.f32 %v1862, %v1931
        %1933 = vdwg.mxu0
        %1934 = vmatprep.subr.bf16.mxu0 %v1771
        %1935 = vmatpush1.bf16.msra.mxu0 %v1770
        %1936 = vmatprep.subr.bf16.mxu0 %v1807
        %1937 = vmatpush1.bf16.msra.mxu0 %v1806
        %1938 = vmatprep.subr.bf16.mxu0 0
        %1939 = vmatpush1.bf16.msra.mxu0 0
        %1940 = vmatprep.subr.bf16.mxu0 0
        %1941 = vmatpush1.bf16.msra.mxu0 0
        %1942 = vmatprep.subr.bf16.mxu0 0
        %1943 = vmatpush1.bf16.msra.mxu0 0
        %1944 = vmatprep.subr.bf16.mxu0 0
        %1945 = vmatpush1.bf16.msra.mxu0 0
        %1946 = vmatprep.subr.bf16.mxu0 0
        %1947 = vmatpush1.bf16.msra.mxu0 0
        %1948 = vmatprep.subr.bf16.mxu0 0
        %1949 = vmatpush1.bf16.msra.mxu0 0
        %1950 = vmatprep.subr.bf16.mxu0 0
        %1951 = vmatpush1.bf16.msra.mxu0 0
        %1952 = vmatprep.subr.bf16.mxu0 0
        %1953 = vmatpush1.bf16.msra.mxu0 0
        %1954 = vmatprep.subr.bf16.mxu0 0
        %1955 = vmatpush1.bf16.msra.mxu0 0
        %1956 = vmatprep.subr.bf16.mxu0 0
        %1957 = vmatpush1.bf16.msra.mxu0 0
        %1958 = vmatprep.subr.bf16.mxu0 0
        %1959 = vmatpush1.bf16.msra.mxu0 0
        %1960 = vmatprep.subr.bf16.mxu0 0
        %1961 = vmatpush1.bf16.msra.mxu0 0
        %1962 = vmatprep.subr.bf16.mxu0 0
        %1963 = vmatpush1.bf16.msra.mxu0 0
        %1964 = vmatprep.subr.bf16.mxu0 0
        %1965 = vmatpush1.bf16.msra.mxu0 0
        %1966 = vmatprep.mubr.bf16.mxu0 0
        %1967 = vmatmul.mubr.bf16.gmra.mrb[0].mxu0 %v1876
        %v1968 = vpop.f32.mrb[0].mxu0
        %v1969 = vadd.f32 %v1847, %v1968
        %v1970 = vpop.f32.mrb[0].mxu0
        %v1971 = vadd.f32 %v1847, %v1970
        %v1972 = vpop.f32.mrb[0].mxu0
        %v1973 = vadd.f32 %v1852, %v1972
        %v1974 = vpop.f32.mrb[0].mxu0
        %v1975 = vadd.f32 %v1852, %v1974
        %1976 = vmatprep.mubr.bf16.mxu0 0
        %1977 = vmatmul.mubr.bf16.gmra.mrb[0].mxu0 %v1879
        %v1978 = vpop.f32.mrb[0].mxu0
        %v1979 = vadd.f32 %v1857, %v1978
        %v1980 = vpop.f32.mrb[0].mxu0
        %v1981 = vadd.f32 %v1857, %v1980
        %v1982 = vpop.f32.mrb[0].mxu0
        %v1983 = vadd.f32 %v1862, %v1982
        %v1984 = vpop.f32.mrb[0].mxu0
        %v1985 = vadd.f32 %v1862, %v1984
        %1986 = vdwg.mxu0
        %1987 = vmatprep.subr.bf16.mxu0 %v1773
        %1988 = vmatpush1.bf16.msra.mxu0 %v1772
        %1989 = vmatprep.subr.bf16.mxu0 %v1809
        %1990 = vmatpush1.bf16.msra.mxu0 %v1808
        %1991 = vmatprep.subr.bf16.mxu0 0
        %1992 = vmatpush1.bf16.msra.mxu0 0
        %1993 = vmatprep.subr.bf16.mxu0 0
        %1994 = vmatpush1.bf16.msra.mxu0 0
        %1995 = vmatprep.subr.bf16.mxu0 0
        %1996 = vmatpush1.bf16.msra.mxu0 0
        %1997 = vmatprep.subr.bf16.mxu0 0
        %1998 = vmatpush1.bf16.msra.mxu0 0
        %1999 = vmatprep.subr.bf16.mxu0 0
        %2000 = vmatpush1.bf16.msra.mxu0 0
        %2001 = vmatprep.subr.bf16.mxu0 0
        %2002 = vmatpush1.bf16.msra.mxu0 0
        %2003 = vmatprep.subr.bf16.mxu0 0
        %2004 = vmatpush1.bf16.msra.mxu0 0
        %2005 = vmatprep.subr.bf16.mxu0 0
        %2006 = vmatpush1.bf16.msra.mxu0 0
        %2007 = vmatprep.subr.bf16.mxu0 0
        %2008 = vmatpush1.bf16.msra.mxu0 0
        %2009 = vmatprep.subr.bf16.mxu0 0
        %2010 = vmatpush1.bf16.msra.mxu0 0
        %2011 = vmatprep.subr.bf16.mxu0 0
        %2012 = vmatpush1.bf16.msra.mxu0 0
        %2013 = vmatprep.subr.bf16.mxu0 0
        %2014 = vmatpush1.bf16.msra.mxu0 0
        %2015 = vmatprep.subr.bf16.mxu0 0
        %2016 = vmatpush1.bf16.msra.mxu0 0
        %2017 = vmatprep.subr.bf16.mxu0 0
        %2018 = vmatpush1.bf16.msra.mxu0 0
        %2019 = vmatprep.mubr.bf16.mxu0 0
        %2020 = vmatmul.mubr.bf16.gmra.mrb[0].mxu0 %v1876
        %v2021 = vpop.f32.mrb[0].mxu0
        %v2022 = vadd.f32 %v1847, %v2021
        %v2023 = vpop.f32.mrb[0].mxu0
        %v2024 = vadd.f32 %v1847, %v2023
        %v2025 = vpop.f32.mrb[0].mxu0
        %v2026 = vadd.f32 %v1852, %v2025
        %v2027 = vpop.f32.mrb[0].mxu0
        %v2028 = vadd.f32 %v1852, %v2027
        %2029 = vmatprep.mubr.bf16.mxu0 0
        %2030 = vmatmul.mubr.bf16.gmra.mrb[0].mxu0 %v1879
        %v2031 = vpop.f32.mrb[0].mxu0
        %v2032 = vadd.f32 %v1857, %v2031
        %v2033 = vpop.f32.mrb[0].mxu0
        %v2034 = vadd.f32 %v1857, %v2033
        %v2035 = vpop.f32.mrb[0].mxu0
        %v2036 = vadd.f32 %v1862, %v2035
        %v2037 = vpop.f32.mrb[0].mxu0
        %v2038 = vadd.f32 %v1862, %v2037
        %2039 = vdwg.mxu0
        %2040 = vmatprep.subr.bf16.mxu0 %v1775
        %2041 = vmatpush1.bf16.msra.mxu0 %v1774
        %2042 = vmatprep.subr.bf16.mxu0 %v1811
        %2043 = vmatpush1.bf16.msra.mxu0 %v1810
        %2044 = vmatprep.subr.bf16.mxu0 0
        %2045 = vmatpush1.bf16.msra.mxu0 0
        %2046 = vmatprep.subr.bf16.mxu0 0
        %2047 = vmatpush1.bf16.msra.mxu0 0
        %2048 = vmatprep.subr.bf16.mxu0 0
        %2049 = vmatpush1.bf16.msra.mxu0 0
        %2050 = vmatprep.subr.bf16.mxu0 0
        %2051 = vmatpush1.bf16.msra.mxu0 0
        %2052 = vmatprep.subr.bf16.mxu0 0
        %2053 = vmatpush1.bf16.msra.mxu0 0
        %2054 = vmatprep.subr.bf16.mxu0 0
        %2055 = vmatpush1.bf16.msra.mxu0 0
        %2056 = vmatprep.subr.bf16.mxu0 0
        %2057 = vmatpush1.bf16.msra.mxu0 0
        %2058 = vmatprep.subr.bf16.mxu0 0
        %2059 = vmatpush1.bf16.msra.mxu0 0
        %2060 = vmatprep.subr.bf16.mxu0 0
        %2061 = vmatpush1.bf16.msra.mxu0 0
        %2062 = vmatprep.subr.bf16.mxu0 0
        %2063 = vmatpush1.bf16.msra.mxu0 0
        %2064 = vmatprep.subr.bf16.mxu0 0
        %2065 = vmatpush1.bf16.msra.mxu0 0
        %2066 = vmatprep.subr.bf16.mxu0 0
        %2067 = vmatpush1.bf16.msra.mxu0 0
        %2068 = vmatprep.subr.bf16.mxu0 0
        %2069 = vmatpush1.bf16.msra.mxu0 0
        %2070 = vmatprep.subr.bf16.mxu0 0
        %2071 = vmatpush1.bf16.msra.mxu0 0
        %2072 = vmatprep.mubr.bf16.mxu0 0
        %2073 = vmatmul.mubr.bf16.gmra.mrb[0].mxu0 %v1876
        %v2074 = vpop.f32.mrb[0].mxu0
        %v2075 = vadd.f32 %v1847, %v2074
        %v2076 = vpop.f32.mrb[0].mxu0
        %v2077 = vadd.f32 %v1847, %v2076
        %v2078 = vpop.f32.mrb[0].mxu0
        %v2079 = vadd.f32 %v1852, %v2078
        %v2080 = vpop.f32.mrb[0].mxu0
        %v2081 = vadd.f32 %v1852, %v2080
        %2082 = vmatprep.mubr.bf16.mxu0 0
        %2083 = vmatmul.mubr.bf16.gmra.mrb[0].mxu0 %v1879
        %v2084 = vpop.f32.mrb[0].mxu0
        %v2085 = vadd.f32 %v1857, %v2084
        %v2086 = vpop.f32.mrb[0].mxu0
        %v2087 = vadd.f32 %v1857, %v2086
        %v2088 = vpop.f32.mrb[0].mxu0
        %v2089 = vadd.f32 %v1862, %v2088
        %v2090 = vpop.f32.mrb[0].mxu0
        %v2091 = vadd.f32 %v1862, %v2090
        %2092 = vdwg.mxu0
        %2093 = vmatprep.subr.bf16.mxu0 %v1777
        %2094 = vmatpush1.bf16.msra.mxu0 %v1776
        %2095 = vmatprep.subr.bf16.mxu0 %v1813
        %2096 = vmatpush1.bf16.msra.mxu0 %v1812
        %2097 = vmatprep.subr.bf16.mxu0 0
        %2098 = vmatpush1.bf16.msra.mxu0 0
        %2099 = vmatprep.subr.bf16.mxu0 0
        %2100 = vmatpush1.bf16.msra.mxu0 0
        %2101 = vmatprep.subr.bf16.mxu0 0
        %2102 = vmatpush1.bf16.msra.mxu0 0
        %2103 = vmatprep.subr.bf16.mxu0 0
        %2104 = vmatpush1.bf16.msra.mxu0 0
        %2105 = vmatprep.subr.bf16.mxu0 0
        %2106 = vmatpush1.bf16.msra.mxu0 0
        %2107 = vmatprep.subr.bf16.mxu0 0
        %2108 = vmatpush1.bf16.msra.mxu0 0
        %2109 = vmatprep.subr.bf16.mxu0 0
        %2110 = vmatpush1.bf16.msra.mxu0 0
        %2111 = vmatprep.subr.bf16.mxu0 0
        %2112 = vmatpush1.bf16.msra.mxu0 0
        %2113 = vmatprep.subr.bf16.mxu0 0
        %2114 = vmatpush1.bf16.msra.mxu0 0
        %2115 = vmatprep.subr.bf16.mxu0 0
        %2116 = vmatpush1.bf16.msra.mxu0 0
        %2117 = vmatprep.subr.bf16.mxu0 0
        %2118 = vmatpush1.bf16.msra.mxu0 0
        %2119 = vmatprep.subr.bf16.mxu0 0
        %2120 = vmatpush1.bf16.msra.mxu0 0
        %2121 = vmatprep.subr.bf16.mxu0 0
        %2122 = vmatpush1.bf16.msra.mxu0 0
        %2123 = vmatprep.subr.bf16.mxu0 0
        %2124 = vmatpush1.bf16.msra.mxu0 0
        %2125 = vmatprep.mubr.bf16.mxu0 0
        %2126 = vmatmul.mubr.bf16.gmra.mrb[0].mxu0 %v1876
        %v2127 = vpop.f32.mrb[0].mxu0
        %v2128 = vadd.f32 %v1847, %v2127
        %v2129 = vpop.f32.mrb[0].mxu0
        %v2130 = vadd.f32 %v1847, %v2129
        %v2131 = vpop.f32.mrb[0].mxu0
        %v2132 = vadd.f32 %v1852, %v2131
        %v2133 = vpop.f32.mrb[0].mxu0
        %v2134 = vadd.f32 %v1852, %v2133
        %2135 = vmatprep.mubr.bf16.mxu0 0
        %2136 = vmatmul.mubr.bf16.gmra.mrb[0].mxu0 %v1879
        %v2137 = vpop.f32.mrb[0].mxu0
        %v2138 = vadd.f32 %v1857, %v2137
        %v2139 = vpop.f32.mrb[0].mxu0
        %v2140 = vadd.f32 %v1857, %v2139
        %v2141 = vpop.f32.mrb[0].mxu0
        %v2142 = vadd.f32 %v1862, %v2141
        %v2143 = vpop.f32.mrb[0].mxu0
        %v2144 = vadd.f32 %v1862, %v2143
        %2145 = vdwg.mxu0
        %2146 = vmatprep.subr.bf16.mxu0 %v1779
        %2147 = vmatpush1.bf16.msra.mxu0 %v1778
        %2148 = vmatprep.subr.bf16.mxu0 %v1815
        %2149 = vmatpush1.bf16.msra.mxu0 %v1814
        %2150 = vmatprep.subr.bf16.mxu0 0
        %2151 = vmatpush1.bf16.msra.mxu0 0
        %2152 = vmatprep.subr.bf16.mxu0 0
        %2153 = vmatpush1.bf16.msra.mxu0 0
        %2154 = vmatprep.subr.bf16.mxu0 0
        %2155 = vmatpush1.bf16.msra.mxu0 0
        %2156 = vmatprep.subr.bf16.mxu0 0
        %2157 = vmatpush1.bf16.msra.mxu0 0
        %2158 = vmatprep.subr.bf16.mxu0 0
        %2159 = vmatpush1.bf16.msra.mxu0 0
        %2160 = vmatprep.subr.bf16.mxu0 0
        %2161 = vmatpush1.bf16.msra.mxu0 0
        %2162 = vmatprep.subr.bf16.mxu0 0
        %2163 = vmatpush1.bf16.msra.mxu0 0
        %2164 = vmatprep.subr.bf16.mxu0 0
        %2165 = vmatpush1.bf16.msra.mxu0 0
        %2166 = vmatprep.subr.bf16.mxu0 0
        %2167 = vmatpush1.bf16.msra.mxu0 0
        %2168 = vmatprep.subr.bf16.mxu0 0
        %2169 = vmatpush1.bf16.msra.mxu0 0
        %2170 = vmatprep.subr.bf16.mxu0 0
        %2171 = vmatpush1.bf16.msra.mxu0 0
        %2172 = vmatprep.subr.bf16.mxu0 0
        %2173 = vmatpush1.bf16.msra.mxu0 0
        %2174 = vmatprep.subr.bf16.mxu0 0
        %2175 = vmatpush1.bf16.msra.mxu0 0
        %2176 = vmatprep.subr.bf16.mxu0 0
        %2177 = vmatpush1.bf16.msra.mxu0 0
        %2178 = vmatprep.mubr.bf16.mxu0 0
        %2179 = vmatmul.mubr.bf16.gmra.mrb[0].mxu0 %v1876
        %v2180 = vpop.f32.mrb[0].mxu0
        %v2181 = vadd.f32 %v1847, %v2180
        %v2182 = vpop.f32.mrb[0].mxu0
        %v2183 = vadd.f32 %v1847, %v2182
        %v2184 = vpop.f32.mrb[0].mxu0
        %v2185 = vadd.f32 %v1852, %v2184
        %v2186 = vpop.f32.mrb[0].mxu0
        %v2187 = vadd.f32 %v1852, %v2186
        %2188 = vmatprep.mubr.bf16.mxu0 0
        %2189 = vmatmul.mubr.bf16.gmra.mrb[0].mxu0 %v1879
        %v2190 = vpop.f32.mrb[0].mxu0
        %v2191 = vadd.f32 %v1857, %v2190
        %v2192 = vpop.f32.mrb[0].mxu0
        %v2193 = vadd.f32 %v1857, %v2192
        %v2194 = vpop.f32.mrb[0].mxu0
        %v2195 = vadd.f32 %v1862, %v2194
        %v2196 = vpop.f32.mrb[0].mxu0
        %v2197 = vadd.f32 %v1862, %v2196
        %2198 = vdwg.mxu0
        %2199 = vmatprep.subr.bf16.mxu0 %v1781
        %2200 = vmatpush1.bf16.msra.mxu0 %v1780
        %2201 = vmatprep.subr.bf16.mxu0 %v1817
        %2202 = vmatpush1.bf16.msra.mxu0 %v1816
        %2203 = vmatprep.subr.bf16.mxu0 0
        %2204 = vmatpush1.bf16.msra.mxu0 0
        %2205 = vmatprep.subr.bf16.mxu0 0
        %2206 = vmatpush1.bf16.msra.mxu0 0
        %2207 = vmatprep.subr.bf16.mxu0 0
        %2208 = vmatpush1.bf16.msra.mxu0 0
        %2209 = vmatprep.subr.bf16.mxu0 0
        %2210 = vmatpush1.bf16.msra.mxu0 0
        %2211 = vmatprep.subr.bf16.mxu0 0
        %2212 = vmatpush1.bf16.msra.mxu0 0
        %2213 = vmatprep.subr.bf16.mxu0 0
        %2214 = vmatpush1.bf16.msra.mxu0 0
        %2215 = vmatprep.subr.bf16.mxu0 0
        %2216 = vmatpush1.bf16.msra.mxu0 0
        %2217 = vmatprep.subr.bf16.mxu0 0
        %2218 = vmatpush1.bf16.msra.mxu0 0
        %2219 = vmatprep.subr.bf16.mxu0 0
        %2220 = vmatpush1.bf16.msra.mxu0 0
        %2221 = vmatprep.subr.bf16.mxu0 0
        %2222 = vmatpush1.bf16.msra.mxu0 0
        %2223 = vmatprep.subr.bf16.mxu0 0
        %2224 = vmatpush1.bf16.msra.mxu0 0
        %2225 = vmatprep.subr.bf16.mxu0 0
        %2226 = vmatpush1.bf16.msra.mxu0 0
        %2227 = vmatprep.subr.bf16.mxu0 0
        %2228 = vmatpush1.bf16.msra.mxu0 0
        %2229 = vmatprep.subr.bf16.mxu0 0
        %2230 = vmatpush1.bf16.msra.mxu0 0
        %2231 = vmatprep.mubr.bf16.mxu0 0
        %2232 = vmatmul.mubr.bf16.gmra.mrb[0].mxu0 %v1876
        %v2233 = vpop.f32.mrb[0].mxu0
        %v2234 = vadd.f32 %v1847, %v2233
        %v2235 = vpop.f32.mrb[0].mxu0
        %v2236 = vadd.f32 %v1847, %v2235
        %v2237 = vpop.f32.mrb[0].mxu0
        %v2238 = vadd.f32 %v1852, %v2237
        %v2239 = vpop.f32.mrb[0].mxu0
        %v2240 = vadd.f32 %v1852, %v2239
        %2241 = vmatprep.mubr.bf16.mxu0 0
        %2242 = vmatmul.mubr.bf16.gmra.mrb[0].mxu0 %v1879
        %v2243 = vpop.f32.mrb[0].mxu0
        %v2244 = vadd.f32 %v1857, %v2243
        %v2245 = vpop.f32.mrb[0].mxu0
        %v2246 = vadd.f32 %v1857, %v2245
        %v2247 = vpop.f32.mrb[0].mxu0
        %v2248 = vadd.f32 %v1862, %v2247
        %v2249 = vpop.f32.mrb[0].mxu0
        %v2250 = vadd.f32 %v1862, %v2249
        %2251 = vdwg.mxu0
        %2252 = vmatprep.subr.bf16.mxu0 %v1783
        %2253 = vmatpush1.bf16.msra.mxu0 %v1782
        %2254 = vmatprep.subr.bf16.mxu0 %v1819
        %2255 = vmatpush1.bf16.msra.mxu0 %v1818
        %2256 = vmatprep.subr.bf16.mxu0 0
        %2257 = vmatpush1.bf16.msra.mxu0 0
        %2258 = vmatprep.subr.bf16.mxu0 0
        %2259 = vmatpush1.bf16.msra.mxu0 0
        %2260 = vmatprep.subr.bf16.mxu0 0
        %2261 = vmatpush1.bf16.msra.mxu0 0
        %2262 = vmatprep.subr.bf16.mxu0 0
        %2263 = vmatpush1.bf16.msra.mxu0 0
        %2264 = vmatprep.subr.bf16.mxu0 0
        %2265 = vmatpush1.bf16.msra.mxu0 0
        %2266 = vmatprep.subr.bf16.mxu0 0
        %2267 = vmatpush1.bf16.msra.mxu0 0
        %2268 = vmatprep.subr.bf16.mxu0 0
        %2269 = vmatpush1.bf16.msra.mxu0 0
        %2270 = vmatprep.subr.bf16.mxu0 0
        %2271 = vmatpush1.bf16.msra.mxu0 0
        %2272 = vmatprep.subr.bf16.mxu0 0
        %2273 = vmatpush1.bf16.msra.mxu0 0
        %2274 = vmatprep.subr.bf16.mxu0 0
        %2275 = vmatpush1.bf16.msra.mxu0 0
        %2276 = vmatprep.subr.bf16.mxu0 0
        %2277 = vmatpush1.bf16.msra.mxu0 0
        %2278 = vmatprep.subr.bf16.mxu0 0
        %2279 = vmatpush1.bf16.msra.mxu0 0
        %2280 = vmatprep.subr.bf16.mxu0 0
        %2281 = vmatpush1.bf16.msra.mxu0 0
        %2282 = vmatprep.subr.bf16.mxu0 0
        %2283 = vmatpush1.bf16.msra.mxu0 0
        %2284 = vmatprep.mubr.bf16.mxu0 0
        %2285 = vmatmul.mubr.bf16.gmra.mrb[0].mxu0 %v1876
        %v2286 = vpop.f32.mrb[0].mxu0
        %v2287 = vadd.f32 %v1847, %v2286
        %v2288 = vpop.f32.mrb[0].mxu0
        %v2289 = vadd.f32 %v1847, %v2288
        %v2290 = vpop.f32.mrb[0].mxu0
        %v2291 = vadd.f32 %v1852, %v2290
        %v2292 = vpop.f32.mrb[0].mxu0
        %v2293 = vadd.f32 %v1852, %v2292
        %2294 = vmatprep.mubr.bf16.mxu0 0
        %2295 = vmatmul.mubr.bf16.gmra.mrb[0].mxu0 %v1879
        %v2296 = vpop.f32.mrb[0].mxu0
        %v2297 = vadd.f32 %v1857, %v2296
        %v2298 = vpop.f32.mrb[0].mxu0
        %v2299 = vadd.f32 %v1857, %v2298
        %v2300 = vpop.f32.mrb[0].mxu0
        %v2301 = vadd.f32 %v1862, %v2300
        %v2302 = vpop.f32.mrb[0].mxu0
        %v2303 = vadd.f32 %v1862, %v2302
        %2304 = vdwg.mxu0
        %2305 = vmatprep.subr.bf16.mxu0 %v1785
        %2306 = vmatpush1.bf16.msra.mxu0 %v1784
        %2307 = vmatprep.subr.bf16.mxu0 %v1821
        %2308 = vmatpush1.bf16.msra.mxu0 %v1820
        %2309 = vmatprep.subr.bf16.mxu0 0
        %2310 = vmatpush1.bf16.msra.mxu0 0
        %2311 = vmatprep.subr.bf16.mxu0 0
        %2312 = vmatpush1.bf16.msra.mxu0 0
        %2313 = vmatprep.subr.bf16.mxu0 0
        %2314 = vmatpush1.bf16.msra.mxu0 0
        %2315 = vmatprep.subr.bf16.mxu0 0
        %2316 = vmatpush1.bf16.msra.mxu0 0
        %2317 = vmatprep.subr.bf16.mxu0 0
        %2318 = vmatpush1.bf16.msra.mxu0 0
        %2319 = vmatprep.subr.bf16.mxu0 0
        %2320 = vmatpush1.bf16.msra.mxu0 0
        %2321 = vmatprep.subr.bf16.mxu0 0
        %2322 = vmatpush1.bf16.msra.mxu0 0
        %2323 = vmatprep.subr.bf16.mxu0 0
        %2324 = vmatpush1.bf16.msra.mxu0 0
        %2325 = vmatprep.subr.bf16.mxu0 0
        %2326 = vmatpush1.bf16.msra.mxu0 0
        %2327 = vmatprep.subr.bf16.mxu0 0
        %2328 = vmatpush1.bf16.msra.mxu0 0
        %2329 = vmatprep.subr.bf16.mxu0 0
        %2330 = vmatpush1.bf16.msra.mxu0 0
        %2331 = vmatprep.subr.bf16.mxu0 0
        %2332 = vmatpush1.bf16.msra.mxu0 0
        %2333 = vmatprep.subr.bf16.mxu0 0
        %2334 = vmatpush1.bf16.msra.mxu0 0
        %2335 = vmatprep.subr.bf16.mxu0 0
        %2336 = vmatpush1.bf16.msra.mxu0 0
        %2337 = vmatprep.mubr.bf16.mxu0 0
        %2338 = vmatmul.mubr.bf16.gmra.mrb[0].mxu0 %v1876
        %v2339 = vpop.f32.mrb[0].mxu0
        %v2340 = vadd.f32 %v1847, %v2339
        %v2341 = vpop.f32.mrb[0].mxu0
        %v2342 = vadd.f32 %v1847, %v2341
        %v2343 = vpop.f32.mrb[0].mxu0
        %v2344 = vadd.f32 %v1852, %v2343
        %v2345 = vpop.f32.mrb[0].mxu0
        %v2346 = vadd.f32 %v1852, %v2345
        %2347 = vmatprep.mubr.bf16.mxu0 0
        %2348 = vmatmul.mubr.bf16.gmra.mrb[0].mxu0 %v1879
        %v2349 = vpop.f32.mrb[0].mxu0
        %v2350 = vadd.f32 %v1857, %v2349
        %v2351 = vpop.f32.mrb[0].mxu0
        %v2352 = vadd.f32 %v1857, %v2351
        %v2353 = vpop.f32.mrb[0].mxu0
        %v2354 = vadd.f32 %v1862, %v2353
        %v2355 = vpop.f32.mrb[0].mxu0
        %v2356 = vadd.f32 %v1862, %v2355
        %2357 = vdwg.mxu0
        %2358 = vmatprep.subr.bf16.mxu0 %v1787
        %2359 = vmatpush1.bf16.msra.mxu0 %v1786
        %2360 = vmatprep.subr.bf16.mxu0 %v1823
        %2361 = vmatpush1.bf16.msra.mxu0 %v1822
        %2362 = vmatprep.subr.bf16.mxu0 0
        %2363 = vmatpush1.bf16.msra.mxu0 0
        %2364 = vmatprep.subr.bf16.mxu0 0
        %2365 = vmatpush1.bf16.msra.mxu0 0
        %2366 = vmatprep.subr.bf16.mxu0 0
        %2367 = vmatpush1.bf16.msra.mxu0 0
        %2368 = vmatprep.subr.bf16.mxu0 0
        %2369 = vmatpush1.bf16.msra.mxu0 0
        %2370 = vmatprep.subr.bf16.mxu0 0
        %2371 = vmatpush1.bf16.msra.mxu0 0
        %2372 = vmatprep.subr.bf16.mxu0 0
        %2373 = vmatpush1.bf16.msra.mxu0 0
        %2374 = vmatprep.subr.bf16.mxu0 0
        %2375 = vmatpush1.bf16.msra.mxu0 0
        %2376 = vmatprep.subr.bf16.mxu0 0
        %2377 = vmatpush1.bf16.msra.mxu0 0
        %2378 = vmatprep.subr.bf16.mxu0 0
        %2379 = vmatpush1.bf16.msra.mxu0 0
        %2380 = vmatprep.subr.bf16.mxu0 0
        %2381 = vmatpush1.bf16.msra.mxu0 0
        %2382 = vmatprep.subr.bf16.mxu0 0
        %2383 = vmatpush1.bf16.msra.mxu0 0
        %2384 = vmatprep.subr.bf16.mxu0 0
        %2385 = vmatpush1.bf16.msra.mxu0 0
        %2386 = vmatprep.subr.bf16.mxu0 0
        %2387 = vmatpush1.bf16.msra.mxu0 0
        %2388 = vmatprep.subr.bf16.mxu0 0
        %2389 = vmatpush1.bf16.msra.mxu0 0
        %2390 = vmatprep.mubr.bf16.mxu0 0
        %2391 = vmatmul.mubr.bf16.gmra.mrb[0].mxu0 %v1876
        %v2392 = vpop.f32.mrb[0].mxu0
        %v2393 = vadd.f32 %v1847, %v2392
        %v2394 = vpop.f32.mrb[0].mxu0
        %v2395 = vadd.f32 %v1847, %v2394
        %v2396 = vpop.f32.mrb[0].mxu0
        %v2397 = vadd.f32 %v1852, %v2396
        %v2398 = vpop.f32.mrb[0].mxu0
        %v2399 = vadd.f32 %v1852, %v2398
        %2400 = vmatprep.mubr.bf16.mxu0 0
        %2401 = vmatmul.mubr.bf16.gmra.mrb[0].mxu0 %v1879
        %v2402 = vpop.f32.mrb[0].mxu0
        %v2403 = vadd.f32 %v1857, %v2402
        %v2404 = vpop.f32.mrb[0].mxu0
        %v2405 = vadd.f32 %v1857, %v2404
        %v2406 = vpop.f32.mrb[0].mxu0
        %v2407 = vadd.f32 %v1862, %v2406
        %v2408 = vpop.f32.mrb[0].mxu0
        %v2409 = vadd.f32 %v1862, %v2408
        %2410 = vdwg.mxu0
        %2411 = vmatprep.subr.bf16.mxu0 %v1789
        %2412 = vmatpush1.bf16.msra.mxu0 %v1788
        %2413 = vmatprep.subr.bf16.mxu0 %v1825
        %2414 = vmatpush1.bf16.msra.mxu0 %v1824
        %2415 = vmatprep.subr.bf16.mxu0 0
        %2416 = vmatpush1.bf16.msra.mxu0 0
        %2417 = vmatprep.subr.bf16.mxu0 0
        %2418 = vmatpush1.bf16.msra.mxu0 0
        %2419 = vmatprep.subr.bf16.mxu0 0
        %2420 = vmatpush1.bf16.msra.mxu0 0
        %2421 = vmatprep.subr.bf16.mxu0 0
        %2422 = vmatpush1.bf16.msra.mxu0 0
        %2423 = vmatprep.subr.bf16.mxu0 0
        %2424 = vmatpush1.bf16.msra.mxu0 0
        %2425 = vmatprep.subr.bf16.mxu0 0
        %2426 = vmatpush1.bf16.msra.mxu0 0
        %2427 = vmatprep.subr.bf16.mxu0 0
        %2428 = vmatpush1.bf16.msra.mxu0 0
        %2429 = vmatprep.subr.bf16.mxu0 0
        %2430 = vmatpush1.bf16.msra.mxu0 0
        %2431 = vmatprep.subr.bf16.mxu0 0
        %2432 = vmatpush1.bf16.msra.mxu0 0
        %2433 = vmatprep.subr.bf16.mxu0 0
        %2434 = vmatpush1.bf16.msra.mxu0 0
        %2435 = vmatprep.subr.bf16.mxu0 0
        %2436 = vmatpush1.bf16.msra.mxu0 0
        %2437 = vmatprep.subr.bf16.mxu0 0
        %2438 = vmatpush1.bf16.msra.mxu0 0
        %2439 = vmatprep.subr.bf16.mxu0 0
        %2440 = vmatpush1.bf16.msra.mxu0 0
        %2441 = vmatprep.subr.bf16.mxu0 0
        %2442 = vmatpush1.bf16.msra.mxu0 0
        %2443 = vmatprep.mubr.bf16.mxu0 0
        %2444 = vmatmul.mubr.bf16.gmra.mrb[0].mxu0 %v1876
        %v2445 = vpop.f32.mrb[0].mxu0
        %v2446 = vadd.f32 %v1847, %v2445
        %v2447 = vpop.f32.mrb[0].mxu0
        %v2448 = vadd.f32 %v1847, %v2447
        %v2449 = vpop.f32.mrb[0].mxu0
        %v2450 = vadd.f32 %v1852, %v2449
        %v2451 = vpop.f32.mrb[0].mxu0
        %v2452 = vadd.f32 %v1852, %v2451
        %2453 = vmatprep.mubr.bf16.mxu0 0
        %2454 = vmatmul.mubr.bf16.gmra.mrb[0].mxu0 %v1879
        %v2455 = vpop.f32.mrb[0].mxu0
        %v2456 = vadd.f32 %v1857, %v2455
        %v2457 = vpop.f32.mrb[0].mxu0
        %v2458 = vadd.f32 %v1857, %v2457
        %v2459 = vpop.f32.mrb[0].mxu0
        %v2460 = vadd.f32 %v1862, %v2459
        %v2461 = vpop.f32.mrb[0].mxu0
        %v2462 = vadd.f32 %v1862, %v2461
        %2463 = vdwg.mxu0
        %2464 = vmatprep.subr.bf16.mxu0 %v1791
        %2465 = vmatpush1.bf16.msra.mxu0 %v1790
        %2466 = vmatprep.subr.bf16.mxu0 %v1827
        %2467 = vmatpush1.bf16.msra.mxu0 %v1826
        %2468 = vmatprep.subr.bf16.mxu0 0
        %2469 = vmatpush1.bf16.msra.mxu0 0
        %2470 = vmatprep.subr.bf16.mxu0 0
        %2471 = vmatpush1.bf16.msra.mxu0 0
        %2472 = vmatprep.subr.bf16.mxu0 0
        %2473 = vmatpush1.bf16.msra.mxu0 0
        %2474 = vmatprep.subr.bf16.mxu0 0
        %2475 = vmatpush1.bf16.msra.mxu0 0
        %2476 = vmatprep.subr.bf16.mxu0 0
        %2477 = vmatpush1.bf16.msra.mxu0 0
        %2478 = vmatprep.subr.bf16.mxu0 0
        %2479 = vmatpush1.bf16.msra.mxu0 0
        %2480 = vmatprep.subr.bf16.mxu0 0
        %2481 = vmatpush1.bf16.msra.mxu0 0
        %2482 = vmatprep.subr.bf16.mxu0 0
        %2483 = vmatpush1.bf16.msra.mxu0 0
        %2484 = vmatprep.subr.bf16.mxu0 0
        %2485 = vmatpush1.bf16.msra.mxu0 0
        %2486 = vmatprep.subr.bf16.mxu0 0
        %2487 = vmatpush1.bf16.msra.mxu0 0
        %2488 = vmatprep.subr.bf16.mxu0 0
        %2489 = vmatpush1.bf16.msra.mxu0 0
        %2490 = vmatprep.subr.bf16.mxu0 0
        %2491 = vmatpush1.bf16.msra.mxu0 0
        %2492 = vmatprep.subr.bf16.mxu0 0
        %2493 = vmatpush1.bf16.msra.mxu0 0
        %2494 = vmatprep.subr.bf16.mxu0 0
        %2495 = vmatpush1.bf16.msra.mxu0 0
        %2496 = vmatprep.mubr.bf16.mxu0 0
        %2497 = vmatmul.mubr.bf16.gmra.mrb[0].mxu0 %v1876
        %v2498 = vpop.f32.mrb[0].mxu0
        %v2499 = vadd.f32 %v1847, %v2498
        %v2500 = vpop.f32.mrb[0].mxu0
        %v2501 = vadd.f32 %v1847, %v2500
        %v2502 = vpop.f32.mrb[0].mxu0
        %v2503 = vadd.f32 %v1852, %v2502
        %v2504 = vpop.f32.mrb[0].mxu0
        %v2505 = vadd.f32 %v1852, %v2504
        %2506 = vmatprep.mubr.bf16.mxu0 0
        %2507 = vmatmul.mubr.bf16.gmra.mrb[0].mxu0 %v1879
        %v2508 = vpop.f32.mrb[0].mxu0
        %v2509 = vadd.f32 %v1857, %v2508
        %v2510 = vpop.f32.mrb[0].mxu0
        %v2511 = vadd.f32 %v1857, %v2510
        %v2512 = vpop.f32.mrb[0].mxu0
        %v2513 = vadd.f32 %v1862, %v2512
        %v2514 = vpop.f32.mrb[0].mxu0
        %v2515 = vadd.f32 %v1862, %v2514
        %2516 = vdwg.mxu0
        %2517 = vmatprep.subr.bf16.mxu0 %v1793
        %2518 = vmatpush1.bf16.msra.mxu0 %v1792
        %2519 = vmatprep.subr.bf16.mxu0 %v1829
        %2520 = vmatpush1.bf16.msra.mxu0 %v1828
        %2521 = vmatprep.subr.bf16.mxu0 0
        %2522 = vmatpush1.bf16.msra.mxu0 0
        %2523 = vmatprep.subr.bf16.mxu0 0
        %2524 = vmatpush1.bf16.msra.mxu0 0
        %2525 = vmatprep.subr.bf16.mxu0 0
        %2526 = vmatpush1.bf16.msra.mxu0 0
        %2527 = vmatprep.subr.bf16.mxu0 0
        %2528 = vmatpush1.bf16.msra.mxu0 0
        %2529 = vmatprep.subr.bf16.mxu0 0
        %2530 = vmatpush1.bf16.msra.mxu0 0
        %2531 = vmatprep.subr.bf16.mxu0 0
        %2532 = vmatpush1.bf16.msra.mxu0 0
        %2533 = vmatprep.subr.bf16.mxu0 0
        %2534 = vmatpush1.bf16.msra.mxu0 0
        %2535 = vmatprep.subr.bf16.mxu0 0
        %2536 = vmatpush1.bf16.msra.mxu0 0
        %2537 = vmatprep.subr.bf16.mxu0 0
        %2538 = vmatpush1.bf16.msra.mxu0 0
        %2539 = vmatprep.subr.bf16.mxu0 0
        %2540 = vmatpush1.bf16.msra.mxu0 0
        %2541 = vmatprep.subr.bf16.mxu0 0
        %2542 = vmatpush1.bf16.msra.mxu0 0
        %2543 = vmatprep.subr.bf16.mxu0 0
        %2544 = vmatpush1.bf16.msra.mxu0 0
        %2545 = vmatprep.subr.bf16.mxu0 0
        %2546 = vmatpush1.bf16.msra.mxu0 0
        %2547 = vmatprep.subr.bf16.mxu0 0
        %2548 = vmatpush1.bf16.msra.mxu0 0
        %2549 = vmatprep.mubr.bf16.mxu0 0
        %2550 = vmatmul.mubr.bf16.gmra.mrb[0].mxu0 %v1876
        %v2551 = vpop.f32.mrb[0].mxu0
        %v2552 = vadd.f32 %v1847, %v2551
        %v2553 = vpop.f32.mrb[0].mxu0
        %v2554 = vadd.f32 %v1847, %v2553
        %v2555 = vpop.f32.mrb[0].mxu0
        %v2556 = vadd.f32 %v1852, %v2555
        %v2557 = vpop.f32.mrb[0].mxu0
        %v2558 = vadd.f32 %v1852, %v2557
        %2559 = vmatprep.mubr.bf16.mxu0 0
        %2560 = vmatmul.mubr.bf16.gmra.mrb[0].mxu0 %v1879
        %v2561 = vpop.f32.mrb[0].mxu0
        %v2562 = vadd.f32 %v1857, %v2561
        %v2563 = vpop.f32.mrb[0].mxu0
        %v2564 = vadd.f32 %v1857, %v2563
        %v2565 = vpop.f32.mrb[0].mxu0
        %v2566 = vadd.f32 %v1862, %v2565
        %v2567 = vpop.f32.mrb[0].mxu0
        %v2568 = vadd.f32 %v1862, %v2567
        %2569 = vdwg.mxu0
        %2570 = vmatprep.subr.bf16.mxu0 %v1795
        %2571 = vmatpush1.bf16.msra.mxu0 %v1794
        %2572 = vmatprep.subr.bf16.mxu0 %v1831
        %2573 = vmatpush1.bf16.msra.mxu0 %v1830
        %2574 = vmatprep.subr.bf16.mxu0 0
        %2575 = vmatpush1.bf16.msra.mxu0 0
        %2576 = vmatprep.subr.bf16.mxu0 0
        %2577 = vmatpush1.bf16.msra.mxu0 0
        %2578 = vmatprep.subr.bf16.mxu0 0
        %2579 = vmatpush1.bf16.msra.mxu0 0
        %2580 = vmatprep.subr.bf16.mxu0 0
        %2581 = vmatpush1.bf16.msra.mxu0 0
        %2582 = vmatprep.subr.bf16.mxu0 0
        %2583 = vmatpush1.bf16.msra.mxu0 0
        %2584 = vmatprep.subr.bf16.mxu0 0
        %2585 = vmatpush1.bf16.msra.mxu0 0
        %2586 = vmatprep.subr.bf16.mxu0 0
        %2587 = vmatpush1.bf16.msra.mxu0 0
        %2588 = vmatprep.subr.bf16.mxu0 0
        %2589 = vmatpush1.bf16.msra.mxu0 0
        %2590 = vmatprep.subr.bf16.mxu0 0
        %2591 = vmatpush1.bf16.msra.mxu0 0
        %2592 = vmatprep.subr.bf16.mxu0 0
        %2593 = vmatpush1.bf16.msra.mxu0 0
        %2594 = vmatprep.subr.bf16.mxu0 0
        %2595 = vmatpush1.bf16.msra.mxu0 0
        %2596 = vmatprep.subr.bf16.mxu0 0
        %2597 = vmatpush1.bf16.msra.mxu0 0
        %2598 = vmatprep.subr.bf16.mxu0 0
        %2599 = vmatpush1.bf16.msra.mxu0 0
        %2600 = vmatprep.subr.bf16.mxu0 0
        %2601 = vmatpush1.bf16.msra.mxu0 0
        %2602 = vmatprep.mubr.bf16.mxu0 0
        %2603 = vmatmul.mubr.bf16.gmra.mrb[0].mxu0 %v1876
        %v2604 = vpop.f32.mrb[0].mxu0
        %v2605 = vadd.f32 %v1847, %v2604
        %v2606 = vpop.f32.mrb[0].mxu0
        %v2607 = vadd.f32 %v1847, %v2606
        %v2608 = vpop.f32.mrb[0].mxu0
        %v2609 = vadd.f32 %v1852, %v2608
        %v2610 = vpop.f32.mrb[0].mxu0
        %v2611 = vadd.f32 %v1852, %v2610
        %2612 = vmatprep.mubr.bf16.mxu0 0
        %2613 = vmatmul.mubr.bf16.gmra.mrb[0].mxu0 %v1879
        %v2614 = vpop.f32.mrb[0].mxu0
        %v2615 = vadd.f32 %v1857, %v2614
        %v2616 = vpop.f32.mrb[0].mxu0
        %v2617 = vadd.f32 %v1857, %v2616
        %v2618 = vpop.f32.mrb[0].mxu0
        %v2619 = vadd.f32 %v1862, %v2618
        %v2620 = vpop.f32.mrb[0].mxu0
        %v2621 = vadd.f32 %v1862, %v2620
        %2622 = vdwg.mxu0
        %2623 = vmatprep.subr.bf16.mxu0 %v1797
        %2624 = vmatpush1.bf16.msra.mxu0 %v1796
        %2625 = vmatprep.subr.bf16.mxu0 %v1833
        %2626 = vmatpush1.bf16.msra.mxu0 %v1832
        %2627 = vmatprep.subr.bf16.mxu0 0
        %2628 = vmatpush1.bf16.msra.mxu0 0
        %2629 = vmatprep.subr.bf16.mxu0 0
        %2630 = vmatpush1.bf16.msra.mxu0 0
        %2631 = vmatprep.subr.bf16.mxu0 0
        %2632 = vmatpush1.bf16.msra.mxu0 0
        %2633 = vmatprep.subr.bf16.mxu0 0
        %2634 = vmatpush1.bf16.msra.mxu0 0
        %2635 = vmatprep.subr.bf16.mxu0 0
        %2636 = vmatpush1.bf16.msra.mxu0 0
        %2637 = vmatprep.subr.bf16.mxu0 0
        %2638 = vmatpush1.bf16.msra.mxu0 0
        %2639 = vmatprep.subr.bf16.mxu0 0
        %2640 = vmatpush1.bf16.msra.mxu0 0
        %2641 = vmatprep.subr.bf16.mxu0 0
        %2642 = vmatpush1.bf16.msra.mxu0 0
        %2643 = vmatprep.subr.bf16.mxu0 0
        %2644 = vmatpush1.bf16.msra.mxu0 0
        %2645 = vmatprep.subr.bf16.mxu0 0
        %2646 = vmatpush1.bf16.msra.mxu0 0
        %2647 = vmatprep.subr.bf16.mxu0 0
        %2648 = vmatpush1.bf16.msra.mxu0 0
        %2649 = vmatprep.subr.bf16.mxu0 0
        %2650 = vmatpush1.bf16.msra.mxu0 0
        %2651 = vmatprep.subr.bf16.mxu0 0
        %2652 = vmatpush1.bf16.msra.mxu0 0
        %2653 = vmatprep.subr.bf16.mxu0 0
        %2654 = vmatpush1.bf16.msra.mxu0 0
        %2655 = vmatprep.mubr.bf16.mxu0 0
        %2656 = vmatmul.mubr.bf16.gmra.mrb[0].mxu0 %v1876
        %v2657 = vpop.f32.mrb[0].mxu0
        %v2658 = vadd.f32 %v1847, %v2657
        %v2659 = vpop.f32.mrb[0].mxu0
        %v2660 = vadd.f32 %v1847, %v2659
        %v2661 = vpop.f32.mrb[0].mxu0
        %v2662 = vadd.f32 %v1852, %v2661
        %v2663 = vpop.f32.mrb[0].mxu0
        %v2664 = vadd.f32 %v1852, %v2663
        %2665 = vmatprep.mubr.bf16.mxu0 0
        %2666 = vmatmul.mubr.bf16.gmra.mrb[0].mxu0 %v1879
        %v2667 = vpop.f32.mrb[0].mxu0
        %v2668 = vadd.f32 %v1857, %v2667
        %v2669 = vpop.f32.mrb[0].mxu0
        %v2670 = vadd.f32 %v1857, %v2669
        %v2671 = vpop.f32.mrb[0].mxu0
        %v2672 = vadd.f32 %v1862, %v2671
        %v2673 = vpop.f32.mrb[0].mxu0
        %v2674 = vadd.f32 %v1862, %v2673
        %2675 = vdwg.mxu0
        %2676 = vmatprep.subr.bf16.mxu0 %v1799
        %2677 = vmatpush1.bf16.msra.mxu0 %v1798
        %2678 = vmatprep.subr.bf16.mxu0 %v1835
        %2679 = vmatpush1.bf16.msra.mxu0 %v1834
        %2680 = vmatprep.subr.bf16.mxu0 0
        %2681 = vmatpush1.bf16.msra.mxu0 0
        %2682 = vmatprep.subr.bf16.mxu0 0
        %2683 = vmatpush1.bf16.msra.mxu0 0
        %2684 = vmatprep.subr.bf16.mxu0 0
        %2685 = vmatpush1.bf16.msra.mxu0 0
        %2686 = vmatprep.subr.bf16.mxu0 0
        %2687 = vmatpush1.bf16.msra.mxu0 0
        %2688 = vmatprep.subr.bf16.mxu0 0
        %2689 = vmatpush1.bf16.msra.mxu0 0
        %2690 = vmatprep.subr.bf16.mxu0 0
        %2691 = vmatpush1.bf16.msra.mxu0 0
        %2692 = vmatprep.subr.bf16.mxu0 0
        %2693 = vmatpush1.bf16.msra.mxu0 0
        %2694 = vmatprep.subr.bf16.mxu0 0
        %2695 = vmatpush1.bf16.msra.mxu0 0
        %2696 = vmatprep.subr.bf16.mxu0 0
        %2697 = vmatpush1.bf16.msra.mxu0 0
        %2698 = vmatprep.subr.bf16.mxu0 0
        %2699 = vmatpush1.bf16.msra.mxu0 0
        %2700 = vmatprep.subr.bf16.mxu0 0
        %2701 = vmatpush1.bf16.msra.mxu0 0
        %2702 = vmatprep.subr.bf16.mxu0 0
        %2703 = vmatpush1.bf16.msra.mxu0 0
        %2704 = vmatprep.subr.bf16.mxu0 0
        %2705 = vmatpush1.bf16.msra.mxu0 0
        %2706 = vmatprep.subr.bf16.mxu0 0
        %2707 = vmatpush1.bf16.msra.mxu0 0
        %2708 = vmatprep.mubr.bf16.mxu0 0
        %2709 = vmatmul.mubr.bf16.gmra.mrb[0].mxu0 %v1876
        %v2710 = vpop.f32.mrb[0].mxu0
        %v2711 = vadd.f32 %v1847, %v2710
        %v2712 = vpop.f32.mrb[0].mxu0
        %v2713 = vadd.f32 %v1847, %v2712
        %v2714 = vpop.f32.mrb[0].mxu0
        %v2715 = vadd.f32 %v1852, %v2714
        %v2716 = vpop.f32.mrb[0].mxu0
        %v2717 = vadd.f32 %v1852, %v2716
        %2718 = vmatprep.mubr.bf16.mxu0 0
        %2719 = vmatmul.mubr.bf16.gmra.mrb[0].mxu0 %v1879
        %v2720 = vpop.f32.mrb[0].mxu0
        %v2721 = vadd.f32 %v1857, %v2720
        %v2722 = vpop.f32.mrb[0].mxu0
        %v2723 = vadd.f32 %v1857, %v2722
        %v2724 = vpop.f32.mrb[0].mxu0
        %v2725 = vadd.f32 %v1862, %v2724
        %v2726 = vpop.f32.mrb[0].mxu0
        %v2727 = vadd.f32 %v1862, %v2726
        %2728 = vdwg.mxu0
        %2729 = vmatprep.subr.bf16.mxu0 %v1801
        %2730 = vmatpush1.bf16.msra.mxu0 %v1800
        %2731 = vmatprep.subr.bf16.mxu0 %v1837
        %2732 = vmatpush1.bf16.msra.mxu0 %v1836
        %2733 = vmatprep.subr.bf16.mxu0 0
        %2734 = vmatpush1.bf16.msra.mxu0 0
        %2735 = vmatprep.subr.bf16.mxu0 0
        %2736 = vmatpush1.bf16.msra.mxu0 0
        %2737 = vmatprep.subr.bf16.mxu0 0
        %2738 = vmatpush1.bf16.msra.mxu0 0
        %2739 = vmatprep.subr.bf16.mxu0 0
        %2740 = vmatpush1.bf16.msra.mxu0 0
        %2741 = vmatprep.subr.bf16.mxu0 0
        %2742 = vmatpush1.bf16.msra.mxu0 0
        %2743 = vmatprep.subr.bf16.mxu0 0
        %2744 = vmatpush1.bf16.msra.mxu0 0
        %2745 = vmatprep.subr.bf16.mxu0 0
        %2746 = vmatpush1.bf16.msra.mxu0 0
        %2747 = vmatprep.subr.bf16.mxu0 0
        %2748 = vmatpush1.bf16.msra.mxu0 0
        %2749 = vmatprep.subr.bf16.mxu0 0
        %2750 = vmatpush1.bf16.msra.mxu0 0
        %2751 = vmatprep.subr.bf16.mxu0 0
        %2752 = vmatpush1.bf16.msra.mxu0 0
        %2753 = vmatprep.subr.bf16.mxu0 0
        %2754 = vmatpush1.bf16.msra.mxu0 0
        %2755 = vmatprep.subr.bf16.mxu0 0
        %2756 = vmatpush1.bf16.msra.mxu0 0
        %2757 = vmatprep.subr.bf16.mxu0 0
        %2758 = vmatpush1.bf16.msra.mxu0 0
        %2759 = vmatprep.subr.bf16.mxu0 0
        %2760 = vmatpush1.bf16.msra.mxu0 0
        %2761 = vmatprep.mubr.bf16.mxu0 0
        %2762 = vmatmul.mubr.bf16.gmra.mrb[0].mxu0 %v1876
        %v2763 = vpop.f32.mrb[0].mxu0
        %v2764 = vadd.f32 %v1847, %v2763
        %v2765 = vpop.f32.mrb[0].mxu0
        %v2766 = vadd.f32 %v1847, %v2765
        %v2767 = vpop.f32.mrb[0].mxu0
        %v2768 = vadd.f32 %v1852, %v2767
        %v2769 = vpop.f32.mrb[0].mxu0
        %v2770 = vadd.f32 %v1852, %v2769
        %2771 = vmatprep.mubr.bf16.mxu0 0
        %2772 = vmatmul.mubr.bf16.gmra.mrb[0].mxu0 %v1879
        %v2773 = vpop.f32.mrb[0].mxu0
        %v2774 = vadd.f32 %v1857, %v2773
        %v2775 = vpop.f32.mrb[0].mxu0
        %v2776 = vadd.f32 %v1857, %v2775
        %v2777 = vpop.f32.mrb[0].mxu0
        %v2778 = vadd.f32 %v1862, %v2777
        %v2779 = vpop.f32.mrb[0].mxu0
        %v2780 = vadd.f32 %v1862, %v2779
        %2781 = vdwg.mxu0
        %2782 = vmatprep.subr.bf16.mxu0 %v1803
        %2783 = vmatpush1.bf16.msra.mxu0 %v1802
        %2784 = vmatprep.subr.bf16.mxu0 %v1839
        %2785 = vmatpush1.bf16.msra.mxu0 %v1838
        %2786 = vmatprep.subr.bf16.mxu0 0
        %2787 = vmatpush1.bf16.msra.mxu0 0
        %2788 = vmatprep.subr.bf16.mxu0 0
        %2789 = vmatpush1.bf16.msra.mxu0 0
        %2790 = vmatprep.subr.bf16.mxu0 0
        %2791 = vmatpush1.bf16.msra.mxu0 0
        %2792 = vmatprep.subr.bf16.mxu0 0
        %2793 = vmatpush1.bf16.msra.mxu0 0
        %2794 = vmatprep.subr.bf16.mxu0 0
        %2795 = vmatpush1.bf16.msra.mxu0 0
        %2796 = vmatprep.subr.bf16.mxu0 0
        %2797 = vmatpush1.bf16.msra.mxu0 0
        %2798 = vmatprep.subr.bf16.mxu0 0
        %2799 = vmatpush1.bf16.msra.mxu0 0
        %2800 = vmatprep.subr.bf16.mxu0 0
        %2801 = vmatpush1.bf16.msra.mxu0 0
        %2802 = vmatprep.subr.bf16.mxu0 0
        %2803 = vmatpush1.bf16.msra.mxu0 0
        %2804 = vmatprep.subr.bf16.mxu0 0
        %2805 = vmatpush1.bf16.msra.mxu0 0
        %2806 = vmatprep.subr.bf16.mxu0 0
        %2807 = vmatpush1.bf16.msra.mxu0 0
        %2808 = vmatprep.subr.bf16.mxu0 0
        %2809 = vmatpush1.bf16.msra.mxu0 0
        %2810 = vmatprep.subr.bf16.mxu0 0
        %2811 = vmatpush1.bf16.msra.mxu0 0
        %2812 = vmatprep.subr.bf16.mxu0 0
        %2813 = vmatpush1.bf16.msra.mxu0 0
        %2814 = vmatprep.mubr.bf16.mxu0 0
        %2815 = vmatmul.mubr.bf16.gmra.mrb[0].mxu0 %v1876
        %v2816 = vpop.f32.mrb[0].mxu0
        %v2817 = vadd.f32 %v1847, %v2816
        %v2818 = vpop.f32.mrb[0].mxu0
        %v2819 = vadd.f32 %v1847, %v2818
        %v2820 = vpop.f32.mrb[0].mxu0
        %v2821 = vadd.f32 %v1852, %v2820
        %v2822 = vpop.f32.mrb[0].mxu0
        %v2823 = vadd.f32 %v1852, %v2822
        %2824 = vmatprep.mubr.bf16.mxu0 0
        %2825 = vmatmul.mubr.bf16.gmra.mrb[0].mxu0 %v1879
        %v2826 = vpop.f32.mrb[0].mxu0
        %v2827 = vadd.f32 %v1857, %v2826
        %v2828 = vpop.f32.mrb[0].mxu0
        %v2829 = vadd.f32 %v1857, %v2828
        %v2830 = vpop.f32.mrb[0].mxu0
        %v2831 = vadd.f32 %v1862, %v2830
        %v2832 = vpop.f32.mrb[0].mxu0
        %v2833 = vadd.f32 %v1862, %v2832
        %2834 = vdwg.mxu0
        %v2835 = vtanh.pop %v1916
        %v2836 = vtanh.pop %v1918
        %v2837 = vtanh.pop %v1969
        %v2838 = vtanh.pop %v1971
        %v2839 = vtanh.pop %v2022
        %v2840 = vtanh.pop %v2024
        %v2841 = vtanh.pop %v2075
        %v2842 = vtanh.pop %v2077
        %v2843 = vtanh.pop %v2128
        %v2844 = vtanh.pop %v2130
        %v2845 = vtanh.pop %v2181
        %v2846 = vtanh.pop %v2183
        %v2847 = vtanh.pop %v2234
        %v2848 = vtanh.pop %v2236
        %v2849 = vtanh.pop %v2287
        %v2850 = vtanh.pop %v2289
        %v2851 = vtanh.pop %v2340
        %v2852 = vtanh.pop %v2342
        %v2853 = vtanh.pop %v2393
        %v2854 = vtanh.pop %v2395
        %v2855 = vtanh.pop %v2446
        %v2856 = vtanh.pop %v2448
        %v2857 = vtanh.pop %v2499
        %v2858 = vtanh.pop %v2501
        %v2859 = vtanh.pop %v2552
        %v2860 = vtanh.pop %v2554
        %v2861 = vtanh.pop %v2605
        %v2862 = vtanh.pop %v2607
        %v2863 = vtanh.pop %v2658
        %v2864 = vtanh.pop %v2660
        %v2865 = vtanh.pop %v2711
        %v2866 = vtanh.pop %v2713
        %v2867 = vtanh.pop %v2764
        %v2868 = vtanh.pop %v2766
        %v2869 = vtanh.pop %v2817
        %v2870 = vtanh.pop %v2819
        %v2871 = vtanh.pop %v1920
        %v2872 = vtanh.pop %v1922
        %v2873 = vtanh.pop %v1973
        %v2874 = vtanh.pop %v1975
        %v2875 = vtanh.pop %v2026
        %v2876 = vtanh.pop %v2028
        %v2877 = vtanh.pop %v2079
        %v2878 = vtanh.pop %v2081
        %v2879 = vtanh.pop %v2132
        %v2880 = vtanh.pop %v2134
        %v2881 = vtanh.pop %v2185
        %v2882 = vtanh.pop %v2187
        %v2883 = vtanh.pop %v2238
        %v2884 = vtanh.pop %v2240
        %v2885 = vtanh.pop %v2291
        %v2886 = vtanh.pop %v2293
        %v2887 = vtanh.pop %v2344
        %v2888 = vtanh.pop %v2346
        %v2889 = vtanh.pop %v2397
        %v2890 = vtanh.pop %v2399
        %v2891 = vtanh.pop %v2450
        %v2892 = vtanh.pop %v2452
        %v2893 = vtanh.pop %v2503
        %v2894 = vtanh.pop %v2505
        %v2895 = vtanh.pop %v2556
        %v2896 = vtanh.pop %v2558
        %v2897 = vtanh.pop %v2609
        %v2898 = vtanh.pop %v2611
        %v2899 = vtanh.pop %v2662
        %v2900 = vtanh.pop %v2664
        %v2901 = vtanh.pop %v2715
        %v2902 = vtanh.pop %v2717
        %v2903 = vtanh.pop %v2768
        %v2904 = vtanh.pop %v2770
        %v2905 = vtanh.pop %v2821
        %v2906 = vtanh.pop %v2823
        %v2907 = vtanh.pop %v1926
        %v2908 = vtanh.pop %v1928
        %v2909 = vtanh.pop %v1979
        %v2910 = vtanh.pop %v1981
        %v2911 = vtanh.pop %v2032
        %v2912 = vtanh.pop %v2034
        %v2913 = vtanh.pop %v2085
        %v2914 = vtanh.pop %v2087
        %v2915 = vtanh.pop %v2138
        %v2916 = vtanh.pop %v2140
        %v2917 = vtanh.pop %v2191
        %v2918 = vtanh.pop %v2193
        %v2919 = vtanh.pop %v2244
        %v2920 = vtanh.pop %v2246
        %v2921 = vtanh.pop %v2297
        %v2922 = vtanh.pop %v2299
        %v2923 = vtanh.pop %v2350
        %v2924 = vtanh.pop %v2352
        %v2925 = vtanh.pop %v2403
        %v2926 = vtanh.pop %v2405
        %v2927 = vtanh.pop %v2456
        %v2928 = vtanh.pop %v2458
        %v2929 = vtanh.pop %v2509
        %v2930 = vtanh.pop %v2511
        %v2931 = vtanh.pop %v2562
        %v2932 = vtanh.pop %v2564
        %v2933 = vtanh.pop %v2615
        %v2934 = vtanh.pop %v2617
        %v2935 = vtanh.pop %v2668
        %v2936 = vtanh.pop %v2670
        %v2937 = vtanh.pop %v2721
        %v2938 = vtanh.pop %v2723
        %v2939 = vtanh.pop %v2774
        %v2940 = vtanh.pop %v2776
        %v2941 = vtanh.pop %v2827
        %v2942 = vtanh.pop %v2829
        %v2943 = vtanh.pop %v1930
        %v2944 = vtanh.pop %v1932
        %v2945 = vtanh.pop %v1983
        %v2946 = vtanh.pop %v1985
        %v2947 = vtanh.pop %v2036
        %v2948 = vtanh.pop %v2038
        %v2949 = vtanh.pop %v2089
        %v2950 = vtanh.pop %v2091
        %v2951 = vtanh.pop %v2142
        %v2952 = vtanh.pop %v2144
        %v2953 = vtanh.pop %v2195
        %v2954 = vtanh.pop %v2197
        %v2955 = vtanh.pop %v2248
        %v2956 = vtanh.pop %v2250
        %v2957 = vtanh.pop %v2301
        %v2958 = vtanh.pop %v2303
        %v2959 = vtanh.pop %v2354
        %v2960 = vtanh.pop %v2356
        %v2961 = vtanh.pop %v2407
        %v2962 = vtanh.pop %v2409
        %v2963 = vtanh.pop %v2460
        %v2964 = vtanh.pop %v2462
        %v2965 = vtanh.pop %v2513
        %v2966 = vtanh.pop %v2515
        %v2967 = vtanh.pop %v2566
        %v2968 = vtanh.pop %v2568
        %v2969 = vtanh.pop %v2619
        %v2970 = vtanh.pop %v2621
        %v2971 = vtanh.pop %v2672
        %v2972 = vtanh.pop %v2674
        %v2973 = vtanh.pop %v2725
        %v2974 = vtanh.pop %v2727
        %v2975 = vtanh.pop %v2778
        %v2976 = vtanh.pop %v2780
        %v2977 = vtanh.pop %v2831
        %v2978 = vtanh.pop %v2833
        %v2979 = vld [vmem:[%s5] sm:$0xff]
        %v2980 = vld [vmem:[%s5 + $0x8] sm:$0xff]
        %v2981 = vld [vmem:[%s5 + $0x10] sm:$0xff]
        %v2982 = vld [vmem:[%s5 + $0x18] sm:$0xff]
        %2984 = vset.pattern.permute.xlu0 0
        %2985 = vperm.xlu0 %2984, %v2979
        %v2986 = vpop.permute.xlu0 %2985
        %2989 = vset.pattern.permute.xlu0 0
        %2990 = vperm.xlu0 %2989, %v2980
        %v2991 = vpop.permute.xlu0 %2990
        %2994 = vset.pattern.permute.xlu0 0
        %2995 = vperm.xlu0 %2994, %v2981
        %v2996 = vpop.permute.xlu0 %2995
        %2999 = vset.pattern.permute.xlu0 0
        %3000 = vperm.xlu0 %2999, %v2982
        %v3001 = vpop.permute.xlu0 %3000
        %v3003 = vmul.f32 %v2986, %v2835
        %v3004 = vmul.f32 %v2986, %v2836
        %v3005 = vmul.f32 %v2986, %v2837
        %v3006 = vmul.f32 %v2986, %v2838
        %v3007 = vmul.f32 %v2986, %v2839
        %v3008 = vmul.f32 %v2986, %v2840
        %v3009 = vmul.f32 %v2986, %v2841
        %v3010 = vmul.f32 %v2986, %v2842
        %v3011 = vmul.f32 %v2986, %v2843
        %v3012 = vmul.f32 %v2986, %v2844
        %v3013 = vmul.f32 %v2986, %v2845
        %v3014 = vmul.f32 %v2986, %v2846
        %v3015 = vmul.f32 %v2986, %v2847
        %v3016 = vmul.f32 %v2986, %v2848
        %v3017 = vmul.f32 %v2986, %v2849
        %v3018 = vmul.f32 %v2986, %v2850
        %v3019 = vmul.f32 %v2986, %v2851
        %v3020 = vmul.f32 %v2986, %v2852
        %v3021 = vmul.f32 %v2986, %v2853
        %v3022 = vmul.f32 %v2986, %v2854
        %v3023 = vmul.f32 %v2986, %v2855
        %v3024 = vmul.f32 %v2986, %v2856
        %v3025 = vmul.f32 %v2986, %v2857
        %v3026 = vmul.f32 %v2986, %v2858
        %v3027 = vmul.f32 %v2986, %v2859
        %v3028 = vmul.f32 %v2986, %v2860
        %v3029 = vmul.f32 %v2986, %v2861
        %v3030 = vmul.f32 %v2986, %v2862
        %v3031 = vmul.f32 %v2986, %v2863
        %v3032 = vmul.f32 %v2986, %v2864
        %v3033 = vmul.f32 %v2986, %v2865
        %v3034 = vmul.f32 %v2986, %v2866
        %v3035 = vmul.f32 %v2986, %v2867
        %v3036 = vmul.f32 %v2986, %v2868
        %v3037 = vmul.f32 %v2986, %v2869
        %v3038 = vmul.f32 %v2986, %v2870
        %v3039 = vmul.f32 %v2991, %v2871
        %v3040 = vmul.f32 %v2991, %v2872
        %v3041 = vmul.f32 %v2991, %v2873
        %v3042 = vmul.f32 %v2991, %v2874
        %v3043 = vmul.f32 %v2991, %v2875
        %v3044 = vmul.f32 %v2991, %v2876
        %v3045 = vmul.f32 %v2991, %v2877
        %v3046 = vmul.f32 %v2991, %v2878
        %v3047 = vmul.f32 %v2991, %v2879
        %v3048 = vmul.f32 %v2991, %v2880
        %v3049 = vmul.f32 %v2991, %v2881
        %v3050 = vmul.f32 %v2991, %v2882
        %v3051 = vmul.f32 %v2991, %v2883
        %v3052 = vmul.f32 %v2991, %v2884
        %v3053 = vmul.f32 %v2991, %v2885
        %v3054 = vmul.f32 %v2991, %v2886
        %v3055 = vmul.f32 %v2991, %v2887
        %v3056 = vmul.f32 %v2991, %v2888
        %v3057 = vmul.f32 %v2991, %v2889
        %v3058 = vmul.f32 %v2991, %v2890
        %v3059 = vmul.f32 %v2991, %v2891
        %v3060 = vmul.f32 %v2991, %v2892
        %v3061 = vmul.f32 %v2991, %v2893
        %v3062 = vmul.f32 %v2991, %v2894
        %v3063 = vmul.f32 %v2991, %v2895
        %v3064 = vmul.f32 %v2991, %v2896
        %v3065 = vmul.f32 %v2991, %v2897
        %v3066 = vmul.f32 %v2991, %v2898
        %v3067 = vmul.f32 %v2991, %v2899
        %v3068 = vmul.f32 %v2991, %v2900
        %v3069 = vmul.f32 %v2991, %v2901
        %v3070 = vmul.f32 %v2991, %v2902
        %v3071 = vmul.f32 %v2991, %v2903
        %v3072 = vmul.f32 %v2991, %v2904
        %v3073 = vmul.f32 %v2991, %v2905
        %v3074 = vmul.f32 %v2991, %v2906
        %v3075 = vmul.f32 %v2996, %v2907
        %v3076 = vmul.f32 %v2996, %v2908
        %v3077 = vmul.f32 %v2996, %v2909
        %v3078 = vmul.f32 %v2996, %v2910
        %v3079 = vmul.f32 %v2996, %v2911
        %v3080 = vmul.f32 %v2996, %v2912
        %v3081 = vmul.f32 %v2996, %v2913
        %v3082 = vmul.f32 %v2996, %v2914
        %v3083 = vmul.f32 %v2996, %v2915
        %v3084 = vmul.f32 %v2996, %v2916
        %v3085 = vmul.f32 %v2996, %v2917
        %v3086 = vmul.f32 %v2996, %v2918
        %v3087 = vmul.f32 %v2996, %v2919
        %v3088 = vmul.f32 %v2996, %v2920
        %v3089 = vmul.f32 %v2996, %v2921
        %v3090 = vmul.f32 %v2996, %v2922
        %v3091 = vmul.f32 %v2996, %v2923
        %v3092 = vmul.f32 %v2996, %v2924
        %v3093 = vmul.f32 %v2996, %v2925
        %v3094 = vmul.f32 %v2996, %v2926
        %v3095 = vmul.f32 %v2996, %v2927
        %v3096 = vmul.f32 %v2996, %v2928
        %v3097 = vmul.f32 %v2996, %v2929
        %v3098 = vmul.f32 %v2996, %v2930
        %v3099 = vmul.f32 %v2996, %v2931
        %v3100 = vmul.f32 %v2996, %v2932
        %v3101 = vmul.f32 %v2996, %v2933
        %v3102 = vmul.f32 %v2996, %v2934
        %v3103 = vmul.f32 %v2996, %v2935
        %v3104 = vmul.f32 %v2996, %v2936
        %v3105 = vmul.f32 %v2996, %v2937
        %v3106 = vmul.f32 %v2996, %v2938
        %v3107 = vmul.f32 %v2996, %v2939
        %v3108 = vmul.f32 %v2996, %v2940
        %v3109 = vmul.f32 %v2996, %v2941
        %v3110 = vmul.f32 %v2996, %v2942
        %v3111 = vmul.f32 %v3001, %v2943
        %v3112 = vmul.f32 %v3001, %v2944
        %v3113 = vmul.f32 %v3001, %v2945
        %v3114 = vmul.f32 %v3001, %v2946
        %v3115 = vmul.f32 %v3001, %v2947
        %v3116 = vmul.f32 %v3001, %v2948
        %v3117 = vmul.f32 %v3001, %v2949
        %v3118 = vmul.f32 %v3001, %v2950
        %v3119 = vmul.f32 %v3001, %v2951
        %v3120 = vmul.f32 %v3001, %v2952
        %v3121 = vmul.f32 %v3001, %v2953
        %v3122 = vmul.f32 %v3001, %v2954
        %v3123 = vmul.f32 %v3001, %v2955
        %v3124 = vmul.f32 %v3001, %v2956
        %v3125 = vmul.f32 %v3001, %v2957
        %v3126 = vmul.f32 %v3001, %v2958
        %v3127 = vmul.f32 %v3001, %v2959
        %v3128 = vmul.f32 %v3001, %v2960
        %v3129 = vmul.f32 %v3001, %v2961
        %v3130 = vmul.f32 %v3001, %v2962
        %v3131 = vmul.f32 %v3001, %v2963
        %v3132 = vmul.f32 %v3001, %v2964
        %v3133 = vmul.f32 %v3001, %v2965
        %v3134 = vmul.f32 %v3001, %v2966
        %v3135 = vmul.f32 %v3001, %v2967
        %v3136 = vmul.f32 %v3001, %v2968
        %v3137 = vmul.f32 %v3001, %v2969
        %v3138 = vmul.f32 %v3001, %v2970
        %v3139 = vmul.f32 %v3001, %v2971
        %v3140 = vmul.f32 %v3001, %v2972
        %v3141 = vmul.f32 %v3001, %v2973
        %v3142 = vmul.f32 %v3001, %v2974
        %v3143 = vmul.f32 %v3001, %v2975
        %v3144 = vmul.f32 %v3001, %v2976
        %v3145 = vmul.f32 %v3001, %v2977
        %v3146 = vmul.f32 %v3001, %v2978
        %v3147 = vadd.f32 %v3003, %v3039
        %v3148 = vadd.f32 %v3147, %v3075
        %v3149 = vadd.f32 %v3148, %v3111
        %v3150 = vrot.slane %v3149, 4
        %v3151 = vadd.f32 %v3149, %v3150
        %v3152 = vrot.slane %v3151, 2
        %v3153 = vadd.f32 %v3151, %v3152
        %v3154 = vrot.slane %v3153, 1
        %v3155 = vadd.f32 %v3153, %v3154
        %v3156 = vadd.f32 %v3004, %v3040
        %v3157 = vadd.f32 %v3156, %v3076
        %v3158 = vadd.f32 %v3157, %v3112
        %v3159 = vrot.slane %v3158, 4
        %v3160 = vadd.f32 %v3158, %v3159
        %v3161 = vrot.slane %v3160, 2
        %v3162 = vadd.f32 %v3160, %v3161
        %v3163 = vrot.slane %v3162, 1
        %v3164 = vadd.f32 %v3162, %v3163
        %v3165 = vadd.f32 %v3005, %v3041
        %v3166 = vadd.f32 %v3165, %v3077
        %v3167 = vadd.f32 %v3166, %v3113
        %v3168 = vrot.slane %v3167, 4
        %v3169 = vadd.f32 %v3167, %v3168
        %v3170 = vrot.slane %v3169, 2
        %v3171 = vadd.f32 %v3169, %v3170
        %v3172 = vrot.slane %v3171, 1
        %v3173 = vadd.f32 %v3171, %v3172
        %v3174 = vadd.f32 %v3006, %v3042
        %v3175 = vadd.f32 %v3174, %v3078
        %v3176 = vadd.f32 %v3175, %v3114
        %v3177 = vrot.slane %v3176, 4
        %v3178 = vadd.f32 %v3176, %v3177
        %v3179 = vrot.slane %v3178, 2
        %v3180 = vadd.f32 %v3178, %v3179
        %v3181 = vrot.slane %v3180, 1
        %v3182 = vadd.f32 %v3180, %v3181
        %v3183 = vadd.f32 %v3007, %v3043
        %v3184 = vadd.f32 %v3183, %v3079
        %v3185 = vadd.f32 %v3184, %v3115
        %v3186 = vrot.slane %v3185, 4
        %v3187 = vadd.f32 %v3185, %v3186
        %v3188 = vrot.slane %v3187, 2
        %v3189 = vadd.f32 %v3187, %v3188
        %v3190 = vrot.slane %v3189, 1
        %v3191 = vadd.f32 %v3189, %v3190
        %v3192 = vadd.f32 %v3008, %v3044
        %v3193 = vadd.f32 %v3192, %v3080
        %v3194 = vadd.f32 %v3193, %v3116
        %v3195 = vrot.slane %v3194, 4
        %v3196 = vadd.f32 %v3194, %v3195
        %v3197 = vrot.slane %v3196, 2
        %v3198 = vadd.f32 %v3196, %v3197
        %v3199 = vrot.slane %v3198, 1
        %v3200 = vadd.f32 %v3198, %v3199
        %v3201 = vadd.f32 %v3009, %v3045
        %v3202 = vadd.f32 %v3201, %v3081
        %v3203 = vadd.f32 %v3202, %v3117
        %v3204 = vrot.slane %v3203, 4
        %v3205 = vadd.f32 %v3203, %v3204
        %v3206 = vrot.slane %v3205, 2
        %v3207 = vadd.f32 %v3205, %v3206
        %v3208 = vrot.slane %v3207, 1
        %v3209 = vadd.f32 %v3207, %v3208
        %v3210 = vadd.f32 %v3010, %v3046
        %v3211 = vadd.f32 %v3210, %v3082
        %v3212 = vadd.f32 %v3211, %v3118
        %v3213 = vrot.slane %v3212, 4
        %v3214 = vadd.f32 %v3212, %v3213
        %v3215 = vrot.slane %v3214, 2
        %v3216 = vadd.f32 %v3214, %v3215
        %v3217 = vrot.slane %v3216, 1
        %v3218 = vadd.f32 %v3216, %v3217
        %v3219 = vadd.f32 %v3011, %v3047
        %v3220 = vadd.f32 %v3219, %v3083
        %v3221 = vadd.f32 %v3220, %v3119
        %v3222 = vrot.slane %v3221, 4
        %v3223 = vadd.f32 %v3221, %v3222
        %v3224 = vrot.slane %v3223, 2
        %v3225 = vadd.f32 %v3223, %v3224
        %v3226 = vrot.slane %v3225, 1
        %v3227 = vadd.f32 %v3225, %v3226
        %v3228 = vadd.f32 %v3012, %v3048
        %v3229 = vadd.f32 %v3228, %v3084
        %v3230 = vadd.f32 %v3229, %v3120
        %v3231 = vrot.slane %v3230, 4
        %v3232 = vadd.f32 %v3230, %v3231
        %v3233 = vrot.slane %v3232, 2
        %v3234 = vadd.f32 %v3232, %v3233
        %v3235 = vrot.slane %v3234, 1
        %v3236 = vadd.f32 %v3234, %v3235
        %v3237 = vadd.f32 %v3013, %v3049
        %v3238 = vadd.f32 %v3237, %v3085
        %v3239 = vadd.f32 %v3238, %v3121
        %v3240 = vrot.slane %v3239, 4
        %v3241 = vadd.f32 %v3239, %v3240
        %v3242 = vrot.slane %v3241, 2
        %v3243 = vadd.f32 %v3241, %v3242
        %v3244 = vrot.slane %v3243, 1
        %v3245 = vadd.f32 %v3243, %v3244
        %v3246 = vadd.f32 %v3014, %v3050
        %v3247 = vadd.f32 %v3246, %v3086
        %v3248 = vadd.f32 %v3247, %v3122
        %v3249 = vrot.slane %v3248, 4
        %v3250 = vadd.f32 %v3248, %v3249
        %v3251 = vrot.slane %v3250, 2
        %v3252 = vadd.f32 %v3250, %v3251
        %v3253 = vrot.slane %v3252, 1
        %v3254 = vadd.f32 %v3252, %v3253
        %v3255 = vadd.f32 %v3015, %v3051
        %v3256 = vadd.f32 %v3255, %v3087
        %v3257 = vadd.f32 %v3256, %v3123
        %v3258 = vrot.slane %v3257, 4
        %v3259 = vadd.f32 %v3257, %v3258
        %v3260 = vrot.slane %v3259, 2
        %v3261 = vadd.f32 %v3259, %v3260
        %v3262 = vrot.slane %v3261, 1
        %v3263 = vadd.f32 %v3261, %v3262
        %v3264 = vadd.f32 %v3016, %v3052
        %v3265 = vadd.f32 %v3264, %v3088
        %v3266 = vadd.f32 %v3265, %v3124
        %v3267 = vrot.slane %v3266, 4
        %v3268 = vadd.f32 %v3266, %v3267
        %v3269 = vrot.slane %v3268, 2
        %v3270 = vadd.f32 %v3268, %v3269
        %v3271 = vrot.slane %v3270, 1
        %v3272 = vadd.f32 %v3270, %v3271
        %v3273 = vadd.f32 %v3017, %v3053
        %v3274 = vadd.f32 %v3273, %v3089
        %v3275 = vadd.f32 %v3274, %v3125
        %v3276 = vrot.slane %v3275, 4
        %v3277 = vadd.f32 %v3275, %v3276
        %v3278 = vrot.slane %v3277, 2
        %v3279 = vadd.f32 %v3277, %v3278
        %v3280 = vrot.slane %v3279, 1
        %v3281 = vadd.f32 %v3279, %v3280
        %v3282 = vadd.f32 %v3018, %v3054
        %v3283 = vadd.f32 %v3282, %v3090
        %v3284 = vadd.f32 %v3283, %v3126
        %v3285 = vrot.slane %v3284, 4
        %v3286 = vadd.f32 %v3284, %v3285
        %v3287 = vrot.slane %v3286, 2
        %v3288 = vadd.f32 %v3286, %v3287
        %v3289 = vrot.slane %v3288, 1
        %v3290 = vadd.f32 %v3288, %v3289
        %v3291 = vadd.f32 %v3019, %v3055
        %v3292 = vadd.f32 %v3291, %v3091
        %v3293 = vadd.f32 %v3292, %v3127
        %v3294 = vrot.slane %v3293, 4
        %v3295 = vadd.f32 %v3293, %v3294
        %v3296 = vrot.slane %v3295, 2
        %v3297 = vadd.f32 %v3295, %v3296
        %v3298 = vrot.slane %v3297, 1
        %v3299 = vadd.f32 %v3297, %v3298
        %v3300 = vadd.f32 %v3020, %v3056
        %v3301 = vadd.f32 %v3300, %v3092
        %v3302 = vadd.f32 %v3301, %v3128
        %v3303 = vrot.slane %v3302, 4
        %v3304 = vadd.f32 %v3302, %v3303
        %v3305 = vrot.slane %v3304, 2
        %v3306 = vadd.f32 %v3304, %v3305
        %v3307 = vrot.slane %v3306, 1
        %v3308 = vadd.f32 %v3306, %v3307
        %v3309 = vadd.f32 %v3021, %v3057
        %v3310 = vadd.f32 %v3309, %v3093
        %v3311 = vadd.f32 %v3310, %v3129
        %v3312 = vrot.slane %v3311, 4
        %v3313 = vadd.f32 %v3311, %v3312
        %v3314 = vrot.slane %v3313, 2
        %v3315 = vadd.f32 %v3313, %v3314
        %v3316 = vrot.slane %v3315, 1
        %v3317 = vadd.f32 %v3315, %v3316
        %v3318 = vadd.f32 %v3022, %v3058
        %v3319 = vadd.f32 %v3318, %v3094
        %v3320 = vadd.f32 %v3319, %v3130
        %v3321 = vrot.slane %v3320, 4
        %v3322 = vadd.f32 %v3320, %v3321
        %v3323 = vrot.slane %v3322, 2
        %v3324 = vadd.f32 %v3322, %v3323
        %v3325 = vrot.slane %v3324, 1
        %v3326 = vadd.f32 %v3324, %v3325
        %v3327 = vadd.f32 %v3023, %v3059
        %v3328 = vadd.f32 %v3327, %v3095
        %v3329 = vadd.f32 %v3328, %v3131
        %v3330 = vrot.slane %v3329, 4
        %v3331 = vadd.f32 %v3329, %v3330
        %v3332 = vrot.slane %v3331, 2
        %v3333 = vadd.f32 %v3331, %v3332
        %v3334 = vrot.slane %v3333, 1
        %v3335 = vadd.f32 %v3333, %v3334
        %v3336 = vadd.f32 %v3024, %v3060
        %v3337 = vadd.f32 %v3336, %v3096
        %v3338 = vadd.f32 %v3337, %v3132
        %v3339 = vrot.slane %v3338, 4
        %v3340 = vadd.f32 %v3338, %v3339
        %v3341 = vrot.slane %v3340, 2
        %v3342 = vadd.f32 %v3340, %v3341
        %v3343 = vrot.slane %v3342, 1
        %v3344 = vadd.f32 %v3342, %v3343
        %v3345 = vadd.f32 %v3025, %v3061
        %v3346 = vadd.f32 %v3345, %v3097
        %v3347 = vadd.f32 %v3346, %v3133
        %v3348 = vrot.slane %v3347, 4
        %v3349 = vadd.f32 %v3347, %v3348
        %v3350 = vrot.slane %v3349, 2
        %v3351 = vadd.f32 %v3349, %v3350
        %v3352 = vrot.slane %v3351, 1
        %v3353 = vadd.f32 %v3351, %v3352
        %v3354 = vadd.f32 %v3026, %v3062
        %v3355 = vadd.f32 %v3354, %v3098
        %v3356 = vadd.f32 %v3355, %v3134
        %v3357 = vrot.slane %v3356, 4
        %v3358 = vadd.f32 %v3356, %v3357
        %v3359 = vrot.slane %v3358, 2
        %v3360 = vadd.f32 %v3358, %v3359
        %v3361 = vrot.slane %v3360, 1
        %v3362 = vadd.f32 %v3360, %v3361
        %v3363 = vadd.f32 %v3027, %v3063
        %v3364 = vadd.f32 %v3363, %v3099
        %v3365 = vadd.f32 %v3364, %v3135
        %v3366 = vrot.slane %v3365, 4
        %v3367 = vadd.f32 %v3365, %v3366
        %v3368 = vrot.slane %v3367, 2
        %v3369 = vadd.f32 %v3367, %v3368
        %v3370 = vrot.slane %v3369, 1
        %v3371 = vadd.f32 %v3369, %v3370
        %v3372 = vadd.f32 %v3028, %v3064
        %v3373 = vadd.f32 %v3372, %v3100
        %v3374 = vadd.f32 %v3373, %v3136
        %v3375 = vrot.slane %v3374, 4
        %v3376 = vadd.f32 %v3374, %v3375
        %v3377 = vrot.slane %v3376, 2
        %v3378 = vadd.f32 %v3376, %v3377
        %v3379 = vrot.slane %v3378, 1
        %v3380 = vadd.f32 %v3378, %v3379
        %v3381 = vadd.f32 %v3029, %v3065
        %v3382 = vadd.f32 %v3381, %v3101
        %v3383 = vadd.f32 %v3382, %v3137
        %v3384 = vrot.slane %v3383, 4
        %v3385 = vadd.f32 %v3383, %v3384
        %v3386 = vrot.slane %v3385, 2
        %v3387 = vadd.f32 %v3385, %v3386
        %v3388 = vrot.slane %v3387, 1
        %v3389 = vadd.f32 %v3387, %v3388
        %v3390 = vadd.f32 %v3030, %v3066
        %v3391 = vadd.f32 %v3390, %v3102
        %v3392 = vadd.f32 %v3391, %v3138
        %v3393 = vrot.slane %v3392, 4
        %v3394 = vadd.f32 %v3392, %v3393
        %v3395 = vrot.slane %v3394, 2
        %v3396 = vadd.f32 %v3394, %v3395
        %v3397 = vrot.slane %v3396, 1
        %v3398 = vadd.f32 %v3396, %v3397
        %v3399 = vadd.f32 %v3031, %v3067
        %v3400 = vadd.f32 %v3399, %v3103
        %v3401 = vadd.f32 %v3400, %v3139
        %v3402 = vrot.slane %v3401, 4
        %v3403 = vadd.f32 %v3401, %v3402
        %v3404 = vrot.slane %v3403, 2
        %v3405 = vadd.f32 %v3403, %v3404
        %v3406 = vrot.slane %v3405, 1
        %v3407 = vadd.f32 %v3405, %v3406
        %v3408 = vadd.f32 %v3032, %v3068
        %v3409 = vadd.f32 %v3408, %v3104
        %v3410 = vadd.f32 %v3409, %v3140
        %v3411 = vrot.slane %v3410, 4
        %v3412 = vadd.f32 %v3410, %v3411
        %v3413 = vrot.slane %v3412, 2
        %v3414 = vadd.f32 %v3412, %v3413
        %v3415 = vrot.slane %v3414, 1
        %v3416 = vadd.f32 %v3414, %v3415
        %v3417 = vadd.f32 %v3033, %v3069
        %v3418 = vadd.f32 %v3417, %v3105
        %v3419 = vadd.f32 %v3418, %v3141
        %v3420 = vrot.slane %v3419, 4
        %v3421 = vadd.f32 %v3419, %v3420
        %v3422 = vrot.slane %v3421, 2
        %v3423 = vadd.f32 %v3421, %v3422
        %v3424 = vrot.slane %v3423, 1
        %v3425 = vadd.f32 %v3423, %v3424
        %v3426 = vadd.f32 %v3034, %v3070
        %v3427 = vadd.f32 %v3426, %v3106
        %v3428 = vadd.f32 %v3427, %v3142
        %v3429 = vrot.slane %v3428, 4
        %v3430 = vadd.f32 %v3428, %v3429
        %v3431 = vrot.slane %v3430, 2
        %v3432 = vadd.f32 %v3430, %v3431
        %v3433 = vrot.slane %v3432, 1
        %v3434 = vadd.f32 %v3432, %v3433
        %v3435 = vadd.f32 %v3035, %v3071
        %v3436 = vadd.f32 %v3435, %v3107
        %v3437 = vadd.f32 %v3436, %v3143
        %v3438 = vrot.slane %v3437, 4
        %v3439 = vadd.f32 %v3437, %v3438
        %v3440 = vrot.slane %v3439, 2
        %v3441 = vadd.f32 %v3439, %v3440
        %v3442 = vrot.slane %v3441, 1
        %v3443 = vadd.f32 %v3441, %v3442
        %v3444 = vadd.f32 %v3036, %v3072
        %v3445 = vadd.f32 %v3444, %v3108
        %v3446 = vadd.f32 %v3445, %v3144
        %v3447 = vrot.slane %v3446, 4
        %v3448 = vadd.f32 %v3446, %v3447
        %v3449 = vrot.slane %v3448, 2
        %v3450 = vadd.f32 %v3448, %v3449
        %v3451 = vrot.slane %v3450, 1
        %v3452 = vadd.f32 %v3450, %v3451
        %v3453 = vadd.f32 %v3037, %v3073
        %v3454 = vadd.f32 %v3453, %v3109
        %v3455 = vadd.f32 %v3454, %v3145
        %v3456 = vrot.slane %v3455, 4
        %v3457 = vadd.f32 %v3455, %v3456
        %v3458 = vrot.slane %v3457, 2
        %v3459 = vadd.f32 %v3457, %v3458
        %v3460 = vrot.slane %v3459, 1
        %v3461 = vadd.f32 %v3459, %v3460
        %v3462 = vadd.f32 %v3038, %v3074
        %v3463 = vadd.f32 %v3462, %v3110
        %v3464 = vadd.f32 %v3463, %v3146
        %v3465 = vrot.slane %v3464, 4
        %v3466 = vadd.f32 %v3464, %v3465
        %v3467 = vrot.slane %v3466, 2
        %v3468 = vadd.f32 %v3466, %v3467
        %v3469 = vrot.slane %v3468, 1
        %v3470 = vadd.f32 %v3468, %v3469
        %v3471 = vld [vmem:[#allocation2] sm:$0x1]
        %3473 = vset.pattern.permute.xlu0 0
        %3474 = vperm.xlu0 %3473, %v3471
        %v3475 = vpop.permute.xlu0 %3474
        %v3477 = vlaneseq
        %v3478 = vshrl.u32 %v3477, 7
        %v3479 = vsub.s32 0, %v3478
        %v3480 = vrot.slane %v3475, %v3479
        %v3481 = vadd.f32 %v3155, %v3480
        %v3482 = vadd.f32 %v3164, %v3480
        %v3483 = vadd.f32 %v3173, %v3480
        %v3484 = vadd.f32 %v3182, %v3480
        %v3485 = vadd.f32 %v3191, %v3480
        %v3486 = vadd.f32 %v3200, %v3480
        %v3487 = vadd.f32 %v3209, %v3480
        %v3488 = vadd.f32 %v3218, %v3480
        %v3489 = vadd.f32 %v3227, %v3480
        %v3490 = vadd.f32 %v3236, %v3480
        %v3491 = vadd.f32 %v3245, %v3480
        %v3492 = vadd.f32 %v3254, %v3480
        %v3493 = vadd.f32 %v3263, %v3480
        %v3494 = vadd.f32 %v3272, %v3480
        %v3495 = vadd.f32 %v3281, %v3480
        %v3496 = vadd.f32 %v3290, %v3480
        %v3497 = vadd.f32 %v3299, %v3480
        %v3498 = vadd.f32 %v3308, %v3480
        %v3499 = vadd.f32 %v3317, %v3480
        %v3500 = vadd.f32 %v3326, %v3480
        %v3501 = vadd.f32 %v3335, %v3480
        %v3502 = vadd.f32 %v3344, %v3480
        %v3503 = vadd.f32 %v3353, %v3480
        %v3504 = vadd.f32 %v3362, %v3480
        %v3505 = vadd.f32 %v3371, %v3480
        %v3506 = vadd.f32 %v3380, %v3480
        %v3507 = vadd.f32 %v3389, %v3480
        %v3508 = vadd.f32 %v3398, %v3480
        %v3509 = vadd.f32 %v3407, %v3480
        %v3510 = vadd.f32 %v3416, %v3480
        %v3511 = vadd.f32 %v3425, %v3480
        %v3512 = vadd.f32 %v3434, %v3480
        %v3513 = vadd.f32 %v3443, %v3480
        %v3514 = vadd.f32 %v3452, %v3480
        %v3515 = vadd.f32 %v3461, %v3480
        %v3516 = vadd.f32 %v3470, %v3480
        %v3553 = vcombine.low %v3481, %v3482
        %v3554 = vcombine.low %v3483, %v3484
        %v3555 = vcombine.low %v3485, %v3486
        %v3556 = vcombine.low %v3487, %v3488
        %v3558 = vunpack.c.l.s4 1966171168
        %v3559 = vunpack.c.0.s8 %v3558
        %v3560 = vlaneseq
        %v3561 = vshrl.u32 %v3560, 7
        %v3562 = vsub.s32 %v3559, %v3561
        %v3563 = vrot.slane %v3553, %v3562
        %v3565 = vunpack.c.l.s4 1966171168
        %v3566 = vunpack.c.0.s8 %v3565
        %v3567 = vlaneseq
        %v3568 = vshrl.u32 %v3567, 7
        %v3569 = vsub.s32 %v3566, %v3568
        %v3570 = vrot.slane %v3554, %v3569
        %v3572 = vunpack.c.l.s4 1966171168
        %v3573 = vunpack.c.0.s8 %v3572
        %v3574 = vlaneseq
        %v3575 = vshrl.u32 %v3574, 7
        %v3576 = vsub.s32 %v3573, %v3575
        %v3577 = vrot.slane %v3555, %v3576
        %v3579 = vunpack.c.l.s4 1966171168
        %v3580 = vunpack.c.0.s8 %v3579
        %v3581 = vlaneseq
        %v3582 = vshrl.u32 %v3581, 7
        %v3583 = vsub.s32 %v3580, %v3582
        %v3584 = vrot.slane %v3556, %v3583
        %v3585 = vcombine.low %v3563, %v3570
        %v3586 = vcombine.low %v3577, %v3584
        %v3588 = vunpack.c.l.s4 1966171168
        %v3589 = vunpack.c.0.s8 %v3588
        %v3590 = vlaneseq
        %v3591 = vshrl.u32 %v3590, 7
        %v3592 = vsub.s32 %v3589, %v3591
        %v3593 = vrot.slane %v3585, %v3592
        %v3595 = vunpack.c.l.s4 1966171168
        %v3596 = vunpack.c.0.s8 %v3595
        %v3597 = vlaneseq
        %v3598 = vshrl.u32 %v3597, 7
        %v3599 = vsub.s32 %v3596, %v3598
        %v3600 = vrot.slane %v3586, %v3599
        %v3601 = vcombine.low %v3593, %v3600
        %v3602 = vcombine.low %v3489, %v3490
        %v3603 = vcombine.low %v3491, %v3492
        %v3604 = vcombine.low %v3493, %v3494
        %v3605 = vcombine.low %v3495, %v3496
        %v3607 = vunpack.c.l.s4 1966171168
        %v3608 = vunpack.c.0.s8 %v3607
        %v3609 = vlaneseq
        %v3610 = vshrl.u32 %v3609, 7
        %v3611 = vsub.s32 %v3608, %v3610
        %v3612 = vrot.slane %v3602, %v3611
        %v3614 = vunpack.c.l.s4 1966171168
        %v3615 = vunpack.c.0.s8 %v3614
        %v3616 = vlaneseq
        %v3617 = vshrl.u32 %v3616, 7
        %v3618 = vsub.s32 %v3615, %v3617
        %v3619 = vrot.slane %v3603, %v3618
        %v3621 = vunpack.c.l.s4 1966171168
        %v3622 = vunpack.c.0.s8 %v3621
        %v3623 = vlaneseq
        %v3624 = vshrl.u32 %v3623, 7
        %v3625 = vsub.s32 %v3622, %v3624
        %v3626 = vrot.slane %v3604, %v3625
        %v3628 = vunpack.c.l.s4 1966171168
        %v3629 = vunpack.c.0.s8 %v3628
        %v3630 = vlaneseq
        %v3631 = vshrl.u32 %v3630, 7
        %v3632 = vsub.s32 %v3629, %v3631
        %v3633 = vrot.slane %v3605, %v3632
        %v3634 = vcombine.low %v3612, %v3619
        %v3635 = vcombine.low %v3626, %v3633
        %v3637 = vunpack.c.l.s4 1966171168
        %v3638 = vunpack.c.0.s8 %v3637
        %v3639 = vlaneseq
        %v3640 = vshrl.u32 %v3639, 7
        %v3641 = vsub.s32 %v3638, %v3640
        %v3642 = vrot.slane %v3634, %v3641
        %v3644 = vunpack.c.l.s4 1966171168
        %v3645 = vunpack.c.0.s8 %v3644
        %v3646 = vlaneseq
        %v3647 = vshrl.u32 %v3646, 7
        %v3648 = vsub.s32 %v3645, %v3647
        %v3649 = vrot.slane %v3635, %v3648
        %v3650 = vcombine.low %v3642, %v3649
        %v3651 = vcombine.low %v3497, %v3498
        %v3652 = vcombine.low %v3499, %v3500
        %v3653 = vcombine.low %v3501, %v3502
        %v3654 = vcombine.low %v3503, %v3504
        %v3656 = vunpack.c.l.s4 1966171168
        %v3657 = vunpack.c.0.s8 %v3656
        %v3658 = vlaneseq
        %v3659 = vshrl.u32 %v3658, 7
        %v3660 = vsub.s32 %v3657, %v3659
        %v3661 = vrot.slane %v3651, %v3660
        %v3663 = vunpack.c.l.s4 1966171168
        %v3664 = vunpack.c.0.s8 %v3663
        %v3665 = vlaneseq
        %v3666 = vshrl.u32 %v3665, 7
        %v3667 = vsub.s32 %v3664, %v3666
        %v3668 = vrot.slane %v3652, %v3667
        %v3670 = vunpack.c.l.s4 1966171168
        %v3671 = vunpack.c.0.s8 %v3670
        %v3672 = vlaneseq
        %v3673 = vshrl.u32 %v3672, 7
        %v3674 = vsub.s32 %v3671, %v3673
        %v3675 = vrot.slane %v3653, %v3674
        %v3677 = vunpack.c.l.s4 1966171168
        %v3678 = vunpack.c.0.s8 %v3677
        %v3679 = vlaneseq
        %v3680 = vshrl.u32 %v3679, 7
        %v3681 = vsub.s32 %v3678, %v3680
        %v3682 = vrot.slane %v3654, %v3681
        %v3683 = vcombine.low %v3661, %v3668
        %v3684 = vcombine.low %v3675, %v3682
        %v3686 = vunpack.c.l.s4 1966171168
        %v3687 = vunpack.c.0.s8 %v3686
        %v3688 = vlaneseq
        %v3689 = vshrl.u32 %v3688, 7
        %v3690 = vsub.s32 %v3687, %v3689
        %v3691 = vrot.slane %v3683, %v3690
        %v3693 = vunpack.c.l.s4 1966171168
        %v3694 = vunpack.c.0.s8 %v3693
        %v3695 = vlaneseq
        %v3696 = vshrl.u32 %v3695, 7
        %v3697 = vsub.s32 %v3694, %v3696
        %v3698 = vrot.slane %v3684, %v3697
        %v3699 = vcombine.low %v3691, %v3698
        %v3700 = vcombine.low %v3505, %v3506
        %v3701 = vcombine.low %v3507, %v3508
        %v3702 = vcombine.low %v3509, %v3510
        %v3703 = vcombine.low %v3511, %v3512
        %v3705 = vunpack.c.l.s4 1966171168
        %v3706 = vunpack.c.0.s8 %v3705
        %v3707 = vlaneseq
        %v3708 = vshrl.u32 %v3707, 7
        %v3709 = vsub.s32 %v3706, %v3708
        %v3710 = vrot.slane %v3700, %v3709
        %v3712 = vunpack.c.l.s4 1966171168
        %v3713 = vunpack.c.0.s8 %v3712
        %v3714 = vlaneseq
        %v3715 = vshrl.u32 %v3714, 7
        %v3716 = vsub.s32 %v3713, %v3715
        %v3717 = vrot.slane %v3701, %v3716
        %v3719 = vunpack.c.l.s4 1966171168
        %v3720 = vunpack.c.0.s8 %v3719
        %v3721 = vlaneseq
        %v3722 = vshrl.u32 %v3721, 7
        %v3723 = vsub.s32 %v3720, %v3722
        %v3724 = vrot.slane %v3702, %v3723
        %v3726 = vunpack.c.l.s4 1966171168
        %v3727 = vunpack.c.0.s8 %v3726
        %v3728 = vlaneseq
        %v3729 = vshrl.u32 %v3728, 7
        %v3730 = vsub.s32 %v3727, %v3729
        %v3731 = vrot.slane %v3703, %v3730
        %v3732 = vcombine.low %v3710, %v3717
        %v3733 = vcombine.low %v3724, %v3731
        %v3735 = vunpack.c.l.s4 1966171168
        %v3736 = vunpack.c.0.s8 %v3735
        %v3737 = vlaneseq
        %v3738 = vshrl.u32 %v3737, 7
        %v3739 = vsub.s32 %v3736, %v3738
        %v3740 = vrot.slane %v3732, %v3739
        %v3742 = vunpack.c.l.s4 1966171168
        %v3743 = vunpack.c.0.s8 %v3742
        %v3744 = vlaneseq
        %v3745 = vshrl.u32 %v3744, 7
        %v3746 = vsub.s32 %v3743, %v3745
        %v3747 = vrot.slane %v3733, %v3746
        %v3748 = vcombine.low %v3740, %v3747
        %v3749 = vcombine.low %v3513, %v3514
        %v3750 = vcombine.low %v3515, %v3516
        %v3752 = vunpack.c.l.s4 1966171168
        %v3753 = vunpack.c.0.s8 %v3752
        %v3754 = vlaneseq
        %v3755 = vshrl.u32 %v3754, 7
        %v3756 = vsub.s32 %v3753, %v3755
        %v3757 = vrot.slane %v3749, %v3756
        %v3759 = vunpack.c.l.s4 1966171168
        %v3760 = vunpack.c.0.s8 %v3759
        %v3761 = vlaneseq
        %v3762 = vshrl.u32 %v3761, 7
        %v3763 = vsub.s32 %v3760, %v3762
        %v3764 = vrot.slane %v3750, %v3763
        %v3765 = vcombine.low %v3757, %v3764
        %v3767 = vunpack.c.l.s4 1966171168
        %v3768 = vunpack.c.0.s8 %v3767
        %v3769 = vlaneseq
        %v3770 = vshrl.u32 %v3769, 7
        %v3771 = vsub.s32 %v3768, %v3770
        %v3772 = vrot.slane %v3765, %v3771
        %3778 = vst [vmem:[%s302] sm:$0xff] %v3601
        %3779 = vst [vmem:[%s302 + $0x8] sm:$0xff] %v3650
        %3780 = vst [vmem:[%s302 + $0x10] sm:$0xff] %v3699
        %3781 = vst [vmem:[%s302 + $0x18] sm:$0xff] %v3748
        %v3782 = vlaneseq
        %vm3783 = vcmp.ge.s32.totalorder %v3782, 0
        %vm3784 = vcmp.lt.s32.totalorder %v3782, 512
        %vm3785 = vmand %vm3783, %vm3784
        %3786 = vst.msk [vmem:[%s302 + $0x20] sm:$0xf] %vm3785, %v3772
        %s3787 = sand.u32 %s186, 1
        %s3788 = scalar_lea.sflag [#allocation5], %s3787
        %s3789 = sand.u32 %s186, 1
        %s3790 = smul.addr %s3789, 36
        %s3791 = scalar_lea.vmem [#allocation6], %s3790
        // Predicated region
        $region53: #{tpu_custom_call.1} parent=47 // pred_check
          %p3792 = pneg %p196
        $region54: #{tpu_custom_call.1} parent=47 // pred_check_branch
          %3794 = sbr.rel (%p3792) target = $region56
        $region55: #{tpu_custom_call.1} parent=47 // pred_region
          %s3795 = smul.u32 36, %s26
          %s3796 = ssub.s32 71, %s3795
          %p3797 = scmp.lt.s32.totalorder %s3796, 36
          %s3798 = scalar_select %p3797, %s3796, 36
          %s3799 = smul.u32 16, %s3798
          %s3801 = ssub.s32 576, %s3799
          %3802 = vsyncadd %s3788, %s3801
          %p3803 = scmp.ne.s32.totalorder 0, %s3799
          %s3804 = smul.addr %s3795, 16
          %s3805 = scalar_lea.hbm %s7, %s3804
          %s3806 = sshll.u32 %s3798, 4
          %s3807 = sshll.u32 %s3791, 4
          %s3808 = int_to_ptr.vmem [resolvable:$true] %s3807
          %3810 = dma.vmem_to_hbm [thread:$0]  (%p3803), %s3808, %s3806, %s3805, %s3788
        $region56: #{tpu_custom_call.1} parent=47 // pred_fallthru
          _
      $region48: #{tpu_custom_call.1} parent=5 // pred_fallthru
        _
      %p3811 = scmp.le.s32.totalorder 2, %s21
      // Predicated region
      $region57: #{tpu_custom_call.1} parent=5 // pred_check
        %p3812 = pneg %p3811
      $region58: #{tpu_custom_call.1} parent=5 // pred_check_branch
        %3814 = sbr.rel (%p3812) target = $region60
      $region59: #{tpu_custom_call.1} parent=5 // pred_region
        %s3815 = ssub.s32 %s21, 2
        // Predicated region
        $region61: #{tpu_custom_call.1} parent=59 // pred_check
          %p3816 = pneg %p202
        $region62: #{tpu_custom_call.1} parent=59 // pred_check_branch
          %3818 = sbr.rel (%p3816) target = $region64
        $region63: #{tpu_custom_call.1} parent=59 // pred_region
          %s3819 = sand.u32 %s187, 1
          %s3820 = scalar_lea.sflag [#allocation5], %s3819
          %s3821 = sand.u32 %s187, 1
          %s3822 = smul.addr %s3821, 36
          %s3823 = scalar_lea.vmem [#allocation6], %s3822
          %3824 = dma.done %s3820, 576
        $region64: #{tpu_custom_call.1} parent=59 // pred_fallthru
          _
      $region60: #{tpu_custom_call.1} parent=5 // pred_fallthru
        _
    $region6: #{tpu_custom_call.1} parent=1 // loop_footer
      %s25 = sadd.s32 1, %s21
    $region7: #{tpu_custom_call.1} parent=1 // loop_footer_branch
      %20 = sbr.rel target = $region3
    $region8: #{tpu_custom_call.1} parent=1 // loop_exit
      _
    %3825 = vsyncpa [#allocation4], 1
    %s3826 = scalar_lea.sflag [#allocation4], 1
    %3827 = vsyncpa %s3826, 1
    %3828 = vsyncpa [#allocation5], 1
    %s3829 = scalar_lea.sflag [#allocation5], 1
    %3830 = vsyncpa %s3829, 1

</llo_original>
